<compile_context>
chip_gen: v5e
topology: v5e:2x2
jax: 0.10.0
libtpu: 0.0.40
codegen_flags: <defaults>
</compile_context>

<pallas_src>
import numpy as np
import jax
import jax.numpy as jnp
from jax.experimental import pallas as pl
from jax.experimental.pallas import tpu as pltpu

_KS = (2, 3, 5, 6)  # pool kernel/stride sizes, output channel order 0..3


# --------------------------------------------------------------------------- #
# Host-side constant construction
# --------------------------------------------------------------------------- #
def _bilinear_matrix(out_size, in_size):
    """(out_size, in_size) interp matrix: bilinear, align_corners=False."""
    scale = in_size / out_size
    o = np.arange(out_size, dtype=np.float64)
    src = np.maximum((o + 0.5) * scale - 0.5, 0.0)
    i0 = np.minimum(np.floor(src).astype(np.int64), in_size - 1)
    i1 = np.minimum(i0 + 1, in_size - 1)
    lam = src - i0
    A = np.zeros((out_size, in_size), dtype=np.float64)
    A[np.arange(out_size), i0] += 1.0 - lam
    A[np.arange(out_size), i1] += lam
    return A


def _select_upsample_matrix(H, W, k):
    """(H*W, H*W) constant M_k.

    Row (i*k*W + j*k) — the flat position where the rolled-max slab holds the
    max of pool window (i, j) — contains that window's bilinear-upsample
    weights (row of kron(A_h, A_w)^T); every other row is zero.  This fuses
    "pick the window-corner lanes" compaction with the upsample so the kernel
    needs exactly one MXU matmul per branch.
    """
    h_k, w_k = H // k, W // k
    A_h = _bilinear_matrix(H, h_k)                  # (H, h_k)
    A_w = _bilinear_matrix(W, w_k)                  # (W, w_k)
    U = np.kron(A_h, A_w).T                         # (h_k*w_k, H*W)
    M = np.zeros((H * W, H * W), dtype=np.float64)
    ii, jj = np.meshgrid(np.arange(h_k), np.arange(w_k), indexing="ij")
    M[(ii * k * W + jj * k).ravel(), :] = U
    return M.astype(np.float32)


def _pick_batch_block(N):
    """Batch elements per grid step.

    N >= 4 (even): two grid steps -> per-step overhead amortized over N/2 and
    both v7x TensorCores get a 'parallel' step.  Small batches: whole batch in
    one step (per-step overhead dominates compute at these sizes).
    """
    if N >= 4 and N % 2 == 0:
        return N // 2
    return N


# --------------------------------------------------------------------------- #
# Kernel
# --------------------------------------------------------------------------- #
def _make_kernel(C, H, W, Nb):
    HW = H * W

    def kernel(x_ref, w_ref, b_ref, m2_ref, m3_ref, m5_ref, m6_ref, o_ref):
        # x_ref : (Nb, C, HW)   VMEM  flattened NCHW slab(s)
        # w_ref : (C,)          SMEM  1x1-conv weights (scalars)
        # b_ref : (1,)          SMEM  1x1-conv bias
        # m*_ref: (HW, HW)      VMEM  fused select+upsample constants
        # o_ref : (Nb, C+4, HW) VMEM  output slab (4 branch maps, then x)
        m_refs = {2: m2_ref, 3: m3_ref, 5: m5_ref, 6: m6_ref}
        wk = [w_ref[ch] for ch in range(C)]          # hoisted scalar reads
        bias = b_ref[0]
        xs = [x_ref[n] for n in range(Nb)]           # (C, HW), loaded once

        # ---- per branch: roll-based separable max pool + 1x1 conv (no bias) ----
        ys = {}
        for k in _KS:
            rows = []
            for n in range(Nb):
                x_n = xs[n]
                # H direction: max over the k image rows of each pool row.
                # roll(x, HW - r*W)[p] == x[p + r*W]  (full-width lane rotate)
                mh = x_n
                for r in range(1, k):
                    mh = jnp.maximum(mh, pltpu.roll(x_n, HW - r * W, 1))
                # W direction: max over each k-wide lane window.
                mw = mh
                for d in range(1, k):
                    mw = jnp.maximum(mw, pltpu.roll(mh, HW - d, 1))
                # 1x1 conv C->1 as C scalar*vector madds (VPU); pooled values
                # stay in vregs — no scratch round trip.
                y = mw[0:1, :] * wk[0]
                for ch in range(1, C):
                    y = y + mw[ch:ch + 1, :] * wk[ch]
                rows.append(y)                        # (1, HW)
            ys[k] = rows[0] if Nb == 1 else jnp.concatenate(rows, axis=0)

        # ---- fused window compaction + bilinear upsample: one MXU matmul per
        #      branch with M = Nb rows; interp weights sum to 1 so + bias works.
        ups = {k: jnp.dot(ys[k], m_refs[k][...],
                          preferred_element_type=jnp.float32) + bias
               for k in _KS}

        # ---- assemble [4 branch maps, x] and store one full, aligned tile
        #      per sample (no 1-sublane masked stores).
        for n in range(Nb):
            o_ref[n] = jnp.concatenate(
                [ups[k][n:n + 1, :] for k in _KS] + [xs[n]], axis=0)

    return kernel


# --------------------------------------------------------------------------- #
# Wrapper
# --------------------------------------------------------------------------- #
def spp_block(x, w, b):
    """x: (N,C,H,W) f32, w: (C,) 1x1-conv weight, b: (1,) bias -> (N, C+4, H, W)."""
    N, C, H, W = x.shape
    HW = H * W
    n_br = len(_KS)
    Nb = _pick_batch_block(N)
    grid_n = N // Nb

    x_flat = x.reshape(N, C, HW)                    # lane-dense flat layout
    w_vec = jnp.asarray(w, jnp.float32).reshape(C)
    b_vec = jnp.asarray(b, jnp.float32).reshape(1)
    mats = [jnp.asarray(_select_upsample_matrix(H, W, k)) for k in _KS]

    kernel = _make_kernel(C, H, W, Nb)

    def _call(single_buffer_consts):
        if single_buffer_consts:
            # Constants: single-buffered (fetched once, index map is constant).
            mk = lambda: pl.BlockSpec((HW, HW), lambda g: (0, 0),
                                      pipeline_mode=pl.Buffered(1))
        else:
            mk = lambda: pl.BlockSpec((HW, HW), lambda g: (0, 0))
        return pl.pallas_call(
            kernel,
            out_shape=jax.ShapeDtypeStruct((N, C + n_br, HW), jnp.float32),
            grid=(grid_n,),
            in_specs=[
                pl.BlockSpec((Nb, C, HW), lambda g: (g, 0, 0)),          # x
                pl.BlockSpec(memory_space=pltpu.MemorySpace.SMEM),       # w
                pl.BlockSpec(memory_space=pltpu.MemorySpace.SMEM),       # b
            ] + [mk() for _ in _KS],
            out_specs=pl.BlockSpec((Nb, C + n_br, HW), lambda g: (g, 0, 0)),
            compiler_params=pltpu.CompilerParams(
                dimension_semantics=("parallel",)),
        )(x_flat, w_vec, b_vec, *mats)

    try:
        out_flat = _call(True)
    except Exception:
        # Fallback if this JAX build rejects Buffered(1) single-buffering.
        out_flat = _call(False)
    return out_flat.reshape(N, C + n_br, H, W)


# --------------------------------------------------------------------------- #
# Independent pure-JAX reference (no shared constants with the kernel):
# lax.reduce_window max pooling + jax.image.resize bilinear
# (half-pixel centers == PyTorch align_corners=False for upsampling).
# --------------------------------------------------------------------------- #
def spp_block_reference(x, w, b):
    N, C, H, W = x.shape
    outs = []
    for k in _KS:
        pooled = jax.lax.reduce_window(
            x, -jnp.inf, jax.lax.max,
            window_dimensions=(1, 1, k, k), window_strides=(1, 1, k, k),
            padding="VALID")
        z = jnp.einsum("nchw,c->nhw", pooled, w) + b[0]
        up = jax.image.resize(z, (N, H, W), method="bilinear")
        outs.append(up[:, None, :, :])
    outs.append(x)
    return jnp.concatenate(outs, axis=1)


if __name__ == "__main__":
    key = jax.random.PRNGKey(0)
    kx, kw = jax.random.split(key)
    N, C, H, W = 2, 4, 16, 16
    x = jax.random.normal(kx, (N, C, H, W), dtype=jnp.float32)
    # Conv2d(C, 1, kernel_size=1): weight (1,C,1,1) -> (C,), bias (1,)
    w = (jax.random.normal(kw, (C,), dtype=jnp.float32) * 0.5).astype(jnp.float32)
    b = jnp.array([0.1], dtype=jnp.float32)

    out = jax.block_until_ready(spp_block(x, w, b))
    assert out.shape == (N, C + 4, H, W), out.shape

    ref = jax.block_until_ready(spp_block_reference(x, w, b))
    np.testing.assert_allclose(np.asarray(out), np.asarray(ref),
                               rtol=1e-4, atol=1e-4)

    print("KERNEL_OK")
</pallas_src>

<mosaic_0001>
module attributes {stable_mosaic.version = 11 : i64} {
  func.func @kernel(%arg0: i32, %arg1: memref<2x4x256xf32, #tpu.memory_space<vmem>>, %arg2: memref<4xf32, #tpu.memory_space<smem>>, %arg3: memref<1xf32, #tpu.memory_space<smem>>, %arg4: memref<256x256xf32, #tpu.memory_space<vmem>>, %arg5: memref<256x256xf32, #tpu.memory_space<vmem>>, %arg6: memref<256x256xf32, #tpu.memory_space<vmem>>, %arg7: memref<256x256xf32, #tpu.memory_space<vmem>>, %arg8: memref<2x8x256xf32, #tpu.memory_space<vmem>>) attributes {dimension_semantics = [#tpu.dimension_semantics<parallel>], iteration_bounds = array<i64: 1>, scalar_prefetch = 0 : i64, scratch_operands = 0 : i64, tpu.core_type = #tpu.core_type<tc>, window_params = [{transform_indices = @transform_0, window_bounds = array<i64: 2, 4, 256>}, {transform_indices = @transform_1, window_bounds = array<i64: 4>}, {transform_indices = @transform_2, window_bounds = array<i64: 1>}, {pipeline_mode = #tpu.pipeline_mode<synchronous>, transform_indices = @transform_3, window_bounds = array<i64: 256, 256>}, {pipeline_mode = #tpu.pipeline_mode<synchronous>, transform_indices = @transform_4, window_bounds = array<i64: 256, 256>}, {pipeline_mode = #tpu.pipeline_mode<synchronous>, transform_indices = @transform_5, window_bounds = array<i64: 256, 256>}, {pipeline_mode = #tpu.pipeline_mode<synchronous>, transform_indices = @transform_6, window_bounds = array<i64: 256, 256>}, {transform_indices = @transform_7, window_bounds = array<i64: 2, 8, 256>}]} {
    %c0 = arith.constant 0 : index
    %0 = memref.load %arg2[%c0] : memref<4xf32, #tpu.memory_space<smem>>
    %c1 = arith.constant 1 : index
    %1 = memref.load %arg2[%c1] : memref<4xf32, #tpu.memory_space<smem>>
    %c2 = arith.constant 2 : index
    %2 = memref.load %arg2[%c2] : memref<4xf32, #tpu.memory_space<smem>>
    %c3 = arith.constant 3 : index
    %3 = memref.load %arg2[%c3] : memref<4xf32, #tpu.memory_space<smem>>
    %c0_0 = arith.constant 0 : index
    %4 = memref.load %arg3[%c0_0] : memref<1xf32, #tpu.memory_space<smem>>
    %c0_1 = arith.constant 0 : index
    %c0_2 = arith.constant 0 : index
    %c0_3 = arith.constant 0 : index
    %5 = vector.load %arg1[%c0_1, %c0_2, %c0_3] : memref<2x4x256xf32, #tpu.memory_space<vmem>>, vector<1x4x256xf32>
    %6 = vector.shape_cast %5 : vector<1x4x256xf32> to vector<4x256xf32>
    %c1_4 = arith.constant 1 : index
    %c0_5 = arith.constant 0 : index
    %c0_6 = arith.constant 0 : index
    %7 = vector.load %arg1[%c1_4, %c0_5, %c0_6] : memref<2x4x256xf32, #tpu.memory_space<vmem>>, vector<1x4x256xf32>
    %8 = vector.shape_cast %7 : vector<1x4x256xf32> to vector<4x256xf32>
    %c240_i32 = arith.constant 240 : i32
    %9 = tpu.dynamic_rotate %6 by %c240_i32 dim 1 : vector<4x256xf32>, i32 -> vector<4x256xf32>
    %10 = arith.maximumf %6, %9 : vector<4x256xf32>
    %c255_i32 = arith.constant 255 : i32
    %11 = tpu.dynamic_rotate %10 by %c255_i32 dim 1 : vector<4x256xf32>, i32 -> vector<4x256xf32>
    %12 = arith.maximumf %10, %11 : vector<4x256xf32>
    %13 = vector.extract_strided_slice %12 {offsets = [0, 0], sizes = [1, 256], strides = [1, 1]} : vector<4x256xf32> to vector<1x256xf32>
    %14 = vector.broadcast %0 : f32 to vector<1x256xf32>
    %15 = arith.mulf %13, %14 : vector<1x256xf32>
    %16 = vector.extract_strided_slice %12 {offsets = [1, 0], sizes = [1, 256], strides = [1, 1]} : vector<4x256xf32> to vector<1x256xf32>
    %17 = vector.broadcast %1 : f32 to vector<1x256xf32>
    %18 = arith.mulf %16, %17 : vector<1x256xf32>
    %19 = arith.addf %15, %18 : vector<1x256xf32>
    %20 = vector.extract_strided_slice %12 {offsets = [2, 0], sizes = [1, 256], strides = [1, 1]} : vector<4x256xf32> to vector<1x256xf32>
    %21 = vector.broadcast %2 : f32 to vector<1x256xf32>
    %22 = arith.mulf %20, %21 : vector<1x256xf32>
    %23 = arith.addf %19, %22 : vector<1x256xf32>
    %24 = vector.extract_strided_slice %12 {offsets = [3, 0], sizes = [1, 256], strides = [1, 1]} : vector<4x256xf32> to vector<1x256xf32>
    %25 = vector.broadcast %3 : f32 to vector<1x256xf32>
    %26 = arith.mulf %24, %25 : vector<1x256xf32>
    %27 = arith.addf %23, %26 : vector<1x256xf32>
    %c240_i32_7 = arith.constant 240 : i32
    %28 = tpu.dynamic_rotate %8 by %c240_i32_7 dim 1 : vector<4x256xf32>, i32 -> vector<4x256xf32>
    %29 = arith.maximumf %8, %28 : vector<4x256xf32>
    %c255_i32_8 = arith.constant 255 : i32
    %30 = tpu.dynamic_rotate %29 by %c255_i32_8 dim 1 : vector<4x256xf32>, i32 -> vector<4x256xf32>
    %31 = arith.maximumf %29, %30 : vector<4x256xf32>
    %32 = vector.extract_strided_slice %31 {offsets = [0, 0], sizes = [1, 256], strides = [1, 1]} : vector<4x256xf32> to vector<1x256xf32>
    %33 = vector.broadcast %0 : f32 to vector<1x256xf32>
    %34 = arith.mulf %32, %33 : vector<1x256xf32>
    %35 = vector.extract_strided_slice %31 {offsets = [1, 0], sizes = [1, 256], strides = [1, 1]} : vector<4x256xf32> to vector<1x256xf32>
    %36 = vector.broadcast %1 : f32 to vector<1x256xf32>
    %37 = arith.mulf %35, %36 : vector<1x256xf32>
    %38 = arith.addf %34, %37 : vector<1x256xf32>
    %39 = vector.extract_strided_slice %31 {offsets = [2, 0], sizes = [1, 256], strides = [1, 1]} : vector<4x256xf32> to vector<1x256xf32>
    %40 = vector.broadcast %2 : f32 to vector<1x256xf32>
    %41 = arith.mulf %39, %40 : vector<1x256xf32>
    %42 = arith.addf %38, %41 : vector<1x256xf32>
    %43 = vector.extract_strided_slice %31 {offsets = [3, 0], sizes = [1, 256], strides = [1, 1]} : vector<4x256xf32> to vector<1x256xf32>
    %44 = vector.broadcast %3 : f32 to vector<1x256xf32>
    %45 = arith.mulf %43, %44 : vector<1x256xf32>
    %46 = arith.addf %42, %45 : vector<1x256xf32>
    %47 = tpu.concatenate %27, %46 in 0 : vector<1x256xf32>, vector<1x256xf32> -> vector<2x256xf32>
    %c240_i32_9 = arith.constant 240 : i32
    %48 = tpu.dynamic_rotate %6 by %c240_i32_9 dim 1 : vector<4x256xf32>, i32 -> vector<4x256xf32>
    %49 = arith.maximumf %6, %48 : vector<4x256xf32>
    %c224_i32 = arith.constant 224 : i32
    %50 = tpu.dynamic_rotate %6 by %c224_i32 dim 1 : vector<4x256xf32>, i32 -> vector<4x256xf32>
    %51 = arith.maximumf %49, %50 : vector<4x256xf32>
    %c255_i32_10 = arith.constant 255 : i32
    %52 = tpu.dynamic_rotate %51 by %c255_i32_10 dim 1 : vector<4x256xf32>, i32 -> vector<4x256xf32>
    %53 = arith.maximumf %51, %52 : vector<4x256xf32>
    %c254_i32 = arith.constant 254 : i32
    %54 = tpu.dynamic_rotate %51 by %c254_i32 dim 1 : vector<4x256xf32>, i32 -> vector<4x256xf32>
    %55 = arith.maximumf %53, %54 : vector<4x256xf32>
    %56 = vector.extract_strided_slice %55 {offsets = [0, 0], sizes = [1, 256], strides = [1, 1]} : vector<4x256xf32> to vector<1x256xf32>
    %57 = vector.broadcast %0 : f32 to vector<1x256xf32>
    %58 = arith.mulf %56, %57 : vector<1x256xf32>
    %59 = vector.extract_strided_slice %55 {offsets = [1, 0], sizes = [1, 256], strides = [1, 1]} : vector<4x256xf32> to vector<1x256xf32>
    %60 = vector.broadcast %1 : f32 to vector<1x256xf32>
    %61 = arith.mulf %59, %60 : vector<1x256xf32>
    %62 = arith.addf %58, %61 : vector<1x256xf32>
    %63 = vector.extract_strided_slice %55 {offsets = [2, 0], sizes = [1, 256], strides = [1, 1]} : vector<4x256xf32> to vector<1x256xf32>
    %64 = vector.broadcast %2 : f32 to vector<1x256xf32>
    %65 = arith.mulf %63, %64 : vector<1x256xf32>
    %66 = arith.addf %62, %65 : vector<1x256xf32>
    %67 = vector.extract_strided_slice %55 {offsets = [3, 0], sizes = [1, 256], strides = [1, 1]} : vector<4x256xf32> to vector<1x256xf32>
    %68 = vector.broadcast %3 : f32 to vector<1x256xf32>
    %69 = arith.mulf %67, %68 : vector<1x256xf32>
    %70 = arith.addf %66, %69 : vector<1x256xf32>
    %c240_i32_11 = arith.constant 240 : i32
    %71 = tpu.dynamic_rotate %8 by %c240_i32_11 dim 1 : vector<4x256xf32>, i32 -> vector<4x256xf32>
    %72 = arith.maximumf %8, %71 : vector<4x256xf32>
    %c224_i32_12 = arith.constant 224 : i32
    %73 = tpu.dynamic_rotate %8 by %c224_i32_12 dim 1 : vector<4x256xf32>, i32 -> vector<4x256xf32>
    %74 = arith.maximumf %72, %73 : vector<4x256xf32>
    %c255_i32_13 = arith.constant 255 : i32
    %75 = tpu.dynamic_rotate %74 by %c255_i32_13 dim 1 : vector<4x256xf32>, i32 -> vector<4x256xf32>
    %76 = arith.maximumf %74, %75 : vector<4x256xf32>
    %c254_i32_14 = arith.constant 254 : i32
    %77 = tpu.dynamic_rotate %74 by %c254_i32_14 dim 1 : vector<4x256xf32>, i32 -> vector<4x256xf32>
    %78 = arith.maximumf %76, %77 : vector<4x256xf32>
    %79 = vector.extract_strided_slice %78 {offsets = [0, 0], sizes = [1, 256], strides = [1, 1]} : vector<4x256xf32> to vector<1x256xf32>
    %80 = vector.broadcast %0 : f32 to vector<1x256xf32>
    %81 = arith.mulf %79, %80 : vector<1x256xf32>
    %82 = vector.extract_strided_slice %78 {offsets = [1, 0], sizes = [1, 256], strides = [1, 1]} : vector<4x256xf32> to vector<1x256xf32>
    %83 = vector.broadcast %1 : f32 to vector<1x256xf32>
    %84 = arith.mulf %82, %83 : vector<1x256xf32>
    %85 = arith.addf %81, %84 : vector<1x256xf32>
    %86 = vector.extract_strided_slice %78 {offsets = [2, 0], sizes = [1, 256], strides = [1, 1]} : vector<4x256xf32> to vector<1x256xf32>
    %87 = vector.broadcast %2 : f32 to vector<1x256xf32>
    %88 = arith.mulf %86, %87 : vector<1x256xf32>
    %89 = arith.addf %85, %88 : vector<1x256xf32>
    %90 = vector.extract_strided_slice %78 {offsets = [3, 0], sizes = [1, 256], strides = [1, 1]} : vector<4x256xf32> to vector<1x256xf32>
    %91 = vector.broadcast %3 : f32 to vector<1x256xf32>
    %92 = arith.mulf %90, %91 : vector<1x256xf32>
    %93 = arith.addf %89, %92 : vector<1x256xf32>
    %94 = tpu.concatenate %70, %93 in 0 : vector<1x256xf32>, vector<1x256xf32> -> vector<2x256xf32>
    %c240_i32_15 = arith.constant 240 : i32
    %95 = tpu.dynamic_rotate %6 by %c240_i32_15 dim 1 : vector<4x256xf32>, i32 -> vector<4x256xf32>
    %96 = arith.maximumf %6, %95 : vector<4x256xf32>
    %c224_i32_16 = arith.constant 224 : i32
    %97 = tpu.dynamic_rotate %6 by %c224_i32_16 dim 1 : vector<4x256xf32>, i32 -> vector<4x256xf32>
    %98 = arith.maximumf %96, %97 : vector<4x256xf32>
    %c208_i32 = arith.constant 208 : i32
    %99 = tpu.dynamic_rotate %6 by %c208_i32 dim 1 : vector<4x256xf32>, i32 -> vector<4x256xf32>
    %100 = arith.maximumf %98, %99 : vector<4x256xf32>
    %c192_i32 = arith.constant 192 : i32
    %101 = tpu.dynamic_rotate %6 by %c192_i32 dim 1 : vector<4x256xf32>, i32 -> vector<4x256xf32>
    %102 = arith.maximumf %100, %101 : vector<4x256xf32>
    %c255_i32_17 = arith.constant 255 : i32
    %103 = tpu.dynamic_rotate %102 by %c255_i32_17 dim 1 : vector<4x256xf32>, i32 -> vector<4x256xf32>
    %104 = arith.maximumf %102, %103 : vector<4x256xf32>
    %c254_i32_18 = arith.constant 254 : i32
    %105 = tpu.dynamic_rotate %102 by %c254_i32_18 dim 1 : vector<4x256xf32>, i32 -> vector<4x256xf32>
    %106 = arith.maximumf %104, %105 : vector<4x256xf32>
    %c253_i32 = arith.constant 253 : i32
    %107 = tpu.dynamic_rotate %102 by %c253_i32 dim 1 : vector<4x256xf32>, i32 -> vector<4x256xf32>
    %108 = arith.maximumf %106, %107 : vector<4x256xf32>
    %c252_i32 = arith.constant 252 : i32
    %109 = tpu.dynamic_rotate %102 by %c252_i32 dim 1 : vector<4x256xf32>, i32 -> vector<4x256xf32>
    %110 = arith.maximumf %108, %109 : vector<4x256xf32>
    %111 = vector.extract_strided_slice %110 {offsets = [0, 0], sizes = [1, 256], strides = [1, 1]} : vector<4x256xf32> to vector<1x256xf32>
    %112 = vector.broadcast %0 : f32 to vector<1x256xf32>
    %113 = arith.mulf %111, %112 : vector<1x256xf32>
    %114 = vector.extract_strided_slice %110 {offsets = [1, 0], sizes = [1, 256], strides = [1, 1]} : vector<4x256xf32> to vector<1x256xf32>
    %115 = vector.broadcast %1 : f32 to vector<1x256xf32>
    %116 = arith.mulf %114, %115 : vector<1x256xf32>
    %117 = arith.addf %113, %116 : vector<1x256xf32>
    %118 = vector.extract_strided_slice %110 {offsets = [2, 0], sizes = [1, 256], strides = [1, 1]} : vector<4x256xf32> to vector<1x256xf32>
    %119 = vector.broadcast %2 : f32 to vector<1x256xf32>
    %120 = arith.mulf %118, %119 : vector<1x256xf32>
    %121 = arith.addf %117, %120 : vector<1x256xf32>
    %122 = vector.extract_strided_slice %110 {offsets = [3, 0], sizes = [1, 256], strides = [1, 1]} : vector<4x256xf32> to vector<1x256xf32>
    %123 = vector.broadcast %3 : f32 to vector<1x256xf32>
    %124 = arith.mulf %122, %123 : vector<1x256xf32>
    %125 = arith.addf %121, %124 : vector<1x256xf32>
    %c240_i32_19 = arith.constant 240 : i32
    %126 = tpu.dynamic_rotate %8 by %c240_i32_19 dim 1 : vector<4x256xf32>, i32 -> vector<4x256xf32>
    %127 = arith.maximumf %8, %126 : vector<4x256xf32>
    %c224_i32_20 = arith.constant 224 : i32
    %128 = tpu.dynamic_rotate %8 by %c224_i32_20 dim 1 : vector<4x256xf32>, i32 -> vector<4x256xf32>
    %129 = arith.maximumf %127, %128 : vector<4x256xf32>
    %c208_i32_21 = arith.constant 208 : i32
    %130 = tpu.dynamic_rotate %8 by %c208_i32_21 dim 1 : vector<4x256xf32>, i32 -> vector<4x256xf32>
    %131 = arith.maximumf %129, %130 : vector<4x256xf32>
    %c192_i32_22 = arith.constant 192 : i32
    %132 = tpu.dynamic_rotate %8 by %c192_i32_22 dim 1 : vector<4x256xf32>, i32 -> vector<4x256xf32>
    %133 = arith.maximumf %131, %132 : vector<4x256xf32>
    %c255_i32_23 = arith.constant 255 : i32
    %134 = tpu.dynamic_rotate %133 by %c255_i32_23 dim 1 : vector<4x256xf32>, i32 -> vector<4x256xf32>
    %135 = arith.maximumf %133, %134 : vector<4x256xf32>
    %c254_i32_24 = arith.constant 254 : i32
    %136 = tpu.dynamic_rotate %133 by %c254_i32_24 dim 1 : vector<4x256xf32>, i32 -> vector<4x256xf32>
    %137 = arith.maximumf %135, %136 : vector<4x256xf32>
    %c253_i32_25 = arith.constant 253 : i32
    %138 = tpu.dynamic_rotate %133 by %c253_i32_25 dim 1 : vector<4x256xf32>, i32 -> vector<4x256xf32>
    %139 = arith.maximumf %137, %138 : vector<4x256xf32>
    %c252_i32_26 = arith.constant 252 : i32
    %140 = tpu.dynamic_rotate %133 by %c252_i32_26 dim 1 : vector<4x256xf32>, i32 -> vector<4x256xf32>
    %141 = arith.maximumf %139, %140 : vector<4x256xf32>
    %142 = vector.extract_strided_slice %141 {offsets = [0, 0], sizes = [1, 256], strides = [1, 1]} : vector<4x256xf32> to vector<1x256xf32>
    %143 = vector.broadcast %0 : f32 to vector<1x256xf32>
    %144 = arith.mulf %142, %143 : vector<1x256xf32>
    %145 = vector.extract_strided_slice %141 {offsets = [1, 0], sizes = [1, 256], strides = [1, 1]} : vector<4x256xf32> to vector<1x256xf32>
    %146 = vector.broadcast %1 : f32 to vector<1x256xf32>
    %147 = arith.mulf %145, %146 : vector<1x256xf32>
    %148 = arith.addf %144, %147 : vector<1x256xf32>
    %149 = vector.extract_strided_slice %141 {offsets = [2, 0], sizes = [1, 256], strides = [1, 1]} : vector<4x256xf32> to vector<1x256xf32>
    %150 = vector.broadcast %2 : f32 to vector<1x256xf32>
    %151 = arith.mulf %149, %150 : vector<1x256xf32>
    %152 = arith.addf %148, %151 : vector<1x256xf32>
    %153 = vector.extract_strided_slice %141 {offsets = [3, 0], sizes = [1, 256], strides = [1, 1]} : vector<4x256xf32> to vector<1x256xf32>
    %154 = vector.broadcast %3 : f32 to vector<1x256xf32>
    %155 = arith.mulf %153, %154 : vector<1x256xf32>
    %156 = arith.addf %152, %155 : vector<1x256xf32>
    %157 = tpu.concatenate %125, %156 in 0 : vector<1x256xf32>, vector<1x256xf32> -> vector<2x256xf32>
    %c240_i32_27 = arith.constant 240 : i32
    %158 = tpu.dynamic_rotate %6 by %c240_i32_27 dim 1 : vector<4x256xf32>, i32 -> vector<4x256xf32>
    %159 = arith.maximumf %6, %158 : vector<4x256xf32>
    %c224_i32_28 = arith.constant 224 : i32
    %160 = tpu.dynamic_rotate %6 by %c224_i32_28 dim 1 : vector<4x256xf32>, i32 -> vector<4x256xf32>
    %161 = arith.maximumf %159, %160 : vector<4x256xf32>
    %c208_i32_29 = arith.constant 208 : i32
    %162 = tpu.dynamic_rotate %6 by %c208_i32_29 dim 1 : vector<4x256xf32>, i32 -> vector<4x256xf32>
    %163 = arith.maximumf %161, %162 : vector<4x256xf32>
    %c192_i32_30 = arith.constant 192 : i32
    %164 = tpu.dynamic_rotate %6 by %c192_i32_30 dim 1 : vector<4x256xf32>, i32 -> vector<4x256xf32>
    %165 = arith.maximumf %163, %164 : vector<4x256xf32>
    %c176_i32 = arith.constant 176 : i32
    %166 = tpu.dynamic_rotate %6 by %c176_i32 dim 1 : vector<4x256xf32>, i32 -> vector<4x256xf32>
    %167 = arith.maximumf %165, %166 : vector<4x256xf32>
    %c255_i32_31 = arith.constant 255 : i32
    %168 = tpu.dynamic_rotate %167 by %c255_i32_31 dim 1 : vector<4x256xf32>, i32 -> vector<4x256xf32>
    %169 = arith.maximumf %167, %168 : vector<4x256xf32>
    %c254_i32_32 = arith.constant 254 : i32
    %170 = tpu.dynamic_rotate %167 by %c254_i32_32 dim 1 : vector<4x256xf32>, i32 -> vector<4x256xf32>
    %171 = arith.maximumf %169, %170 : vector<4x256xf32>
    %c253_i32_33 = arith.constant 253 : i32
    %172 = tpu.dynamic_rotate %167 by %c253_i32_33 dim 1 : vector<4x256xf32>, i32 -> vector<4x256xf32>
    %173 = arith.maximumf %171, %172 : vector<4x256xf32>
    %c252_i32_34 = arith.constant 252 : i32
    %174 = tpu.dynamic_rotate %167 by %c252_i32_34 dim 1 : vector<4x256xf32>, i32 -> vector<4x256xf32>
    %175 = arith.maximumf %173, %174 : vector<4x256xf32>
    %c251_i32 = arith.constant 251 : i32
    %176 = tpu.dynamic_rotate %167 by %c251_i32 dim 1 : vector<4x256xf32>, i32 -> vector<4x256xf32>
    %177 = arith.maximumf %175, %176 : vector<4x256xf32>
    %178 = vector.extract_strided_slice %177 {offsets = [0, 0], sizes = [1, 256], strides = [1, 1]} : vector<4x256xf32> to vector<1x256xf32>
    %179 = vector.broadcast %0 : f32 to vector<1x256xf32>
    %180 = arith.mulf %178, %179 : vector<1x256xf32>
    %181 = vector.extract_strided_slice %177 {offsets = [1, 0], sizes = [1, 256], strides = [1, 1]} : vector<4x256xf32> to vector<1x256xf32>
    %182 = vector.broadcast %1 : f32 to vector<1x256xf32>
    %183 = arith.mulf %181, %182 : vector<1x256xf32>
    %184 = arith.addf %180, %183 : vector<1x256xf32>
    %185 = vector.extract_strided_slice %177 {offsets = [2, 0], sizes = [1, 256], strides = [1, 1]} : vector<4x256xf32> to vector<1x256xf32>
    %186 = vector.broadcast %2 : f32 to vector<1x256xf32>
    %187 = arith.mulf %185, %186 : vector<1x256xf32>
    %188 = arith.addf %184, %187 : vector<1x256xf32>
    %189 = vector.extract_strided_slice %177 {offsets = [3, 0], sizes = [1, 256], strides = [1, 1]} : vector<4x256xf32> to vector<1x256xf32>
    %190 = vector.broadcast %3 : f32 to vector<1x256xf32>
    %191 = arith.mulf %189, %190 : vector<1x256xf32>
    %192 = arith.addf %188, %191 : vector<1x256xf32>
    %c240_i32_35 = arith.constant 240 : i32
    %193 = tpu.dynamic_rotate %8 by %c240_i32_35 dim 1 : vector<4x256xf32>, i32 -> vector<4x256xf32>
    %194 = arith.maximumf %8, %193 : vector<4x256xf32>
    %c224_i32_36 = arith.constant 224 : i32
    %195 = tpu.dynamic_rotate %8 by %c224_i32_36 dim 1 : vector<4x256xf32>, i32 -> vector<4x256xf32>
    %196 = arith.maximumf %194, %195 : vector<4x256xf32>
    %c208_i32_37 = arith.constant 208 : i32
    %197 = tpu.dynamic_rotate %8 by %c208_i32_37 dim 1 : vector<4x256xf32>, i32 -> vector<4x256xf32>
    %198 = arith.maximumf %196, %197 : vector<4x256xf32>
    %c192_i32_38 = arith.constant 192 : i32
    %199 = tpu.dynamic_rotate %8 by %c192_i32_38 dim 1 : vector<4x256xf32>, i32 -> vector<4x256xf32>
    %200 = arith.maximumf %198, %199 : vector<4x256xf32>
    %c176_i32_39 = arith.constant 176 : i32
    %201 = tpu.dynamic_rotate %8 by %c176_i32_39 dim 1 : vector<4x256xf32>, i32 -> vector<4x256xf32>
    %202 = arith.maximumf %200, %201 : vector<4x256xf32>
    %c255_i32_40 = arith.constant 255 : i32
    %203 = tpu.dynamic_rotate %202 by %c255_i32_40 dim 1 : vector<4x256xf32>, i32 -> vector<4x256xf32>
    %204 = arith.maximumf %202, %203 : vector<4x256xf32>
    %c254_i32_41 = arith.constant 254 : i32
    %205 = tpu.dynamic_rotate %202 by %c254_i32_41 dim 1 : vector<4x256xf32>, i32 -> vector<4x256xf32>
    %206 = arith.maximumf %204, %205 : vector<4x256xf32>
    %c253_i32_42 = arith.constant 253 : i32
    %207 = tpu.dynamic_rotate %202 by %c253_i32_42 dim 1 : vector<4x256xf32>, i32 -> vector<4x256xf32>
    %208 = arith.maximumf %206, %207 : vector<4x256xf32>
    %c252_i32_43 = arith.constant 252 : i32
    %209 = tpu.dynamic_rotate %202 by %c252_i32_43 dim 1 : vector<4x256xf32>, i32 -> vector<4x256xf32>
    %210 = arith.maximumf %208, %209 : vector<4x256xf32>
    %c251_i32_44 = arith.constant 251 : i32
    %211 = tpu.dynamic_rotate %202 by %c251_i32_44 dim 1 : vector<4x256xf32>, i32 -> vector<4x256xf32>
    %212 = arith.maximumf %210, %211 : vector<4x256xf32>
    %213 = vector.extract_strided_slice %212 {offsets = [0, 0], sizes = [1, 256], strides = [1, 1]} : vector<4x256xf32> to vector<1x256xf32>
    %214 = vector.broadcast %0 : f32 to vector<1x256xf32>
    %215 = arith.mulf %213, %214 : vector<1x256xf32>
    %216 = vector.extract_strided_slice %212 {offsets = [1, 0], sizes = [1, 256], strides = [1, 1]} : vector<4x256xf32> to vector<1x256xf32>
    %217 = vector.broadcast %1 : f32 to vector<1x256xf32>
    %218 = arith.mulf %216, %217 : vector<1x256xf32>
    %219 = arith.addf %215, %218 : vector<1x256xf32>
    %220 = vector.extract_strided_slice %212 {offsets = [2, 0], sizes = [1, 256], strides = [1, 1]} : vector<4x256xf32> to vector<1x256xf32>
    %221 = vector.broadcast %2 : f32 to vector<1x256xf32>
    %222 = arith.mulf %220, %221 : vector<1x256xf32>
    %223 = arith.addf %219, %222 : vector<1x256xf32>
    %224 = vector.extract_strided_slice %212 {offsets = [3, 0], sizes = [1, 256], strides = [1, 1]} : vector<4x256xf32> to vector<1x256xf32>
    %225 = vector.broadcast %3 : f32 to vector<1x256xf32>
    %226 = arith.mulf %224, %225 : vector<1x256xf32>
    %227 = arith.addf %223, %226 : vector<1x256xf32>
    %228 = tpu.concatenate %192, %227 in 0 : vector<1x256xf32>, vector<1x256xf32> -> vector<2x256xf32>
    %c0_45 = arith.constant 0 : index
    %c0_46 = arith.constant 0 : index
    %229 = vector.load %arg4[%c0_45, %c0_46] : memref<256x256xf32, #tpu.memory_space<vmem>>, vector<256x256xf32>
    %cst = arith.constant dense<0.000000e+00> : vector<2x256xf32>
    %230 = tpu.matmul %47, %229, %cst {dimension_numbers = #tpu.dot_dimension_numbers<[1], [0], [0], [1], [0, 0, 1, 1], [], []>} : vector<2x256xf32>, vector<256x256xf32>, vector<2x256xf32> -> vector<2x256xf32>
    %231 = vector.broadcast %4 : f32 to vector<2x256xf32>
    %232 = arith.addf %230, %231 : vector<2x256xf32>
    %c0_47 = arith.constant 0 : index
    %c0_48 = arith.constant 0 : index
    %233 = vector.load %arg5[%c0_47, %c0_48] : memref<256x256xf32, #tpu.memory_space<vmem>>, vector<256x256xf32>
    %cst_49 = arith.constant dense<0.000000e+00> : vector<2x256xf32>
    %234 = tpu.matmul %94, %233, %cst_49 {dimension_numbers = #tpu.dot_dimension_numbers<[1], [0], [0], [1], [0, 0, 1, 1], [], []>} : vector<2x256xf32>, vector<256x256xf32>, vector<2x256xf32> -> vector<2x256xf32>
    %235 = vector.broadcast %4 : f32 to vector<2x256xf32>
    %236 = arith.addf %234, %235 : vector<2x256xf32>
    %c0_50 = arith.constant 0 : index
    %c0_51 = arith.constant 0 : index
    %237 = vector.load %arg6[%c0_50, %c0_51] : memref<256x256xf32, #tpu.memory_space<vmem>>, vector<256x256xf32>
    %cst_52 = arith.constant dense<0.000000e+00> : vector<2x256xf32>
    %238 = tpu.matmul %157, %237, %cst_52 {dimension_numbers = #tpu.dot_dimension_numbers<[1], [0], [0], [1], [0, 0, 1, 1], [], []>} : vector<2x256xf32>, vector<256x256xf32>, vector<2x256xf32> -> vector<2x256xf32>
    %239 = vector.broadcast %4 : f32 to vector<2x256xf32>
    %240 = arith.addf %238, %239 : vector<2x256xf32>
    %c0_53 = arith.constant 0 : index
    %c0_54 = arith.constant 0 : index
    %241 = vector.load %arg7[%c0_53, %c0_54] : memref<256x256xf32, #tpu.memory_space<vmem>>, vector<256x256xf32>
    %cst_55 = arith.constant dense<0.000000e+00> : vector<2x256xf32>
    %242 = tpu.matmul %228, %241, %cst_55 {dimension_numbers = #tpu.dot_dimension_numbers<[1], [0], [0], [1], [0, 0, 1, 1], [], []>} : vector<2x256xf32>, vector<256x256xf32>, vector<2x256xf32> -> vector<2x256xf32>
    %243 = vector.broadcast %4 : f32 to vector<2x256xf32>
    %244 = arith.addf %242, %243 : vector<2x256xf32>
    %245 = vector.extract_strided_slice %232 {offsets = [0, 0], sizes = [1, 256], strides = [1, 1]} : vector<2x256xf32> to vector<1x256xf32>
    %246 = vector.extract_strided_slice %236 {offsets = [0, 0], sizes = [1, 256], strides = [1, 1]} : vector<2x256xf32> to vector<1x256xf32>
    %247 = vector.extract_strided_slice %240 {offsets = [0, 0], sizes = [1, 256], strides = [1, 1]} : vector<2x256xf32> to vector<1x256xf32>
    %248 = vector.extract_strided_slice %244 {offsets = [0, 0], sizes = [1, 256], strides = [1, 1]} : vector<2x256xf32> to vector<1x256xf32>
    %249 = tpu.concatenate %245, %246, %247, %248, %6 in 0 : vector<1x256xf32>, vector<1x256xf32>, vector<1x256xf32>, vector<1x256xf32>, vector<4x256xf32> -> vector<8x256xf32>
    %c0_56 = arith.constant 0 : index
    %c0_57 = arith.constant 0 : index
    %c0_58 = arith.constant 0 : index
    %250 = vector.load %arg8[%c0_56, %c0_57, %c0_58] : memref<2x8x256xf32, #tpu.memory_space<vmem>>, vector<1x8x256xf32>
    %251 = vector.shape_cast %250 : vector<1x8x256xf32> to vector<8x256xf32>
    %252 = vector.shape_cast %249 : vector<8x256xf32> to vector<1x8x256xf32>
    tpu.vector_store %arg8[%c0_56, %c0_57, %c0_58], %252 {strides = array<i32>} : memref<2x8x256xf32, #tpu.memory_space<vmem>>, vector<1x8x256xf32>,
    %253 = vector.extract_strided_slice %232 {offsets = [1, 0], sizes = [1, 256], strides = [1, 1]} : vector<2x256xf32> to vector<1x256xf32>
    %254 = vector.extract_strided_slice %236 {offsets = [1, 0], sizes = [1, 256], strides = [1, 1]} : vector<2x256xf32> to vector<1x256xf32>
    %255 = vector.extract_strided_slice %240 {offsets = [1, 0], sizes = [1, 256], strides = [1, 1]} : vector<2x256xf32> to vector<1x256xf32>
    %256 = vector.extract_strided_slice %244 {offsets = [1, 0], sizes = [1, 256], strides = [1, 1]} : vector<2x256xf32> to vector<1x256xf32>
    %257 = tpu.concatenate %253, %254, %255, %256, %8 in 0 : vector<1x256xf32>, vector<1x256xf32>, vector<1x256xf32>, vector<1x256xf32>, vector<4x256xf32> -> vector<8x256xf32>
    %c1_59 = arith.constant 1 : index
    %c0_60 = arith.constant 0 : index
    %c0_61 = arith.constant 0 : index
    %258 = vector.load %arg8[%c1_59, %c0_60, %c0_61] : memref<2x8x256xf32, #tpu.memory_space<vmem>>, vector<1x8x256xf32>
    %259 = vector.shape_cast %258 : vector<1x8x256xf32> to vector<8x256xf32>
    %260 = vector.shape_cast %257 : vector<8x256xf32> to vector<1x8x256xf32>
    tpu.vector_store %arg8[%c1_59, %c0_60, %c0_61], %260 {strides = array<i32>} : memref<2x8x256xf32, #tpu.memory_space<vmem>>, vector<1x8x256xf32>,
    return
  }
  func.func @transform_0(%arg0: i32) -> (i32, i32, i32) {
    %c0_i32 = arith.constant 0 : i32
    %c0_i32_0 = arith.constant 0 : i32
    %c0_i32_1 = arith.constant 0 : i32
    return %arg0, %c0_i32, %c0_i32_0 : i32, i32, i32
  }
  func.func @transform_1(%arg0: i32) -> i32 {
    %c0_i32 = arith.constant 0 : i32
    %c0_i32_0 = arith.constant 0 : i32
    return %c0_i32 : i32
  }
  func.func @transform_2(%arg0: i32) -> i32 {
    %c0_i32 = arith.constant 0 : i32
    %c0_i32_0 = arith.constant 0 : i32
    return %c0_i32 : i32
  }
  func.func @transform_3(%arg0: i32) -> (i32, i32) {
    %c0_i32 = arith.constant 0 : i32
    %c0_i32_0 = arith.constant 0 : i32
    %c0_i32_1 = arith.constant 0 : i32
    return %c0_i32, %c0_i32_0 : i32, i32
  }
  func.func @transform_4(%arg0: i32) -> (i32, i32) {
    %c0_i32 = arith.constant 0 : i32
    %c0_i32_0 = arith.constant 0 : i32
    %c0_i32_1 = arith.constant 0 : i32
    return %c0_i32, %c0_i32_0 : i32, i32
  }
  func.func @transform_5(%arg0: i32) -> (i32, i32) {
    %c0_i32 = arith.constant 0 : i32
    %c0_i32_0 = arith.constant 0 : i32
    %c0_i32_1 = arith.constant 0 : i32
    return %c0_i32, %c0_i32_0 : i32, i32
  }
  func.func @transform_6(%arg0: i32) -> (i32, i32) {
    %c0_i32 = arith.constant 0 : i32
    %c0_i32_0 = arith.constant 0 : i32
    %c0_i32_1 = arith.constant 0 : i32
    return %c0_i32, %c0_i32_0 : i32, i32
  }
  func.func @transform_7(%arg0: i32) -> (i32, i32, i32) {
    %c0_i32 = arith.constant 0 : i32
    %c0_i32_0 = arith.constant 0 : i32
    %c0_i32_1 = arith.constant 0 : i32
    return %arg0, %c0_i32, %c0_i32_0 : i32, i32, i32
  }
}

module attributes {stable_mosaic.version = 11 : i64} {
  func.func @kernel(%arg0: i32, %arg1: memref<2x4x256xf32, #tpu.memory_space<vmem>>, %arg2: memref<4xf32, #tpu.memory_space<smem>>, %arg3: memref<1xf32, #tpu.memory_space<smem>>, %arg4: memref<256x256xf32, #tpu.memory_space<vmem>>, %arg5: memref<256x256xf32, #tpu.memory_space<vmem>>, %arg6: memref<256x256xf32, #tpu.memory_space<vmem>>, %arg7: memref<256x256xf32, #tpu.memory_space<vmem>>, %arg8: memref<2x8x256xf32, #tpu.memory_space<vmem>>) attributes {dimension_semantics = [#tpu.dimension_semantics<parallel>], iteration_bounds = array<i64: 1>, scalar_prefetch = 0 : i64, scratch_operands = 0 : i64, tpu.core_type = #tpu.core_type<tc>, window_params = [{transform_indices = @transform_0, window_bounds = array<i64: 2, 4, 256>}, {transform_indices = @transform_1, window_bounds = array<i64: 4>}, {transform_indices = @transform_2, window_bounds = array<i64: 1>}, {pipeline_mode = #tpu.pipeline_mode<synchronous>, transform_indices = @transform_3, window_bounds = array<i64: 256, 256>}, {pipeline_mode = #tpu.pipeline_mode<synchronous>, transform_indices = @transform_4, window_bounds = array<i64: 256, 256>}, {pipeline_mode = #tpu.pipeline_mode<synchronous>, transform_indices = @transform_5, window_bounds = array<i64: 256, 256>}, {pipeline_mode = #tpu.pipeline_mode<synchronous>, transform_indices = @transform_6, window_bounds = array<i64: 256, 256>}, {transform_indices = @transform_7, window_bounds = array<i64: 2, 8, 256>}]} {
    %c0 = arith.constant 0 : index
    %0 = memref.load %arg2[%c0] : memref<4xf32, #tpu.memory_space<smem>>
    %c1 = arith.constant 1 : index
    %1 = memref.load %arg2[%c1] : memref<4xf32, #tpu.memory_space<smem>>
    %c2 = arith.constant 2 : index
    %2 = memref.load %arg2[%c2] : memref<4xf32, #tpu.memory_space<smem>>
    %c3 = arith.constant 3 : index
    %3 = memref.load %arg2[%c3] : memref<4xf32, #tpu.memory_space<smem>>
    %c0_0 = arith.constant 0 : index
    %4 = memref.load %arg3[%c0_0] : memref<1xf32, #tpu.memory_space<smem>>
    %c0_1 = arith.constant 0 : index
    %c0_2 = arith.constant 0 : index
    %c0_3 = arith.constant 0 : index
    %5 = vector.load %arg1[%c0_1, %c0_2, %c0_3] : memref<2x4x256xf32, #tpu.memory_space<vmem>>, vector<1x4x256xf32>
    %6 = vector.shape_cast %5 : vector<1x4x256xf32> to vector<4x256xf32>
    %c1_4 = arith.constant 1 : index
    %c0_5 = arith.constant 0 : index
    %c0_6 = arith.constant 0 : index
    %7 = vector.load %arg1[%c1_4, %c0_5, %c0_6] : memref<2x4x256xf32, #tpu.memory_space<vmem>>, vector<1x4x256xf32>
    %8 = vector.shape_cast %7 : vector<1x4x256xf32> to vector<4x256xf32>
    %c240_i32 = arith.constant 240 : i32
    %9 = tpu.dynamic_rotate %6 by %c240_i32 dim 1 : vector<4x256xf32>, i32 -> vector<4x256xf32>
    %10 = arith.maximumf %6, %9 : vector<4x256xf32>
    %c255_i32 = arith.constant 255 : i32
    %11 = tpu.dynamic_rotate %10 by %c255_i32 dim 1 : vector<4x256xf32>, i32 -> vector<4x256xf32>
    %12 = arith.maximumf %10, %11 : vector<4x256xf32>
    %13 = vector.extract_strided_slice %12 {offsets = [0, 0], sizes = [1, 256], strides = [1, 1]} : vector<4x256xf32> to vector<1x256xf32>
    %14 = vector.broadcast %0 : f32 to vector<1x256xf32>
    %15 = arith.mulf %13, %14 : vector<1x256xf32>
    %16 = vector.extract_strided_slice %12 {offsets = [1, 0], sizes = [1, 256], strides = [1, 1]} : vector<4x256xf32> to vector<1x256xf32>
    %17 = vector.broadcast %1 : f32 to vector<1x256xf32>
    %18 = arith.mulf %16, %17 : vector<1x256xf32>
    %19 = arith.addf %15, %18 : vector<1x256xf32>
    %20 = vector.extract_strided_slice %12 {offsets = [2, 0], sizes = [1, 256], strides = [1, 1]} : vector<4x256xf32> to vector<1x256xf32>
    %21 = vector.broadcast %2 : f32 to vector<1x256xf32>
    %22 = arith.mulf %20, %21 : vector<1x256xf32>
    %23 = arith.addf %19, %22 : vector<1x256xf32>
    %24 = vector.extract_strided_slice %12 {offsets = [3, 0], sizes = [1, 256], strides = [1, 1]} : vector<4x256xf32> to vector<1x256xf32>
    %25 = vector.broadcast %3 : f32 to vector<1x256xf32>
    %26 = arith.mulf %24, %25 : vector<1x256xf32>
    %27 = arith.addf %23, %26 : vector<1x256xf32>
    %c240_i32_7 = arith.constant 240 : i32
    %28 = tpu.dynamic_rotate %8 by %c240_i32_7 dim 1 : vector<4x256xf32>, i32 -> vector<4x256xf32>
    %29 = arith.maximumf %8, %28 : vector<4x256xf32>
    %c255_i32_8 = arith.constant 255 : i32
    %30 = tpu.dynamic_rotate %29 by %c255_i32_8 dim 1 : vector<4x256xf32>, i32 -> vector<4x256xf32>
    %31 = arith.maximumf %29, %30 : vector<4x256xf32>
    %32 = vector.extract_strided_slice %31 {offsets = [0, 0], sizes = [1, 256], strides = [1, 1]} : vector<4x256xf32> to vector<1x256xf32>
    %33 = vector.broadcast %0 : f32 to vector<1x256xf32>
    %34 = arith.mulf %32, %33 : vector<1x256xf32>
    %35 = vector.extract_strided_slice %31 {offsets = [1, 0], sizes = [1, 256], strides = [1, 1]} : vector<4x256xf32> to vector<1x256xf32>
    %36 = vector.broadcast %1 : f32 to vector<1x256xf32>
    %37 = arith.mulf %35, %36 : vector<1x256xf32>
    %38 = arith.addf %34, %37 : vector<1x256xf32>
    %39 = vector.extract_strided_slice %31 {offsets = [2, 0], sizes = [1, 256], strides = [1, 1]} : vector<4x256xf32> to vector<1x256xf32>
    %40 = vector.broadcast %2 : f32 to vector<1x256xf32>
    %41 = arith.mulf %39, %40 : vector<1x256xf32>
    %42 = arith.addf %38, %41 : vector<1x256xf32>
    %43 = vector.extract_strided_slice %31 {offsets = [3, 0], sizes = [1, 256], strides = [1, 1]} : vector<4x256xf32> to vector<1x256xf32>
    %44 = vector.broadcast %3 : f32 to vector<1x256xf32>
    %45 = arith.mulf %43, %44 : vector<1x256xf32>
    %46 = arith.addf %42, %45 : vector<1x256xf32>
    %47 = tpu.concatenate %27, %46 in 0 : vector<1x256xf32>, vector<1x256xf32> -> vector<2x256xf32>
    %c240_i32_9 = arith.constant 240 : i32
    %48 = tpu.dynamic_rotate %6 by %c240_i32_9 dim 1 : vector<4x256xf32>, i32 -> vector<4x256xf32>
    %49 = arith.maximumf %6, %48 : vector<4x256xf32>
    %c224_i32 = arith.constant 224 : i32
    %50 = tpu.dynamic_rotate %6 by %c224_i32 dim 1 : vector<4x256xf32>, i32 -> vector<4x256xf32>
    %51 = arith.maximumf %49, %50 : vector<4x256xf32>
    %c255_i32_10 = arith.constant 255 : i32
    %52 = tpu.dynamic_rotate %51 by %c255_i32_10 dim 1 : vector<4x256xf32>, i32 -> vector<4x256xf32>
    %53 = arith.maximumf %51, %52 : vector<4x256xf32>
    %c254_i32 = arith.constant 254 : i32
    %54 = tpu.dynamic_rotate %51 by %c254_i32 dim 1 : vector<4x256xf32>, i32 -> vector<4x256xf32>
    %55 = arith.maximumf %53, %54 : vector<4x256xf32>
    %56 = vector.extract_strided_slice %55 {offsets = [0, 0], sizes = [1, 256], strides = [1, 1]} : vector<4x256xf32> to vector<1x256xf32>
    %57 = vector.broadcast %0 : f32 to vector<1x256xf32>
    %58 = arith.mulf %56, %57 : vector<1x256xf32>
    %59 = vector.extract_strided_slice %55 {offsets = [1, 0], sizes = [1, 256], strides = [1, 1]} : vector<4x256xf32> to vector<1x256xf32>
    %60 = vector.broadcast %1 : f32 to vector<1x256xf32>
    %61 = arith.mulf %59, %60 : vector<1x256xf32>
    %62 = arith.addf %58, %61 : vector<1x256xf32>
    %63 = vector.extract_strided_slice %55 {offsets = [2, 0], sizes = [1, 256], strides = [1, 1]} : vector<4x256xf32> to vector<1x256xf32>
    %64 = vector.broadcast %2 : f32 to vector<1x256xf32>
    %65 = arith.mulf %63, %64 : vector<1x256xf32>
    %66 = arith.addf %62, %65 : vector<1x256xf32>
    %67 = vector.extract_strided_slice %55 {offsets = [3, 0], sizes = [1, 256], strides = [1, 1]} : vector<4x256xf32> to vector<1x256xf32>
    %68 = vector.broadcast %3 : f32 to vector<1x256xf32>
    %69 = arith.mulf %67, %68 : vector<1x256xf32>
    %70 = arith.addf %66, %69 : vector<1x256xf32>
    %c240_i32_11 = arith.constant 240 : i32
    %71 = tpu.dynamic_rotate %8 by %c240_i32_11 dim 1 : vector<4x256xf32>, i32 -> vector<4x256xf32>
    %72 = arith.maximumf %8, %71 : vector<4x256xf32>
    %c224_i32_12 = arith.constant 224 : i32
    %73 = tpu.dynamic_rotate %8 by %c224_i32_12 dim 1 : vector<4x256xf32>, i32 -> vector<4x256xf32>
    %74 = arith.maximumf %72, %73 : vector<4x256xf32>
    %c255_i32_13 = arith.constant 255 : i32
    %75 = tpu.dynamic_rotate %74 by %c255_i32_13 dim 1 : vector<4x256xf32>, i32 -> vector<4x256xf32>
    %76 = arith.maximumf %74, %75 : vector<4x256xf32>
    %c254_i32_14 = arith.constant 254 : i32
    %77 = tpu.dynamic_rotate %74 by %c254_i32_14 dim 1 : vector<4x256xf32>, i32 -> vector<4x256xf32>
    %78 = arith.maximumf %76, %77 : vector<4x256xf32>
    %79 = vector.extract_strided_slice %78 {offsets = [0, 0], sizes = [1, 256], strides = [1, 1]} : vector<4x256xf32> to vector<1x256xf32>
    %80 = vector.broadcast %0 : f32 to vector<1x256xf32>
    %81 = arith.mulf %79, %80 : vector<1x256xf32>
    %82 = vector.extract_strided_slice %78 {offsets = [1, 0], sizes = [1, 256], strides = [1, 1]} : vector<4x256xf32> to vector<1x256xf32>
    %83 = vector.broadcast %1 : f32 to vector<1x256xf32>
    %84 = arith.mulf %82, %83 : vector<1x256xf32>
    %85 = arith.addf %81, %84 : vector<1x256xf32>
    %86 = vector.extract_strided_slice %78 {offsets = [2, 0], sizes = [1, 256], strides = [1, 1]} : vector<4x256xf32> to vector<1x256xf32>
    %87 = vector.broadcast %2 : f32 to vector<1x256xf32>
    %88 = arith.mulf %86, %87 : vector<1x256xf32>
    %89 = arith.addf %85, %88 : vector<1x256xf32>
    %90 = vector.extract_strided_slice %78 {offsets = [3, 0], sizes = [1, 256], strides = [1, 1]} : vector<4x256xf32> to vector<1x256xf32>
    %91 = vector.broadcast %3 : f32 to vector<1x256xf32>
    %92 = arith.mulf %90, %91 : vector<1x256xf32>
    %93 = arith.addf %89, %92 : vector<1x256xf32>
    %94 = tpu.concatenate %70, %93 in 0 : vector<1x256xf32>, vector<1x256xf32> -> vector<2x256xf32>
    %c240_i32_15 = arith.constant 240 : i32
    %95 = tpu.dynamic_rotate %6 by %c240_i32_15 dim 1 : vector<4x256xf32>, i32 -> vector<4x256xf32>
    %96 = arith.maximumf %6, %95 : vector<4x256xf32>
    %c224_i32_16 = arith.constant 224 : i32
    %97 = tpu.dynamic_rotate %6 by %c224_i32_16 dim 1 : vector<4x256xf32>, i32 -> vector<4x256xf32>
    %98 = arith.maximumf %96, %97 : vector<4x256xf32>
    %c208_i32 = arith.constant 208 : i32
    %99 = tpu.dynamic_rotate %6 by %c208_i32 dim 1 : vector<4x256xf32>, i32 -> vector<4x256xf32>
    %100 = arith.maximumf %98, %99 : vector<4x256xf32>
    %c192_i32 = arith.constant 192 : i32
    %101 = tpu.dynamic_rotate %6 by %c192_i32 dim 1 : vector<4x256xf32>, i32 -> vector<4x256xf32>
    %102 = arith.maximumf %100, %101 : vector<4x256xf32>
    %c255_i32_17 = arith.constant 255 : i32
    %103 = tpu.dynamic_rotate %102 by %c255_i32_17 dim 1 : vector<4x256xf32>, i32 -> vector<4x256xf32>
    %104 = arith.maximumf %102, %103 : vector<4x256xf32>
    %c254_i32_18 = arith.constant 254 : i32
    %105 = tpu.dynamic_rotate %102 by %c254_i32_18 dim 1 : vector<4x256xf32>, i32 -> vector<4x256xf32>
    %106 = arith.maximumf %104, %105 : vector<4x256xf32>
    %c253_i32 = arith.constant 253 : i32
    %107 = tpu.dynamic_rotate %102 by %c253_i32 dim 1 : vector<4x256xf32>, i32 -> vector<4x256xf32>
    %108 = arith.maximumf %106, %107 : vector<4x256xf32>
    %c252_i32 = arith.constant 252 : i32
    %109 = tpu.dynamic_rotate %102 by %c252_i32 dim 1 : vector<4x256xf32>, i32 -> vector<4x256xf32>
    %110 = arith.maximumf %108, %109 : vector<4x256xf32>
    %111 = vector.extract_strided_slice %110 {offsets = [0, 0], sizes = [1, 256], strides = [1, 1]} : vector<4x256xf32> to vector<1x256xf32>
    %112 = vector.broadcast %0 : f32 to vector<1x256xf32>
    %113 = arith.mulf %111, %112 : vector<1x256xf32>
    %114 = vector.extract_strided_slice %110 {offsets = [1, 0], sizes = [1, 256], strides = [1, 1]} : vector<4x256xf32> to vector<1x256xf32>
    %115 = vector.broadcast %1 : f32 to vector<1x256xf32>
    %116 = arith.mulf %114, %115 : vector<1x256xf32>
    %117 = arith.addf %113, %116 : vector<1x256xf32>
    %118 = vector.extract_strided_slice %110 {offsets = [2, 0], sizes = [1, 256], strides = [1, 1]} : vector<4x256xf32> to vector<1x256xf32>
    %119 = vector.broadcast %2 : f32 to vector<1x256xf32>
    %120 = arith.mulf %118, %119 : vector<1x256xf32>
    %121 = arith.addf %117, %120 : vector<1x256xf32>
    %122 = vector.extract_strided_slice %110 {offsets = [3, 0], sizes = [1, 256], strides = [1, 1]} : vector<4x256xf32> to vector<1x256xf32>
    %123 = vector.broadcast %3 : f32 to vector<1x256xf32>
    %124 = arith.mulf %122, %123 : vector<1x256xf32>
    %125 = arith.addf %121, %124 : vector<1x256xf32>
    %c240_i32_19 = arith.constant 240 : i32
    %126 = tpu.dynamic_rotate %8 by %c240_i32_19 dim 1 : vector<4x256xf32>, i32 -> vector<4x256xf32>
    %127 = arith.maximumf %8, %126 : vector<4x256xf32>
    %c224_i32_20 = arith.constant 224 : i32
    %128 = tpu.dynamic_rotate %8 by %c224_i32_20 dim 1 : vector<4x256xf32>, i32 -> vector<4x256xf32>
    %129 = arith.maximumf %127, %128 : vector<4x256xf32>
    %c208_i32_21 = arith.constant 208 : i32
    %130 = tpu.dynamic_rotate %8 by %c208_i32_21 dim 1 : vector<4x256xf32>, i32 -> vector<4x256xf32>
    %131 = arith.maximumf %129, %130 : vector<4x256xf32>
    %c192_i32_22 = arith.constant 192 : i32
    %132 = tpu.dynamic_rotate %8 by %c192_i32_22 dim 1 : vector<4x256xf32>, i32 -> vector<4x256xf32>
    %133 = arith.maximumf %131, %132 : vector<4x256xf32>
    %c255_i32_23 = arith.constant 255 : i32
    %134 = tpu.dynamic_rotate %133 by %c255_i32_23 dim 1 : vector<4x256xf32>, i32 -> vector<4x256xf32>
    %135 = arith.maximumf %133, %134 : vector<4x256xf32>
    %c254_i32_24 = arith.constant 254 : i32
    %136 = tpu.dynamic_rotate %133 by %c254_i32_24 dim 1 : vector<4x256xf32>, i32 -> vector<4x256xf32>
    %137 = arith.maximumf %135, %136 : vector<4x256xf32>
    %c253_i32_25 = arith.constant 253 : i32
    %138 = tpu.dynamic_rotate %133 by %c253_i32_25 dim 1 : vector<4x256xf32>, i32 -> vector<4x256xf32>
    %139 = arith.maximumf %137, %138 : vector<4x256xf32>
    %c252_i32_26 = arith.constant 252 : i32
    %140 = tpu.dynamic_rotate %133 by %c252_i32_26 dim 1 : vector<4x256xf32>, i32 -> vector<4x256xf32>
    %141 = arith.maximumf %139, %140 : vector<4x256xf32>
    %142 = vector.extract_strided_slice %141 {offsets = [0, 0], sizes = [1, 256], strides = [1, 1]} : vector<4x256xf32> to vector<1x256xf32>
    %143 = vector.broadcast %0 : f32 to vector<1x256xf32>
    %144 = arith.mulf %142, %143 : vector<1x256xf32>
    %145 = vector.extract_strided_slice %141 {offsets = [1, 0], sizes = [1, 256], strides = [1, 1]} : vector<4x256xf32> to vector<1x256xf32>
    %146 = vector.broadcast %1 : f32 to vector<1x256xf32>
    %147 = arith.mulf %145, %146 : vector<1x256xf32>
    %148 = arith.addf %144, %147 : vector<1x256xf32>
    %149 = vector.extract_strided_slice %141 {offsets = [2, 0], sizes = [1, 256], strides = [1, 1]} : vector<4x256xf32> to vector<1x256xf32>
    %150 = vector.broadcast %2 : f32 to vector<1x256xf32>
    %151 = arith.mulf %149, %150 : vector<1x256xf32>
    %152 = arith.addf %148, %151 : vector<1x256xf32>
    %153 = vector.extract_strided_slice %141 {offsets = [3, 0], sizes = [1, 256], strides = [1, 1]} : vector<4x256xf32> to vector<1x256xf32>
    %154 = vector.broadcast %3 : f32 to vector<1x256xf32>
    %155 = arith.mulf %153, %154 : vector<1x256xf32>
    %156 = arith.addf %152, %155 : vector<1x256xf32>
    %157 = tpu.concatenate %125, %156 in 0 : vector<1x256xf32>, vector<1x256xf32> -> vector<2x256xf32>
    %c240_i32_27 = arith.constant 240 : i32
    %158 = tpu.dynamic_rotate %6 by %c240_i32_27 dim 1 : vector<4x256xf32>, i32 -> vector<4x256xf32>
    %159 = arith.maximumf %6, %158 : vector<4x256xf32>
    %c224_i32_28 = arith.constant 224 : i32
    %160 = tpu.dynamic_rotate %6 by %c224_i32_28 dim 1 : vector<4x256xf32>, i32 -> vector<4x256xf32>
    %161 = arith.maximumf %159, %160 : vector<4x256xf32>
    %c208_i32_29 = arith.constant 208 : i32
    %162 = tpu.dynamic_rotate %6 by %c208_i32_29 dim 1 : vector<4x256xf32>, i32 -> vector<4x256xf32>
    %163 = arith.maximumf %161, %162 : vector<4x256xf32>
    %c192_i32_30 = arith.constant 192 : i32
    %164 = tpu.dynamic_rotate %6 by %c192_i32_30 dim 1 : vector<4x256xf32>, i32 -> vector<4x256xf32>
    %165 = arith.maximumf %163, %164 : vector<4x256xf32>
    %c176_i32 = arith.constant 176 : i32
    %166 = tpu.dynamic_rotate %6 by %c176_i32 dim 1 : vector<4x256xf32>, i32 -> vector<4x256xf32>
    %167 = arith.maximumf %165, %166 : vector<4x256xf32>
    %c255_i32_31 = arith.constant 255 : i32
    %168 = tpu.dynamic_rotate %167 by %c255_i32_31 dim 1 : vector<4x256xf32>, i32 -> vector<4x256xf32>
    %169 = arith.maximumf %167, %168 : vector<4x256xf32>
    %c254_i32_32 = arith.constant 254 : i32
    %170 = tpu.dynamic_rotate %167 by %c254_i32_32 dim 1 : vector<4x256xf32>, i32 -> vector<4x256xf32>
    %171 = arith.maximumf %169, %170 : vector<4x256xf32>
    %c253_i32_33 = arith.constant 253 : i32
    %172 = tpu.dynamic_rotate %167 by %c253_i32_33 dim 1 : vector<4x256xf32>, i32 -> vector<4x256xf32>
    %173 = arith.maximumf %171, %172 : vector<4x256xf32>
    %c252_i32_34 = arith.constant 252 : i32
    %174 = tpu.dynamic_rotate %167 by %c252_i32_34 dim 1 : vector<4x256xf32>, i32 -> vector<4x256xf32>
    %175 = arith.maximumf %173, %174 : vector<4x256xf32>
    %c251_i32 = arith.constant 251 : i32
    %176 = tpu.dynamic_rotate %167 by %c251_i32 dim 1 : vector<4x256xf32>, i32 -> vector<4x256xf32>
    %177 = arith.maximumf %175, %176 : vector<4x256xf32>
    %178 = vector.extract_strided_slice %177 {offsets = [0, 0], sizes = [1, 256], strides = [1, 1]} : vector<4x256xf32> to vector<1x256xf32>
    %179 = vector.broadcast %0 : f32 to vector<1x256xf32>
    %180 = arith.mulf %178, %179 : vector<1x256xf32>
    %181 = vector.extract_strided_slice %177 {offsets = [1, 0], sizes = [1, 256], strides = [1, 1]} : vector<4x256xf32> to vector<1x256xf32>
    %182 = vector.broadcast %1 : f32 to vector<1x256xf32>
    %183 = arith.mulf %181, %182 : vector<1x256xf32>
    %184 = arith.addf %180, %183 : vector<1x256xf32>
    %185 = vector.extract_strided_slice %177 {offsets = [2, 0], sizes = [1, 256], strides = [1, 1]} : vector<4x256xf32> to vector<1x256xf32>
    %186 = vector.broadcast %2 : f32 to vector<1x256xf32>
    %187 = arith.mulf %185, %186 : vector<1x256xf32>
    %188 = arith.addf %184, %187 : vector<1x256xf32>
    %189 = vector.extract_strided_slice %177 {offsets = [3, 0], sizes = [1, 256], strides = [1, 1]} : vector<4x256xf32> to vector<1x256xf32>
    %190 = vector.broadcast %3 : f32 to vector<1x256xf32>
    %191 = arith.mulf %189, %190 : vector<1x256xf32>
    %192 = arith.addf %188, %191 : vector<1x256xf32>
    %c240_i32_35 = arith.constant 240 : i32
    %193 = tpu.dynamic_rotate %8 by %c240_i32_35 dim 1 : vector<4x256xf32>, i32 -> vector<4x256xf32>
    %194 = arith.maximumf %8, %193 : vector<4x256xf32>
    %c224_i32_36 = arith.constant 224 : i32
    %195 = tpu.dynamic_rotate %8 by %c224_i32_36 dim 1 : vector<4x256xf32>, i32 -> vector<4x256xf32>
    %196 = arith.maximumf %194, %195 : vector<4x256xf32>
    %c208_i32_37 = arith.constant 208 : i32
    %197 = tpu.dynamic_rotate %8 by %c208_i32_37 dim 1 : vector<4x256xf32>, i32 -> vector<4x256xf32>
    %198 = arith.maximumf %196, %197 : vector<4x256xf32>
    %c192_i32_38 = arith.constant 192 : i32
    %199 = tpu.dynamic_rotate %8 by %c192_i32_38 dim 1 : vector<4x256xf32>, i32 -> vector<4x256xf32>
    %200 = arith.maximumf %198, %199 : vector<4x256xf32>
    %c176_i32_39 = arith.constant 176 : i32
    %201 = tpu.dynamic_rotate %8 by %c176_i32_39 dim 1 : vector<4x256xf32>, i32 -> vector<4x256xf32>
    %202 = arith.maximumf %200, %201 : vector<4x256xf32>
    %c255_i32_40 = arith.constant 255 : i32
    %203 = tpu.dynamic_rotate %202 by %c255_i32_40 dim 1 : vector<4x256xf32>, i32 -> vector<4x256xf32>
    %204 = arith.maximumf %202, %203 : vector<4x256xf32>
    %c254_i32_41 = arith.constant 254 : i32
    %205 = tpu.dynamic_rotate %202 by %c254_i32_41 dim 1 : vector<4x256xf32>, i32 -> vector<4x256xf32>
    %206 = arith.maximumf %204, %205 : vector<4x256xf32>
    %c253_i32_42 = arith.constant 253 : i32
    %207 = tpu.dynamic_rotate %202 by %c253_i32_42 dim 1 : vector<4x256xf32>, i32 -> vector<4x256xf32>
    %208 = arith.maximumf %206, %207 : vector<4x256xf32>
    %c252_i32_43 = arith.constant 252 : i32
    %209 = tpu.dynamic_rotate %202 by %c252_i32_43 dim 1 : vector<4x256xf32>, i32 -> vector<4x256xf32>
    %210 = arith.maximumf %208, %209 : vector<4x256xf32>
    %c251_i32_44 = arith.constant 251 : i32
    %211 = tpu.dynamic_rotate %202 by %c251_i32_44 dim 1 : vector<4x256xf32>, i32 -> vector<4x256xf32>
    %212 = arith.maximumf %210, %211 : vector<4x256xf32>
    %213 = vector.extract_strided_slice %212 {offsets = [0, 0], sizes = [1, 256], strides = [1, 1]} : vector<4x256xf32> to vector<1x256xf32>
    %214 = vector.broadcast %0 : f32 to vector<1x256xf32>
    %215 = arith.mulf %213, %214 : vector<1x256xf32>
    %216 = vector.extract_strided_slice %212 {offsets = [1, 0], sizes = [1, 256], strides = [1, 1]} : vector<4x256xf32> to vector<1x256xf32>
    %217 = vector.broadcast %1 : f32 to vector<1x256xf32>
    %218 = arith.mulf %216, %217 : vector<1x256xf32>
    %219 = arith.addf %215, %218 : vector<1x256xf32>
    %220 = vector.extract_strided_slice %212 {offsets = [2, 0], sizes = [1, 256], strides = [1, 1]} : vector<4x256xf32> to vector<1x256xf32>
    %221 = vector.broadcast %2 : f32 to vector<1x256xf32>
    %222 = arith.mulf %220, %221 : vector<1x256xf32>
    %223 = arith.addf %219, %222 : vector<1x256xf32>
    %224 = vector.extract_strided_slice %212 {offsets = [3, 0], sizes = [1, 256], strides = [1, 1]} : vector<4x256xf32> to vector<1x256xf32>
    %225 = vector.broadcast %3 : f32 to vector<1x256xf32>
    %226 = arith.mulf %224, %225 : vector<1x256xf32>
    %227 = arith.addf %223, %226 : vector<1x256xf32>
    %228 = tpu.concatenate %192, %227 in 0 : vector<1x256xf32>, vector<1x256xf32> -> vector<2x256xf32>
    %c0_45 = arith.constant 0 : index
    %c0_46 = arith.constant 0 : index
    %229 = vector.load %arg4[%c0_45, %c0_46] : memref<256x256xf32, #tpu.memory_space<vmem>>, vector<256x256xf32>
    %cst = arith.constant dense<0.000000e+00> : vector<2x256xf32>
    %230 = tpu.matmul %47, %229, %cst {dimension_numbers = #tpu.dot_dimension_numbers<[1], [0], [0], [1], [0, 0, 1, 1], [], []>} : vector<2x256xf32>, vector<256x256xf32>, vector<2x256xf32> -> vector<2x256xf32>
    %231 = vector.broadcast %4 : f32 to vector<2x256xf32>
    %232 = arith.addf %230, %231 : vector<2x256xf32>
    %c0_47 = arith.constant 0 : index
    %c0_48 = arith.constant 0 : index
    %233 = vector.load %arg5[%c0_47, %c0_48] : memref<256x256xf32, #tpu.memory_space<vmem>>, vector<256x256xf32>
    %cst_49 = arith.constant dense<0.000000e+00> : vector<2x256xf32>
    %234 = tpu.matmul %94, %233, %cst_49 {dimension_numbers = #tpu.dot_dimension_numbers<[1], [0], [0], [1], [0, 0, 1, 1], [], []>} : vector<2x256xf32>, vector<256x256xf32>, vector<2x256xf32> -> vector<2x256xf32>
    %235 = vector.broadcast %4 : f32 to vector<2x256xf32>
    %236 = arith.addf %234, %235 : vector<2x256xf32>
    %c0_50 = arith.constant 0 : index
    %c0_51 = arith.constant 0 : index
    %237 = vector.load %arg6[%c0_50, %c0_51] : memref<256x256xf32, #tpu.memory_space<vmem>>, vector<256x256xf32>
    %cst_52 = arith.constant dense<0.000000e+00> : vector<2x256xf32>
    %238 = tpu.matmul %157, %237, %cst_52 {dimension_numbers = #tpu.dot_dimension_numbers<[1], [0], [0], [1], [0, 0, 1, 1], [], []>} : vector<2x256xf32>, vector<256x256xf32>, vector<2x256xf32> -> vector<2x256xf32>
    %239 = vector.broadcast %4 : f32 to vector<2x256xf32>
    %240 = arith.addf %238, %239 : vector<2x256xf32>
    %c0_53 = arith.constant 0 : index
    %c0_54 = arith.constant 0 : index
    %241 = vector.load %arg7[%c0_53, %c0_54] : memref<256x256xf32, #tpu.memory_space<vmem>>, vector<256x256xf32>
    %cst_55 = arith.constant dense<0.000000e+00> : vector<2x256xf32>
    %242 = tpu.matmul %228, %241, %cst_55 {dimension_numbers = #tpu.dot_dimension_numbers<[1], [0], [0], [1], [0, 0, 1, 1], [], []>} : vector<2x256xf32>, vector<256x256xf32>, vector<2x256xf32> -> vector<2x256xf32>
    %243 = vector.broadcast %4 : f32 to vector<2x256xf32>
    %244 = arith.addf %242, %243 : vector<2x256xf32>
    %245 = vector.extract_strided_slice %232 {offsets = [0, 0], sizes = [1, 256], strides = [1, 1]} : vector<2x256xf32> to vector<1x256xf32>
    %246 = vector.extract_strided_slice %236 {offsets = [0, 0], sizes = [1, 256], strides = [1, 1]} : vector<2x256xf32> to vector<1x256xf32>
    %247 = vector.extract_strided_slice %240 {offsets = [0, 0], sizes = [1, 256], strides = [1, 1]} : vector<2x256xf32> to vector<1x256xf32>
    %248 = vector.extract_strided_slice %244 {offsets = [0, 0], sizes = [1, 256], strides = [1, 1]} : vector<2x256xf32> to vector<1x256xf32>
    %249 = tpu.concatenate %245, %246, %247, %248, %6 in 0 : vector<1x256xf32>, vector<1x256xf32>, vector<1x256xf32>, vector<1x256xf32>, vector<4x256xf32> -> vector<8x256xf32>
    %c0_56 = arith.constant 0 : index
    %c0_57 = arith.constant 0 : index
    %c0_58 = arith.constant 0 : index
    %250 = vector.load %arg8[%c0_56, %c0_57, %c0_58] : memref<2x8x256xf32, #tpu.memory_space<vmem>>, vector<1x8x256xf32>
    %251 = vector.shape_cast %250 : vector<1x8x256xf32> to vector<8x256xf32>
    %252 = vector.shape_cast %249 : vector<8x256xf32> to vector<1x8x256xf32>
    tpu.vector_store %arg8[%c0_56, %c0_57, %c0_58], %252 {strides = array<i32>} : memref<2x8x256xf32, #tpu.memory_space<vmem>>, vector<1x8x256xf32>,
    %253 = vector.extract_strided_slice %232 {offsets = [1, 0], sizes = [1, 256], strides = [1, 1]} : vector<2x256xf32> to vector<1x256xf32>
    %254 = vector.extract_strided_slice %236 {offsets = [1, 0], sizes = [1, 256], strides = [1, 1]} : vector<2x256xf32> to vector<1x256xf32>
    %255 = vector.extract_strided_slice %240 {offsets = [1, 0], sizes = [1, 256], strides = [1, 1]} : vector<2x256xf32> to vector<1x256xf32>
    %256 = vector.extract_strided_slice %244 {offsets = [1, 0], sizes = [1, 256], strides = [1, 1]} : vector<2x256xf32> to vector<1x256xf32>
    %257 = tpu.concatenate %253, %254, %255, %256, %8 in 0 : vector<1x256xf32>, vector<1x256xf32>, vector<1x256xf32>, vector<1x256xf32>, vector<4x256xf32> -> vector<8x256xf32>
    %c1_59 = arith.constant 1 : index
    %c0_60 = arith.constant 0 : index
    %c0_61 = arith.constant 0 : index
    %258 = vector.load %arg8[%c1_59, %c0_60, %c0_61] : memref<2x8x256xf32, #tpu.memory_space<vmem>>, vector<1x8x256xf32>
    %259 = vector.shape_cast %258 : vector<1x8x256xf32> to vector<8x256xf32>
    %260 = vector.shape_cast %257 : vector<8x256xf32> to vector<1x8x256xf32>
    tpu.vector_store %arg8[%c1_59, %c0_60, %c0_61], %260 {strides = array<i32>} : memref<2x8x256xf32, #tpu.memory_space<vmem>>, vector<1x8x256xf32>,
    return
  }
  func.func @transform_0(%arg0: i32) -> (i32, i32, i32) {
    %c0_i32 = arith.constant 0 : i32
    %c0_i32_0 = arith.constant 0 : i32
    %c0_i32_1 = arith.constant 0 : i32
    return %arg0, %c0_i32, %c0_i32_0 : i32, i32, i32
  }
  func.func @transform_1(%arg0: i32) -> i32 {
    %c0_i32 = arith.constant 0 : i32
    %c0_i32_0 = arith.constant 0 : i32
    return %c0_i32 : i32
  }
  func.func @transform_2(%arg0: i32) -> i32 {
    %c0_i32 = arith.constant 0 : i32
    %c0_i32_0 = arith.constant 0 : i32
    return %c0_i32 : i32
  }
  func.func @transform_3(%arg0: i32) -> (i32, i32) {
    %c0_i32 = arith.constant 0 : i32
    %c0_i32_0 = arith.constant 0 : i32
    %c0_i32_1 = arith.constant 0 : i32
    return %c0_i32, %c0_i32_0 : i32, i32
  }
  func.func @transform_4(%arg0: i32) -> (i32, i32) {
    %c0_i32 = arith.constant 0 : i32
    %c0_i32_0 = arith.constant 0 : i32
    %c0_i32_1 = arith.constant 0 : i32
    return %c0_i32, %c0_i32_0 : i32, i32
  }
  func.func @transform_5(%arg0: i32) -> (i32, i32) {
    %c0_i32 = arith.constant 0 : i32
    %c0_i32_0 = arith.constant 0 : i32
    %c0_i32_1 = arith.constant 0 : i32
    return %c0_i32, %c0_i32_0 : i32, i32
  }
  func.func @transform_6(%arg0: i32) -> (i32, i32) {
    %c0_i32 = arith.constant 0 : i32
    %c0_i32_0 = arith.constant 0 : i32
    %c0_i32_1 = arith.constant 0 : i32
    return %c0_i32, %c0_i32_0 : i32, i32
  }
  func.func @transform_7(%arg0: i32) -> (i32, i32, i32) {
    %c0_i32 = arith.constant 0 : i32
    %c0_i32_0 = arith.constant 0 : i32
    %c0_i32_1 = arith.constant 0 : i32
    return %arg0, %c0_i32, %c0_i32_0 : i32, i32, i32
  }
}

</mosaic_0001>

<llo_original>
// kernel: tpu_custom_call.1
$region0: #{tpu_custom_call.1}
  #allocation0 [shape = 'u32[]', space=smem, size = 0x4, offset = 0x4, fixed_abs, tag = 'smem constant byte address 0x4 - core index']
  #allocation1 [shape = 'u32[72,128]{1,0:T(1,128)}', space=vmem, size = 0x9000, scoped, tag = 'internal scratch']
  #allocation2 [shape = 'f32[1]{0:T(128)S(6)}', space=smem, size = 0x200, scoped, tag = 'scoped memory for tpu_custom_call.1']
  %s0 = inlined_call_operand.hbm [shape: f32[2,4,256], index: 0, kind: input, shape index: {}]
  %s1 = inlined_call_operand.vmem [shape: f32[4], index: 1, kind: input, shape index: {}]
  %s2 = inlined_call_operand.<no memory space> [shape: f32[1], index: 2, kind: input, shape index: {}]
  %s3 = inlined_call_operand.hbm [shape: f32[256,256], index: 3, kind: input, shape index: {}]
  %s4 = inlined_call_operand.hbm [shape: f32[256,256], index: 4, kind: input, shape index: {}]
  %s5 = inlined_call_operand.hbm [shape: f32[256,256], index: 5, kind: input, shape index: {}]
  %s6 = inlined_call_operand.hbm [shape: f32[256,256], index: 6, kind: input, shape index: {}]
  %s7 = inlined_call_operand.hbm [shape: f32[2,8,256], index: 7, kind: output, shape index: {}]
  %s8 = sld [smem:[#allocation0]]
  $region62: #{tpu_custom_call.1} parent=0
    _
  %s10 = ssub.s32 1, %s8
  %s11 = scalar_select 0, %s10, %s8
  %12 = sst [smem:[#allocation2]] %s2
  $region1: #{tpu_custom_call.1} parent=0
    #allocation3 [shape = 'u8[8192]{0}', space=vmem, size = 0x2000, scoped, tag = 'input window, operand 0, single buffered']
    #allocation4 [shape = 's32[1]{0}', space=sflag, size = 0x4, scoped, tag = 'scoped memory for tpu_custom_call.1']
    #allocation5 [shape = 's32[1]{0}', space=sflag, size = 0x4, scoped, tag = 'scoped memory for tpu_custom_call.1']
    #allocation6 [shape = 's32[1]{0}', space=sflag, size = 0x4, scoped, tag = 'scoped memory for tpu_custom_call.1']
    #allocation7 [shape = 'u8[512]{0}', space=smem, size = 0x200, scoped, tag = 'input window, operand 1, single buffered']
    #allocation8 [shape = 'u8[262144]{0}', space=vmem, size = 0x40000, scoped, tag = 'input window, operand 3, single buffered']
    #allocation9 [shape = 's32[1]{0}', space=sflag, size = 0x4, scoped, tag = 'scoped memory for tpu_custom_call.1']
    #allocation10 [shape = 'u8[262144]{0}', space=vmem, size = 0x40000, scoped, tag = 'input window, operand 4, single buffered']
    #allocation11 [shape = 'u8[262144]{0}', space=vmem, size = 0x40000, scoped, tag = 'input window, operand 5, single buffered']
    #allocation12 [shape = 's32[1]{0}', space=sflag, size = 0x4, scoped, tag = 'scoped memory for tpu_custom_call.1']
    #allocation13 [shape = 'u8[262144]{0}', space=vmem, size = 0x40000, scoped, tag = 'input window, operand 6, single buffered']
    #allocation14 [shape = 'u8[16384]{0}', space=vmem, size = 0x4000, scoped, tag = 'output window, operand 0, single buffered']
    %13 = vsyncpa [#allocation4], 0
    %14 = vsyncpa [#allocation6], 0
    %15 = vsyncpa [#allocation9], 0
    %16 = vsyncpa [#allocation12], 0
    %17 = vsyncpa [#allocation5], 0
    // Predicated region
    $region2: #{tpu_custom_call.1} parent=1 // pred_check
      _
    $region3: #{tpu_custom_call.1} parent=1 // pred_check_branch
      %19 = sbr.rel (0) target = $region5
    $region4: #{tpu_custom_call.1} parent=1 // pred_region
      %21 = vsyncadd [#allocation4], 0
      %s22 = sshll.u32 %s0, 4
      %s23 = int_to_ptr.hbm [resolvable:$true] %s22
      %s24 = sshll.u32 [#allocation3], 4
      %s25 = int_to_ptr.vmem [resolvable:$true] %s24
      %30 = dma.hbm_to_vmem [thread:$0]  %s23, 256, %s25, [#allocation4], 128, 128, 8
    $region5: #{tpu_custom_call.1} parent=1 // pred_fallthru
      _
    // Predicated region
    $region6: #{tpu_custom_call.1} parent=1 // pred_check
      _
    $region7: #{tpu_custom_call.1} parent=1 // pred_check_branch
      %32 = sbr.rel (0) target = $region9
    $region8: #{tpu_custom_call.1} parent=1 // pred_region
      %34 = vsyncadd [#allocation6], 0
      %s36 = sshll.u32 %s1, 4
      %s37 = int_to_ptr.vmem [resolvable:$true] %s36
      %39 = dma.vmem_to_smem %s37, 16, [#allocation7], [#allocation6]
    $region9: #{tpu_custom_call.1} parent=1 // pred_fallthru
      _
    // Predicated region
    $region10: #{tpu_custom_call.1} parent=1 // pred_check
      _
    $region11: #{tpu_custom_call.1} parent=1 // pred_check_branch
      %41 = sbr.rel (0) target = $region13
    $region12: #{tpu_custom_call.1} parent=1 // pred_region
      _
    $region13: #{tpu_custom_call.1} parent=1 // pred_fallthru
      _
    // Predicated region
    $region14: #{tpu_custom_call.1} parent=1 // pred_check
      _
    $region15: #{tpu_custom_call.1} parent=1 // pred_check_branch
      %43 = sbr.rel (0) target = $region17
    $region16: #{tpu_custom_call.1} parent=1 // pred_region
      %45 = vsyncadd [#allocation9], 0
      %s46 = sshll.u32 %s3, 4
      %s47 = int_to_ptr.hbm [resolvable:$true] %s46
      %s48 = sshll.u32 [#allocation8], 4
      %s49 = int_to_ptr.vmem [resolvable:$true] %s48
      %54 = dma.hbm_to_vmem [thread:$0]  %s47, 8192, %s49, [#allocation9], 256, 256, 16
    $region17: #{tpu_custom_call.1} parent=1 // pred_fallthru
      _
    // Predicated region
    $region18: #{tpu_custom_call.1} parent=1 // pred_check
      _
    $region19: #{tpu_custom_call.1} parent=1 // pred_check_branch
      %56 = sbr.rel (0) target = $region21
    $region20: #{tpu_custom_call.1} parent=1 // pred_region
      %58 = vsyncadd [#allocation9], 0
      %s59 = sshll.u32 %s4, 4
      %s60 = int_to_ptr.hbm [resolvable:$true] %s59
      %s61 = sshll.u32 [#allocation10], 4
      %s62 = int_to_ptr.vmem [resolvable:$true] %s61
      %67 = dma.hbm_to_vmem [thread:$0]  %s60, 8192, %s62, [#allocation9], 256, 256, 16
    $region21: #{tpu_custom_call.1} parent=1 // pred_fallthru
      _
    // Predicated region
    $region22: #{tpu_custom_call.1} parent=1 // pred_check
      _
    $region23: #{tpu_custom_call.1} parent=1 // pred_check_branch
      %69 = sbr.rel (0) target = $region25
    $region24: #{tpu_custom_call.1} parent=1 // pred_region
      %71 = vsyncadd [#allocation12], 0
      %s72 = sshll.u32 %s5, 4
      %s73 = int_to_ptr.hbm [resolvable:$true] %s72
      %s74 = sshll.u32 [#allocation11], 4
      %s75 = int_to_ptr.vmem [resolvable:$true] %s74
      %80 = dma.hbm_to_vmem [thread:$0]  %s73, 8192, %s75, [#allocation12], 256, 256, 16
    $region25: #{tpu_custom_call.1} parent=1 // pred_fallthru
      _
    // Predicated region
    $region26: #{tpu_custom_call.1} parent=1 // pred_check
      _
    $region27: #{tpu_custom_call.1} parent=1 // pred_check_branch
      %82 = sbr.rel (0) target = $region29
    $region28: #{tpu_custom_call.1} parent=1 // pred_region
      %84 = vsyncadd [#allocation12], 0
      %s85 = sshll.u32 %s6, 4
      %s86 = int_to_ptr.hbm [resolvable:$true] %s85
      %s87 = sshll.u32 [#allocation13], 4
      %s88 = int_to_ptr.vmem [resolvable:$true] %s87
      %93 = dma.hbm_to_vmem [thread:$0]  %s86, 8192, %s88, [#allocation12], 256, 256, 16
    $region29: #{tpu_custom_call.1} parent=1 // pred_fallthru
      _
    // Predicated region
    $region30: #{tpu_custom_call.1} parent=1 // pred_check
      _
    $region31: #{tpu_custom_call.1} parent=1 // pred_check_branch
      %95 = sbr.rel (0) target = $region33
    $region32: #{tpu_custom_call.1} parent=1 // pred_region
      %97 = dma.done [#allocation4], 256
    $region33: #{tpu_custom_call.1} parent=1 // pred_fallthru
      _
    // Predicated region
    $region34: #{tpu_custom_call.1} parent=1 // pred_check
      _
    $region35: #{tpu_custom_call.1} parent=1 // pred_check_branch
      %99 = sbr.rel (0) target = $region37
    $region36: #{tpu_custom_call.1} parent=1 // pred_region
      %101 = dma.done [#allocation6], 16
    $region37: #{tpu_custom_call.1} parent=1 // pred_fallthru
      _
    // Predicated region
    $region38: #{tpu_custom_call.1} parent=1 // pred_check
      _
    $region39: #{tpu_custom_call.1} parent=1 // pred_check_branch
      %103 = sbr.rel (0) target = $region41
    $region40: #{tpu_custom_call.1} parent=1 // pred_region
      %105 = dma.done [#allocation9], 8192
    $region41: #{tpu_custom_call.1} parent=1 // pred_fallthru
      _
    // Predicated region
    $region42: #{tpu_custom_call.1} parent=1 // pred_check
      _
    $region43: #{tpu_custom_call.1} parent=1 // pred_check_branch
      %107 = sbr.rel (0) target = $region45
    $region44: #{tpu_custom_call.1} parent=1 // pred_region
      %109 = dma.done [#allocation9], 8192
    $region45: #{tpu_custom_call.1} parent=1 // pred_fallthru
      _
    // Predicated region
    $region46: #{tpu_custom_call.1} parent=1 // pred_check
      _
    $region47: #{tpu_custom_call.1} parent=1 // pred_check_branch
      %111 = sbr.rel (0) target = $region49
    $region48: #{tpu_custom_call.1} parent=1 // pred_region
      %113 = dma.done [#allocation12], 8192
    $region49: #{tpu_custom_call.1} parent=1 // pred_fallthru
      _
    // Predicated region
    $region50: #{tpu_custom_call.1} parent=1 // pred_check
      _
    $region51: #{tpu_custom_call.1} parent=1 // pred_check_branch
      %115 = sbr.rel (0) target = $region53
    $region52: #{tpu_custom_call.1} parent=1 // pred_region
      %117 = dma.done [#allocation12], 8192
    $region53: #{tpu_custom_call.1} parent=1 // pred_fallthru
      _
    %118 = sfence
    %s119 = sld [smem:[#allocation7]]
    %s120 = sld [smem:[#allocation7 + $0x1]]
    %s121 = sld [smem:[#allocation7 + $0x2]]
    %s122 = sld [smem:[#allocation7 + $0x3]]
    %s123 = sld [smem:[#allocation2]]
    %v124 = vld [vmem:[#allocation3] sm:$0xff]
    %s125 = scalar_lea.vmem [#allocation3], 8
    %v126 = vld [vmem:[%s125] sm:$0xff]
    %128 = vst [vmem:[#allocation1] ss:$2 sm:$0xff] %v124
    %v129 = vld.sshfl [vmem:[#allocation1] sm:$0xff pattern:$0x75316420]
    %v130 = vld.sshfl [vmem:[#allocation1 + $0x8] sm:$0xff pattern:$0x75316420]
    %133 = vrot.lane.b32.xlu0 %v129, 112
    %v134 = vpop.permute.xlu0 %133
    %135 = vrot.lane.b32.xlu0 %v130, 112
    %v136 = vpop.permute.xlu0 %135
    %v137 = vlaneseq
    %v138 = vand.u32 %v137, 127
    %vm139 = vcmp.lt.s32.totalorder %v138, 112
    %v140 = vsel %vm139, %v134, %v136
    %v141 = vsel %vm139, %v136, %v134
    %v144 = vrot.slane %v141, 4
    %vm145 = vcmask 1043456
    %v146 = vsel %vm145, %v140, %v144
    %v148 = vmax.f32 %v124, %v146
    %150 = vst [vmem:[#allocation1] ss:$2 sm:$0xff] %v148
    %v151 = vld.sshfl [vmem:[#allocation1] sm:$0xff pattern:$0x75316420]
    %v152 = vld.sshfl [vmem:[#allocation1 + $0x8] sm:$0xff pattern:$0x75316420]
    %155 = vrot.lane.b32.xlu0 %v151, 127
    %v156 = vpop.permute.xlu0 %155
    %157 = vrot.lane.b32.xlu0 %v152, 127
    %v158 = vpop.permute.xlu0 %157
    %vm159 = vcmp.lt.s32.totalorder %v138, 127
    %v160 = vsel %vm159, %v156, %v158
    %v161 = vsel %vm159, %v158, %v156
    %v164 = vrot.slane %v161, 4
    %v165 = vsel %vm145, %v160, %v164
    %v167 = vmax.f32 %v148, %v165
    %v168 = vstv %s119
    %v169 = vmul.f32 %v167, %v168
    %v170 = vstv %s120
    %v171 = vmul.f32 %v167, %v170
    %v173 = vrot.slane %v171, 5
    %v174 = vrot.slane %v173, 4
    %v176 = vadd.f32 %v169, %v174
    %v177 = vstv %s121
    %v178 = vmul.f32 %v167, %v177
    %v180 = vrot.slane %v178, 6
    %v181 = vrot.slane %v180, 4
    %v183 = vadd.f32 %v176, %v181
    %v184 = vstv %s122
    %v185 = vmul.f32 %v167, %v184
    %v187 = vrot.slane %v185, 7
    %v188 = vrot.slane %v187, 4
    %v190 = vadd.f32 %v183, %v188
    %192 = vst [vmem:[#allocation1] ss:$2 sm:$0xff] %v126
    %v193 = vld.sshfl [vmem:[#allocation1] sm:$0xff pattern:$0x75316420]
    %v194 = vld.sshfl [vmem:[#allocation1 + $0x8] sm:$0xff pattern:$0x75316420]
    %197 = vrot.lane.b32.xlu0 %v193, 112
    %v198 = vpop.permute.xlu0 %197
    %199 = vrot.lane.b32.xlu0 %v194, 112
    %v200 = vpop.permute.xlu0 %199
    %v201 = vsel %vm139, %v198, %v200
    %v202 = vsel %vm139, %v200, %v198
    %v205 = vrot.slane %v202, 4
    %v206 = vsel %vm145, %v201, %v205
    %v208 = vmax.f32 %v126, %v206
    %210 = vst [vmem:[#allocation1] ss:$2 sm:$0xff] %v208
    %v211 = vld.sshfl [vmem:[#allocation1] sm:$0xff pattern:$0x75316420]
    %v212 = vld.sshfl [vmem:[#allocation1 + $0x8] sm:$0xff pattern:$0x75316420]
    %215 = vrot.lane.b32.xlu0 %v211, 127
    %v216 = vpop.permute.xlu0 %215
    %217 = vrot.lane.b32.xlu0 %v212, 127
    %v218 = vpop.permute.xlu0 %217
    %v219 = vsel %vm159, %v216, %v218
    %v220 = vsel %vm159, %v218, %v216
    %v223 = vrot.slane %v220, 4
    %v224 = vsel %vm145, %v219, %v223
    %v226 = vmax.f32 %v208, %v224
    %v227 = vmul.f32 %v226, %v168
    %v228 = vmul.f32 %v226, %v170
    %v230 = vrot.slane %v228, 5
    %v231 = vrot.slane %v230, 4
    %v233 = vadd.f32 %v227, %v231
    %v234 = vmul.f32 %v226, %v177
    %v236 = vrot.slane %v234, 6
    %v237 = vrot.slane %v236, 4
    %v239 = vadd.f32 %v233, %v237
    %v240 = vmul.f32 %v226, %v184
    %v242 = vrot.slane %v240, 7
    %v243 = vrot.slane %v242, 4
    %v245 = vadd.f32 %v239, %v243
    %v247 = vperm.slane %v190, 0
    %v248 = vperm.slane %v190, 4
    %v252 = vperm.slane %v245, 0
    %v253 = vperm.slane %v245, 4
    %vm256 = vcmask 1040384
    %v257 = vsel %vm256, %v247, %v252
    %v258 = vsel %vm256, %v248, %v253
    %259 = vst [vmem:[#allocation1] ss:$2 sm:$0xff] %v124
    %v260 = vld.sshfl [vmem:[#allocation1] sm:$0xff pattern:$0x75316420]
    %v261 = vld.sshfl [vmem:[#allocation1 + $0x8] sm:$0xff pattern:$0x75316420]
    %264 = vrot.lane.b32.xlu0 %v260, 96
    %v265 = vpop.permute.xlu0 %264
    %266 = vrot.lane.b32.xlu0 %v261, 96
    %v267 = vpop.permute.xlu0 %266
    %vm268 = vcmp.lt.s32.totalorder %v138, 96
    %v269 = vsel %vm268, %v265, %v267
    %v270 = vsel %vm268, %v267, %v265
    %v273 = vrot.slane %v270, 4
    %v274 = vsel %vm145, %v269, %v273
    %v276 = vmax.f32 %v148, %v274
    %278 = vst [vmem:[#allocation1] ss:$2 sm:$0xff] %v276
    %v279 = vld.sshfl [vmem:[#allocation1] sm:$0xff pattern:$0x75316420]
    %v280 = vld.sshfl [vmem:[#allocation1 + $0x8] sm:$0xff pattern:$0x75316420]
    %283 = vrot.lane.b32.xlu0 %v279, 127
    %v284 = vpop.permute.xlu0 %283
    %285 = vrot.lane.b32.xlu0 %v280, 127
    %v286 = vpop.permute.xlu0 %285
    %v287 = vsel %vm159, %v284, %v286
    %v288 = vsel %vm159, %v286, %v284
    %v291 = vrot.slane %v288, 4
    %v292 = vsel %vm145, %v287, %v291
    %v294 = vmax.f32 %v276, %v292
    %295 = vst [vmem:[#allocation1] ss:$2 sm:$0xff] %v276
    %v296 = vld.sshfl [vmem:[#allocation1] sm:$0xff pattern:$0x75316420]
    %v297 = vld.sshfl [vmem:[#allocation1 + $0x8] sm:$0xff pattern:$0x75316420]
    %300 = vrot.lane.b32.xlu0 %v296, 126
    %v301 = vpop.permute.xlu0 %300
    %302 = vrot.lane.b32.xlu0 %v297, 126
    %v303 = vpop.permute.xlu0 %302
    %vm304 = vcmp.lt.s32.totalorder %v138, 126
    %v305 = vsel %vm304, %v301, %v303
    %v306 = vsel %vm304, %v303, %v301
    %v309 = vrot.slane %v306, 4
    %v310 = vsel %vm145, %v305, %v309
    %v312 = vmax.f32 %v294, %v310
    %v313 = vmul.f32 %v312, %v168
    %v314 = vmul.f32 %v312, %v170
    %v316 = vrot.slane %v314, 5
    %v317 = vrot.slane %v316, 4
    %v319 = vadd.f32 %v313, %v317
    %v320 = vmul.f32 %v312, %v177
    %v322 = vrot.slane %v320, 6
    %v323 = vrot.slane %v322, 4
    %v325 = vadd.f32 %v319, %v323
    %v326 = vmul.f32 %v312, %v184
    %v328 = vrot.slane %v326, 7
    %v329 = vrot.slane %v328, 4
    %v331 = vadd.f32 %v325, %v329
    %332 = vst [vmem:[#allocation1] ss:$2 sm:$0xff] %v126
    %v333 = vld.sshfl [vmem:[#allocation1] sm:$0xff pattern:$0x75316420]
    %v334 = vld.sshfl [vmem:[#allocation1 + $0x8] sm:$0xff pattern:$0x75316420]
    %337 = vrot.lane.b32.xlu0 %v333, 96
    %v338 = vpop.permute.xlu0 %337
    %339 = vrot.lane.b32.xlu0 %v334, 96
    %v340 = vpop.permute.xlu0 %339
    %v341 = vsel %vm268, %v338, %v340
    %v342 = vsel %vm268, %v340, %v338
    %v345 = vrot.slane %v342, 4
    %v346 = vsel %vm145, %v341, %v345
    %v348 = vmax.f32 %v208, %v346
    %350 = vst [vmem:[#allocation1] ss:$2 sm:$0xff] %v348
    %v351 = vld.sshfl [vmem:[#allocation1] sm:$0xff pattern:$0x75316420]
    %v352 = vld.sshfl [vmem:[#allocation1 + $0x8] sm:$0xff pattern:$0x75316420]
    %355 = vrot.lane.b32.xlu0 %v351, 127
    %v356 = vpop.permute.xlu0 %355
    %357 = vrot.lane.b32.xlu0 %v352, 127
    %v358 = vpop.permute.xlu0 %357
    %v359 = vsel %vm159, %v356, %v358
    %v360 = vsel %vm159, %v358, %v356
    %v363 = vrot.slane %v360, 4
    %v364 = vsel %vm145, %v359, %v363
    %v366 = vmax.f32 %v348, %v364
    %367 = vst [vmem:[#allocation1] ss:$2 sm:$0xff] %v348
    %v368 = vld.sshfl [vmem:[#allocation1] sm:$0xff pattern:$0x75316420]
    %v369 = vld.sshfl [vmem:[#allocation1 + $0x8] sm:$0xff pattern:$0x75316420]
    %372 = vrot.lane.b32.xlu0 %v368, 126
    %v373 = vpop.permute.xlu0 %372
    %374 = vrot.lane.b32.xlu0 %v369, 126
    %v375 = vpop.permute.xlu0 %374
    %v376 = vsel %vm304, %v373, %v375
    %v377 = vsel %vm304, %v375, %v373
    %v380 = vrot.slane %v377, 4
    %v381 = vsel %vm145, %v376, %v380
    %v383 = vmax.f32 %v366, %v381
    %v384 = vmul.f32 %v383, %v168
    %v385 = vmul.f32 %v383, %v170
    %v387 = vrot.slane %v385, 5
    %v388 = vrot.slane %v387, 4
    %v390 = vadd.f32 %v384, %v388
    %v391 = vmul.f32 %v383, %v177
    %v393 = vrot.slane %v391, 6
    %v394 = vrot.slane %v393, 4
    %v396 = vadd.f32 %v390, %v394
    %v397 = vmul.f32 %v383, %v184
    %v399 = vrot.slane %v397, 7
    %v400 = vrot.slane %v399, 4
    %v402 = vadd.f32 %v396, %v400
    %v404 = vperm.slane %v331, 0
    %v405 = vperm.slane %v331, 4
    %v409 = vperm.slane %v402, 0
    %v410 = vperm.slane %v402, 4
    %v413 = vsel %vm256, %v404, %v409
    %v414 = vsel %vm256, %v405, %v410
    %415 = vst [vmem:[#allocation1] ss:$2 sm:$0xff] %v124
    %v416 = vld.sshfl [vmem:[#allocation1] sm:$0xff pattern:$0x75316420]
    %v417 = vld.sshfl [vmem:[#allocation1 + $0x8] sm:$0xff pattern:$0x75316420]
    %420 = vrot.lane.b32.xlu0 %v416, 80
    %v421 = vpop.permute.xlu0 %420
    %422 = vrot.lane.b32.xlu0 %v417, 80
    %v423 = vpop.permute.xlu0 %422
    %vm424 = vcmp.lt.s32.totalorder %v138, 80
    %v425 = vsel %vm424, %v421, %v423
    %v426 = vsel %vm424, %v423, %v421
    %v429 = vrot.slane %v426, 4
    %v430 = vsel %vm145, %v425, %v429
    %v432 = vmax.f32 %v276, %v430
    %433 = vst [vmem:[#allocation1] ss:$2 sm:$0xff] %v124
    %v434 = vld.sshfl [vmem:[#allocation1] sm:$0xff pattern:$0x75316420]
    %v435 = vld.sshfl [vmem:[#allocation1 + $0x8] sm:$0xff pattern:$0x75316420]
    %438 = vrot.lane.b32.xlu0 %v434, 64
    %v439 = vpop.permute.xlu0 %438
    %440 = vrot.lane.b32.xlu0 %v435, 64
    %v441 = vpop.permute.xlu0 %440
    %vm442 = vcmp.lt.s32.totalorder %v138, 64
    %v443 = vsel %vm442, %v439, %v441
    %v444 = vsel %vm442, %v441, %v439
    %v447 = vrot.slane %v444, 4
    %v448 = vsel %vm145, %v443, %v447
    %v450 = vmax.f32 %v432, %v448
    %452 = vst [vmem:[#allocation1] ss:$2 sm:$0xff] %v450
    %v453 = vld.sshfl [vmem:[#allocation1] sm:$0xff pattern:$0x75316420]
    %v454 = vld.sshfl [vmem:[#allocation1 + $0x8] sm:$0xff pattern:$0x75316420]
    %457 = vrot.lane.b32.xlu0 %v453, 127
    %v458 = vpop.permute.xlu0 %457
    %459 = vrot.lane.b32.xlu0 %v454, 127
    %v460 = vpop.permute.xlu0 %459
    %v461 = vsel %vm159, %v458, %v460
    %v462 = vsel %vm159, %v460, %v458
    %v465 = vrot.slane %v462, 4
    %v466 = vsel %vm145, %v461, %v465
    %v468 = vmax.f32 %v450, %v466
    %469 = vst [vmem:[#allocation1] ss:$2 sm:$0xff] %v450
    %v470 = vld.sshfl [vmem:[#allocation1] sm:$0xff pattern:$0x75316420]
    %v471 = vld.sshfl [vmem:[#allocation1 + $0x8] sm:$0xff pattern:$0x75316420]
    %474 = vrot.lane.b32.xlu0 %v470, 126
    %v475 = vpop.permute.xlu0 %474
    %476 = vrot.lane.b32.xlu0 %v471, 126
    %v477 = vpop.permute.xlu0 %476
    %v478 = vsel %vm304, %v475, %v477
    %v479 = vsel %vm304, %v477, %v475
    %v482 = vrot.slane %v479, 4
    %v483 = vsel %vm145, %v478, %v482
    %v485 = vmax.f32 %v468, %v483
    %486 = vst [vmem:[#allocation1] ss:$2 sm:$0xff] %v450
    %v487 = vld.sshfl [vmem:[#allocation1] sm:$0xff pattern:$0x75316420]
    %v488 = vld.sshfl [vmem:[#allocation1 + $0x8] sm:$0xff pattern:$0x75316420]
    %491 = vrot.lane.b32.xlu0 %v487, 125
    %v492 = vpop.permute.xlu0 %491
    %493 = vrot.lane.b32.xlu0 %v488, 125
    %v494 = vpop.permute.xlu0 %493
    %vm495 = vcmp.lt.s32.totalorder %v138, 125
    %v496 = vsel %vm495, %v492, %v494
    %v497 = vsel %vm495, %v494, %v492
    %v500 = vrot.slane %v497, 4
    %v501 = vsel %vm145, %v496, %v500
    %v503 = vmax.f32 %v485, %v501
    %504 = vst [vmem:[#allocation1] ss:$2 sm:$0xff] %v450
    %v505 = vld.sshfl [vmem:[#allocation1] sm:$0xff pattern:$0x75316420]
    %v506 = vld.sshfl [vmem:[#allocation1 + $0x8] sm:$0xff pattern:$0x75316420]
    %509 = vrot.lane.b32.xlu0 %v505, 124
    %v510 = vpop.permute.xlu0 %509
    %511 = vrot.lane.b32.xlu0 %v506, 124
    %v512 = vpop.permute.xlu0 %511
    %vm513 = vcmp.lt.s32.totalorder %v138, 124
    %v514 = vsel %vm513, %v510, %v512
    %v515 = vsel %vm513, %v512, %v510
    %v518 = vrot.slane %v515, 4
    %v519 = vsel %vm145, %v514, %v518
    %v521 = vmax.f32 %v503, %v519
    %v522 = vmul.f32 %v521, %v168
    %v523 = vmul.f32 %v521, %v170
    %v525 = vrot.slane %v523, 5
    %v526 = vrot.slane %v525, 4
    %v528 = vadd.f32 %v522, %v526
    %v529 = vmul.f32 %v521, %v177
    %v531 = vrot.slane %v529, 6
    %v532 = vrot.slane %v531, 4
    %v534 = vadd.f32 %v528, %v532
    %v535 = vmul.f32 %v521, %v184
    %v537 = vrot.slane %v535, 7
    %v538 = vrot.slane %v537, 4
    %v540 = vadd.f32 %v534, %v538
    %541 = vst [vmem:[#allocation1] ss:$2 sm:$0xff] %v126
    %v542 = vld.sshfl [vmem:[#allocation1] sm:$0xff pattern:$0x75316420]
    %v543 = vld.sshfl [vmem:[#allocation1 + $0x8] sm:$0xff pattern:$0x75316420]
    %546 = vrot.lane.b32.xlu0 %v542, 80
    %v547 = vpop.permute.xlu0 %546
    %548 = vrot.lane.b32.xlu0 %v543, 80
    %v549 = vpop.permute.xlu0 %548
    %v550 = vsel %vm424, %v547, %v549
    %v551 = vsel %vm424, %v549, %v547
    %v554 = vrot.slane %v551, 4
    %v555 = vsel %vm145, %v550, %v554
    %v557 = vmax.f32 %v348, %v555
    %558 = vst [vmem:[#allocation1] ss:$2 sm:$0xff] %v126
    %v559 = vld.sshfl [vmem:[#allocation1] sm:$0xff pattern:$0x75316420]
    %v560 = vld.sshfl [vmem:[#allocation1 + $0x8] sm:$0xff pattern:$0x75316420]
    %563 = vrot.lane.b32.xlu0 %v559, 64
    %v564 = vpop.permute.xlu0 %563
    %565 = vrot.lane.b32.xlu0 %v560, 64
    %v566 = vpop.permute.xlu0 %565
    %v567 = vsel %vm442, %v564, %v566
    %v568 = vsel %vm442, %v566, %v564
    %v571 = vrot.slane %v568, 4
    %v572 = vsel %vm145, %v567, %v571
    %v574 = vmax.f32 %v557, %v572
    %576 = vst [vmem:[#allocation1] ss:$2 sm:$0xff] %v574
    %v577 = vld.sshfl [vmem:[#allocation1] sm:$0xff pattern:$0x75316420]
    %v578 = vld.sshfl [vmem:[#allocation1 + $0x8] sm:$0xff pattern:$0x75316420]
    %581 = vrot.lane.b32.xlu0 %v577, 127
    %v582 = vpop.permute.xlu0 %581
    %583 = vrot.lane.b32.xlu0 %v578, 127
    %v584 = vpop.permute.xlu0 %583
    %v585 = vsel %vm159, %v582, %v584
    %v586 = vsel %vm159, %v584, %v582
    %v589 = vrot.slane %v586, 4
    %v590 = vsel %vm145, %v585, %v589
    %v592 = vmax.f32 %v574, %v590
    %593 = vst [vmem:[#allocation1] ss:$2 sm:$0xff] %v574
    %v594 = vld.sshfl [vmem:[#allocation1] sm:$0xff pattern:$0x75316420]
    %v595 = vld.sshfl [vmem:[#allocation1 + $0x8] sm:$0xff pattern:$0x75316420]
    %598 = vrot.lane.b32.xlu0 %v594, 126
    %v599 = vpop.permute.xlu0 %598
    %600 = vrot.lane.b32.xlu0 %v595, 126
    %v601 = vpop.permute.xlu0 %600
    %v602 = vsel %vm304, %v599, %v601
    %v603 = vsel %vm304, %v601, %v599
    %v606 = vrot.slane %v603, 4
    %v607 = vsel %vm145, %v602, %v606
    %v609 = vmax.f32 %v592, %v607
    %610 = vst [vmem:[#allocation1] ss:$2 sm:$0xff] %v574
    %v611 = vld.sshfl [vmem:[#allocation1] sm:$0xff pattern:$0x75316420]
    %v612 = vld.sshfl [vmem:[#allocation1 + $0x8] sm:$0xff pattern:$0x75316420]
    %615 = vrot.lane.b32.xlu0 %v611, 125
    %v616 = vpop.permute.xlu0 %615
    %617 = vrot.lane.b32.xlu0 %v612, 125
    %v618 = vpop.permute.xlu0 %617
    %v619 = vsel %vm495, %v616, %v618
    %v620 = vsel %vm495, %v618, %v616
    %v623 = vrot.slane %v620, 4
    %v624 = vsel %vm145, %v619, %v623
    %v626 = vmax.f32 %v609, %v624
    %627 = vst [vmem:[#allocation1] ss:$2 sm:$0xff] %v574
    %v628 = vld.sshfl [vmem:[#allocation1] sm:$0xff pattern:$0x75316420]
    %v629 = vld.sshfl [vmem:[#allocation1 + $0x8] sm:$0xff pattern:$0x75316420]
    %632 = vrot.lane.b32.xlu0 %v628, 124
    %v633 = vpop.permute.xlu0 %632
    %634 = vrot.lane.b32.xlu0 %v629, 124
    %v635 = vpop.permute.xlu0 %634
    %v636 = vsel %vm513, %v633, %v635
    %v637 = vsel %vm513, %v635, %v633
    %v640 = vrot.slane %v637, 4
    %v641 = vsel %vm145, %v636, %v640
    %v643 = vmax.f32 %v626, %v641
    %v644 = vmul.f32 %v643, %v168
    %v645 = vmul.f32 %v643, %v170
    %v647 = vrot.slane %v645, 5
    %v648 = vrot.slane %v647, 4
    %v650 = vadd.f32 %v644, %v648
    %v651 = vmul.f32 %v643, %v177
    %v653 = vrot.slane %v651, 6
    %v654 = vrot.slane %v653, 4
    %v656 = vadd.f32 %v650, %v654
    %v657 = vmul.f32 %v643, %v184
    %v659 = vrot.slane %v657, 7
    %v660 = vrot.slane %v659, 4
    %v662 = vadd.f32 %v656, %v660
    %v664 = vperm.slane %v540, 0
    %v665 = vperm.slane %v540, 4
    %v669 = vperm.slane %v662, 0
    %v670 = vperm.slane %v662, 4
    %v673 = vsel %vm256, %v664, %v669
    %v674 = vsel %vm256, %v665, %v670
    %675 = vst [vmem:[#allocation1] ss:$2 sm:$0xff] %v124
    %v676 = vld.sshfl [vmem:[#allocation1] sm:$0xff pattern:$0x75316420]
    %v677 = vld.sshfl [vmem:[#allocation1 + $0x8] sm:$0xff pattern:$0x75316420]
    %680 = vrot.lane.b32.xlu0 %v676, 48
    %v681 = vpop.permute.xlu0 %680
    %682 = vrot.lane.b32.xlu0 %v677, 48
    %v683 = vpop.permute.xlu0 %682
    %vm684 = vcmp.lt.s32.totalorder %v138, 48
    %v685 = vsel %vm684, %v681, %v683
    %v686 = vsel %vm684, %v683, %v681
    %v689 = vrot.slane %v686, 4
    %v690 = vsel %vm145, %v685, %v689
    %v692 = vmax.f32 %v450, %v690
    %694 = vst [vmem:[#allocation1] ss:$2 sm:$0xff] %v692
    %v695 = vld.sshfl [vmem:[#allocation1] sm:$0xff pattern:$0x75316420]
    %v696 = vld.sshfl [vmem:[#allocation1 + $0x8] sm:$0xff pattern:$0x75316420]
    %699 = vrot.lane.b32.xlu0 %v695, 127
    %v700 = vpop.permute.xlu0 %699
    %701 = vrot.lane.b32.xlu0 %v696, 127
    %v702 = vpop.permute.xlu0 %701
    %v703 = vsel %vm159, %v700, %v702
    %v704 = vsel %vm159, %v702, %v700
    %v707 = vrot.slane %v704, 4
    %v708 = vsel %vm145, %v703, %v707
    %v710 = vmax.f32 %v692, %v708
    %711 = vst [vmem:[#allocation1] ss:$2 sm:$0xff] %v692
    %v712 = vld.sshfl [vmem:[#allocation1] sm:$0xff pattern:$0x75316420]
    %v713 = vld.sshfl [vmem:[#allocation1 + $0x8] sm:$0xff pattern:$0x75316420]
    %716 = vrot.lane.b32.xlu0 %v712, 126
    %v717 = vpop.permute.xlu0 %716
    %718 = vrot.lane.b32.xlu0 %v713, 126
    %v719 = vpop.permute.xlu0 %718
    %v720 = vsel %vm304, %v717, %v719
    %v721 = vsel %vm304, %v719, %v717
    %v724 = vrot.slane %v721, 4
    %v725 = vsel %vm145, %v720, %v724
    %v727 = vmax.f32 %v710, %v725
    %728 = vst [vmem:[#allocation1] ss:$2 sm:$0xff] %v692
    %v729 = vld.sshfl [vmem:[#allocation1] sm:$0xff pattern:$0x75316420]
    %v730 = vld.sshfl [vmem:[#allocation1 + $0x8] sm:$0xff pattern:$0x75316420]
    %733 = vrot.lane.b32.xlu0 %v729, 125
    %v734 = vpop.permute.xlu0 %733
    %735 = vrot.lane.b32.xlu0 %v730, 125
    %v736 = vpop.permute.xlu0 %735
    %v737 = vsel %vm495, %v734, %v736
    %v738 = vsel %vm495, %v736, %v734
    %v741 = vrot.slane %v738, 4
    %v742 = vsel %vm145, %v737, %v741
    %v744 = vmax.f32 %v727, %v742
    %745 = vst [vmem:[#allocation1] ss:$2 sm:$0xff] %v692
    %v746 = vld.sshfl [vmem:[#allocation1] sm:$0xff pattern:$0x75316420]
    %v747 = vld.sshfl [vmem:[#allocation1 + $0x8] sm:$0xff pattern:$0x75316420]
    %750 = vrot.lane.b32.xlu0 %v746, 124
    %v751 = vpop.permute.xlu0 %750
    %752 = vrot.lane.b32.xlu0 %v747, 124
    %v753 = vpop.permute.xlu0 %752
    %v754 = vsel %vm513, %v751, %v753
    %v755 = vsel %vm513, %v753, %v751
    %v758 = vrot.slane %v755, 4
    %v759 = vsel %vm145, %v754, %v758
    %v761 = vmax.f32 %v744, %v759
    %762 = vst [vmem:[#allocation1] ss:$2 sm:$0xff] %v692
    %v763 = vld.sshfl [vmem:[#allocation1] sm:$0xff pattern:$0x75316420]
    %v764 = vld.sshfl [vmem:[#allocation1 + $0x8] sm:$0xff pattern:$0x75316420]
    %767 = vrot.lane.b32.xlu0 %v763, 123
    %v768 = vpop.permute.xlu0 %767
    %769 = vrot.lane.b32.xlu0 %v764, 123
    %v770 = vpop.permute.xlu0 %769
    %vm771 = vcmp.lt.s32.totalorder %v138, 123
    %v772 = vsel %vm771, %v768, %v770
    %v773 = vsel %vm771, %v770, %v768
    %v776 = vrot.slane %v773, 4
    %v777 = vsel %vm145, %v772, %v776
    %v779 = vmax.f32 %v761, %v777
    %v780 = vmul.f32 %v779, %v168
    %v781 = vmul.f32 %v779, %v170
    %v783 = vrot.slane %v781, 5
    %v784 = vrot.slane %v783, 4
    %v786 = vadd.f32 %v780, %v784
    %v787 = vmul.f32 %v779, %v177
    %v789 = vrot.slane %v787, 6
    %v790 = vrot.slane %v789, 4
    %v792 = vadd.f32 %v786, %v790
    %v793 = vmul.f32 %v779, %v184
    %v795 = vrot.slane %v793, 7
    %v796 = vrot.slane %v795, 4
    %v798 = vadd.f32 %v792, %v796
    %799 = vst [vmem:[#allocation1] ss:$2 sm:$0xff] %v126
    %v800 = vld.sshfl [vmem:[#allocation1] sm:$0xff pattern:$0x75316420]
    %v801 = vld.sshfl [vmem:[#allocation1 + $0x8] sm:$0xff pattern:$0x75316420]
    %804 = vrot.lane.b32.xlu0 %v800, 48
    %v805 = vpop.permute.xlu0 %804
    %806 = vrot.lane.b32.xlu0 %v801, 48
    %v807 = vpop.permute.xlu0 %806
    %v808 = vsel %vm684, %v805, %v807
    %v809 = vsel %vm684, %v807, %v805
    %v812 = vrot.slane %v809, 4
    %v813 = vsel %vm145, %v808, %v812
    %v815 = vmax.f32 %v574, %v813
    %817 = vst [vmem:[#allocation1] ss:$2 sm:$0xff] %v815
    %v818 = vld.sshfl [vmem:[#allocation1] sm:$0xff pattern:$0x75316420]
    %v819 = vld.sshfl [vmem:[#allocation1 + $0x8] sm:$0xff pattern:$0x75316420]
    %822 = vrot.lane.b32.xlu0 %v818, 127
    %v823 = vpop.permute.xlu0 %822
    %824 = vrot.lane.b32.xlu0 %v819, 127
    %v825 = vpop.permute.xlu0 %824
    %v826 = vsel %vm159, %v823, %v825
    %v827 = vsel %vm159, %v825, %v823
    %v830 = vrot.slane %v827, 4
    %v831 = vsel %vm145, %v826, %v830
    %v833 = vmax.f32 %v815, %v831
    %834 = vst [vmem:[#allocation1] ss:$2 sm:$0xff] %v815
    %v835 = vld.sshfl [vmem:[#allocation1] sm:$0xff pattern:$0x75316420]
    %v836 = vld.sshfl [vmem:[#allocation1 + $0x8] sm:$0xff pattern:$0x75316420]
    %839 = vrot.lane.b32.xlu0 %v835, 126
    %v840 = vpop.permute.xlu0 %839
    %841 = vrot.lane.b32.xlu0 %v836, 126
    %v842 = vpop.permute.xlu0 %841
    %v843 = vsel %vm304, %v840, %v842
    %v844 = vsel %vm304, %v842, %v840
    %v847 = vrot.slane %v844, 4
    %v848 = vsel %vm145, %v843, %v847
    %v850 = vmax.f32 %v833, %v848
    %851 = vst [vmem:[#allocation1] ss:$2 sm:$0xff] %v815
    %v852 = vld.sshfl [vmem:[#allocation1] sm:$0xff pattern:$0x75316420]
    %v853 = vld.sshfl [vmem:[#allocation1 + $0x8] sm:$0xff pattern:$0x75316420]
    %856 = vrot.lane.b32.xlu0 %v852, 125
    %v857 = vpop.permute.xlu0 %856
    %858 = vrot.lane.b32.xlu0 %v853, 125
    %v859 = vpop.permute.xlu0 %858
    %v860 = vsel %vm495, %v857, %v859
    %v861 = vsel %vm495, %v859, %v857
    %v864 = vrot.slane %v861, 4
    %v865 = vsel %vm145, %v860, %v864
    %v867 = vmax.f32 %v850, %v865
    %868 = vst [vmem:[#allocation1] ss:$2 sm:$0xff] %v815
    %v869 = vld.sshfl [vmem:[#allocation1] sm:$0xff pattern:$0x75316420]
    %v870 = vld.sshfl [vmem:[#allocation1 + $0x8] sm:$0xff pattern:$0x75316420]
    %873 = vrot.lane.b32.xlu0 %v869, 124
    %v874 = vpop.permute.xlu0 %873
    %875 = vrot.lane.b32.xlu0 %v870, 124
    %v876 = vpop.permute.xlu0 %875
    %v877 = vsel %vm513, %v874, %v876
    %v878 = vsel %vm513, %v876, %v874
    %v881 = vrot.slane %v878, 4
    %v882 = vsel %vm145, %v877, %v881
    %v884 = vmax.f32 %v867, %v882
    %885 = vst [vmem:[#allocation1] ss:$2 sm:$0xff] %v815
    %v886 = vld.sshfl [vmem:[#allocation1] sm:$0xff pattern:$0x75316420]
    %v887 = vld.sshfl [vmem:[#allocation1 + $0x8] sm:$0xff pattern:$0x75316420]
    %890 = vrot.lane.b32.xlu0 %v886, 123
    %v891 = vpop.permute.xlu0 %890
    %892 = vrot.lane.b32.xlu0 %v887, 123
    %v893 = vpop.permute.xlu0 %892
    %v894 = vsel %vm771, %v891, %v893
    %v895 = vsel %vm771, %v893, %v891
    %v898 = vrot.slane %v895, 4
    %v899 = vsel %vm145, %v894, %v898
    %v901 = vmax.f32 %v884, %v899
    %v902 = vmul.f32 %v901, %v168
    %v903 = vmul.f32 %v901, %v170
    %v905 = vrot.slane %v903, 5
    %v906 = vrot.slane %v905, 4
    %v908 = vadd.f32 %v902, %v906
    %v909 = vmul.f32 %v901, %v177
    %v911 = vrot.slane %v909, 6
    %v912 = vrot.slane %v911, 4
    %v914 = vadd.f32 %v908, %v912
    %v915 = vmul.f32 %v901, %v184
    %v917 = vrot.slane %v915, 7
    %v918 = vrot.slane %v917, 4
    %v920 = vadd.f32 %v914, %v918
    %v922 = vperm.slane %v798, 0
    %v923 = vperm.slane %v798, 4
    %v927 = vperm.slane %v920, 0
    %v928 = vperm.slane %v920, 4
    %v931 = vsel %vm256, %v922, %v927
    %v932 = vsel %vm256, %v923, %v928
    %v933 = vld [vmem:[#allocation8] sm:$0xff]
    %v934 = vld [vmem:[#allocation8 + $0x8] sm:$0xff]
    %v935 = vld [vmem:[#allocation8 + $0x10] sm:$0xff]
    %v936 = vld [vmem:[#allocation8 + $0x18] sm:$0xff]
    %v937 = vld [vmem:[#allocation8 + $0x20] sm:$0xff]
    %v938 = vld [vmem:[#allocation8 + $0x28] sm:$0xff]
    %v939 = vld [vmem:[#allocation8 + $0x30] sm:$0xff]
    %v940 = vld [vmem:[#allocation8 + $0x38] sm:$0xff]
    %v941 = vld [vmem:[#allocation8 + $0x40] sm:$0xff]
    %v942 = vld [vmem:[#allocation8 + $0x48] sm:$0xff]
    %v943 = vld [vmem:[#allocation8 + $0x50] sm:$0xff]
    %v944 = vld [vmem:[#allocation8 + $0x58] sm:$0xff]
    %v945 = vld [vmem:[#allocation8 + $0x60] sm:$0xff]
    %v946 = vld [vmem:[#allocation8 + $0x68] sm:$0xff]
    %v947 = vld [vmem:[#allocation8 + $0x70] sm:$0xff]
    %v948 = vld [vmem:[#allocation8 + $0x78] sm:$0xff]
    %v949 = vld [vmem:[#allocation8 + $0x80] sm:$0xff]
    %v950 = vld [vmem:[#allocation8 + $0x88] sm:$0xff]
    %v951 = vld [vmem:[#allocation8 + $0x90] sm:$0xff]
    %v952 = vld [vmem:[#allocation8 + $0x98] sm:$0xff]
    %v953 = vld [vmem:[#allocation8 + $0xa0] sm:$0xff]
    %v954 = vld [vmem:[#allocation8 + $0xa8] sm:$0xff]
    %v955 = vld [vmem:[#allocation8 + $0xb0] sm:$0xff]
    %v956 = vld [vmem:[#allocation8 + $0xb8] sm:$0xff]
    %v957 = vld [vmem:[#allocation8 + $0xc0] sm:$0xff]
    %v958 = vld [vmem:[#allocation8 + $0xc8] sm:$0xff]
    %v959 = vld [vmem:[#allocation8 + $0xd0] sm:$0xff]
    %v960 = vld [vmem:[#allocation8 + $0xd8] sm:$0xff]
    %v961 = vld [vmem:[#allocation8 + $0xe0] sm:$0xff]
    %v962 = vld [vmem:[#allocation8 + $0xe8] sm:$0xff]
    %v963 = vld [vmem:[#allocation8 + $0xf0] sm:$0xff]
    %v964 = vld [vmem:[#allocation8 + $0xf8] sm:$0xff]
    %v965 = vld [vmem:[#allocation8 + $0x100] sm:$0xff]
    %v966 = vld [vmem:[#allocation8 + $0x108] sm:$0xff]
    %v967 = vld [vmem:[#allocation8 + $0x110] sm:$0xff]
    %v968 = vld [vmem:[#allocation8 + $0x118] sm:$0xff]
    %v969 = vld [vmem:[#allocation8 + $0x120] sm:$0xff]
    %v970 = vld [vmem:[#allocation8 + $0x128] sm:$0xff]
    %v971 = vld [vmem:[#allocation8 + $0x130] sm:$0xff]
    %v972 = vld [vmem:[#allocation8 + $0x138] sm:$0xff]
    %v973 = vld [vmem:[#allocation8 + $0x140] sm:$0xff]
    %v974 = vld [vmem:[#allocation8 + $0x148] sm:$0xff]
    %v975 = vld [vmem:[#allocation8 + $0x150] sm:$0xff]
    %v976 = vld [vmem:[#allocation8 + $0x158] sm:$0xff]
    %v977 = vld [vmem:[#allocation8 + $0x160] sm:$0xff]
    %v978 = vld [vmem:[#allocation8 + $0x168] sm:$0xff]
    %v979 = vld [vmem:[#allocation8 + $0x170] sm:$0xff]
    %v980 = vld [vmem:[#allocation8 + $0x178] sm:$0xff]
    %v981 = vld [vmem:[#allocation8 + $0x180] sm:$0xff]
    %v982 = vld [vmem:[#allocation8 + $0x188] sm:$0xff]
    %v983 = vld [vmem:[#allocation8 + $0x190] sm:$0xff]
    %v984 = vld [vmem:[#allocation8 + $0x198] sm:$0xff]
    %v985 = vld [vmem:[#allocation8 + $0x1a0] sm:$0xff]
    %v986 = vld [vmem:[#allocation8 + $0x1a8] sm:$0xff]
    %v987 = vld [vmem:[#allocation8 + $0x1b0] sm:$0xff]
    %v988 = vld [vmem:[#allocation8 + $0x1b8] sm:$0xff]
    %v989 = vld [vmem:[#allocation8 + $0x1c0] sm:$0xff]
    %v990 = vld [vmem:[#allocation8 + $0x1c8] sm:$0xff]
    %v991 = vld [vmem:[#allocation8 + $0x1d0] sm:$0xff]
    %v992 = vld [vmem:[#allocation8 + $0x1d8] sm:$0xff]
    %v993 = vld [vmem:[#allocation8 + $0x1e0] sm:$0xff]
    %v994 = vld [vmem:[#allocation8 + $0x1e8] sm:$0xff]
    %v995 = vld [vmem:[#allocation8 + $0x1f0] sm:$0xff]
    %v996 = vld [vmem:[#allocation8 + $0x1f8] sm:$0xff]
    %v997 = vstv %s123
    %998 = vmatpush.msra.mxu0 %v963
    %999 = vmatpush.msra.mxu0 %v961
    %1000 = vmatpush.msra.mxu0 %v959
    %1001 = vmatpush.msra.mxu0 %v957
    %1002 = vmatpush.msra.mxu0 %v955
    %1003 = vmatpush.msra.mxu0 %v953
    %1004 = vmatpush.msra.mxu0 %v951
    %1005 = vmatpush.msra.mxu0 %v949
    %1006 = vmatpush.msra.mxu0 %v947
    %1007 = vmatpush.msra.mxu0 %v945
    %1008 = vmatpush.msra.mxu0 %v943
    %1009 = vmatpush.msra.mxu0 %v941
    %1010 = vmatpush.msra.mxu0 %v939
    %1011 = vmatpush.msra.mxu0 %v937
    %1012 = vmatpush.msra.mxu0 %v935
    %1013 = vmatpush.msra.mxu0 %v933
    %1014 = vmatmul.f32.gmra.mxu0 %v257
    %v1015 = vpop.f32.mrf.mxu0
    %v1016 = vadd.f32 %v997, %v1015
    %1017 = vdwg.mxu0
    %1018 = vmatpush.msra.mxu0 %v995
    %1019 = vmatpush.msra.mxu0 %v993
    %1020 = vmatpush.msra.mxu0 %v991
    %1021 = vmatpush.msra.mxu0 %v989
    %1022 = vmatpush.msra.mxu0 %v987
    %1023 = vmatpush.msra.mxu0 %v985
    %1024 = vmatpush.msra.mxu0 %v983
    %1025 = vmatpush.msra.mxu0 %v981
    %1026 = vmatpush.msra.mxu0 %v979
    %1027 = vmatpush.msra.mxu0 %v977
    %1028 = vmatpush.msra.mxu0 %v975
    %1029 = vmatpush.msra.mxu0 %v973
    %1030 = vmatpush.msra.mxu0 %v971
    %1031 = vmatpush.msra.mxu0 %v969
    %1032 = vmatpush.msra.mxu0 %v967
    %1033 = vmatpush.msra.mxu0 %v965
    %1034 = vmatmul.f32.gmra.mxu0 %v258
    %v1035 = vpop.f32.mrf.mxu0
    %v1036 = vadd.f32 %v1016, %v1035
    %1037 = vdwg.mxu0
    %1038 = vmatpush.msra.mxu0 %v964
    %1039 = vmatpush.msra.mxu0 %v962
    %1040 = vmatpush.msra.mxu0 %v960
    %1041 = vmatpush.msra.mxu0 %v958
    %1042 = vmatpush.msra.mxu0 %v956
    %1043 = vmatpush.msra.mxu0 %v954
    %1044 = vmatpush.msra.mxu0 %v952
    %1045 = vmatpush.msra.mxu0 %v950
    %1046 = vmatpush.msra.mxu0 %v948
    %1047 = vmatpush.msra.mxu0 %v946
    %1048 = vmatpush.msra.mxu0 %v944
    %1049 = vmatpush.msra.mxu0 %v942
    %1050 = vmatpush.msra.mxu0 %v940
    %1051 = vmatpush.msra.mxu0 %v938
    %1052 = vmatpush.msra.mxu0 %v936
    %1053 = vmatpush.msra.mxu0 %v934
    %1054 = vmatmul.f32.gmra.mxu0 %v257
    %v1055 = vpop.f32.mrf.mxu0
    %v1056 = vadd.f32 %v997, %v1055
    %1057 = vdwg.mxu0
    %1058 = vmatpush.msra.mxu0 %v996
    %1059 = vmatpush.msra.mxu0 %v994
    %1060 = vmatpush.msra.mxu0 %v992
    %1061 = vmatpush.msra.mxu0 %v990
    %1062 = vmatpush.msra.mxu0 %v988
    %1063 = vmatpush.msra.mxu0 %v986
    %1064 = vmatpush.msra.mxu0 %v984
    %1065 = vmatpush.msra.mxu0 %v982
    %1066 = vmatpush.msra.mxu0 %v980
    %1067 = vmatpush.msra.mxu0 %v978
    %1068 = vmatpush.msra.mxu0 %v976
    %1069 = vmatpush.msra.mxu0 %v974
    %1070 = vmatpush.msra.mxu0 %v972
    %1071 = vmatpush.msra.mxu0 %v970
    %1072 = vmatpush.msra.mxu0 %v968
    %1073 = vmatpush.msra.mxu0 %v966
    %1074 = vmatmul.f32.gmra.mxu0 %v258
    %v1075 = vpop.f32.mrf.mxu0
    %v1076 = vadd.f32 %v1056, %v1075
    %1077 = vdwg.mxu0
    %v1078 = vld [vmem:[#allocation10] sm:$0xff]
    %v1079 = vld [vmem:[#allocation10 + $0x8] sm:$0xff]
    %v1080 = vld [vmem:[#allocation10 + $0x10] sm:$0xff]
    %v1081 = vld [vmem:[#allocation10 + $0x18] sm:$0xff]
    %v1082 = vld [vmem:[#allocation10 + $0x20] sm:$0xff]
    %v1083 = vld [vmem:[#allocation10 + $0x28] sm:$0xff]
    %v1084 = vld [vmem:[#allocation10 + $0x30] sm:$0xff]
    %v1085 = vld [vmem:[#allocation10 + $0x38] sm:$0xff]
    %v1086 = vld [vmem:[#allocation10 + $0x40] sm:$0xff]
    %v1087 = vld [vmem:[#allocation10 + $0x48] sm:$0xff]
    %v1088 = vld [vmem:[#allocation10 + $0x50] sm:$0xff]
    %v1089 = vld [vmem:[#allocation10 + $0x58] sm:$0xff]
    %v1090 = vld [vmem:[#allocation10 + $0x60] sm:$0xff]
    %v1091 = vld [vmem:[#allocation10 + $0x68] sm:$0xff]
    %v1092 = vld [vmem:[#allocation10 + $0x70] sm:$0xff]
    %v1093 = vld [vmem:[#allocation10 + $0x78] sm:$0xff]
    %v1094 = vld [vmem:[#allocation10 + $0x80] sm:$0xff]
    %v1095 = vld [vmem:[#allocation10 + $0x88] sm:$0xff]
    %v1096 = vld [vmem:[#allocation10 + $0x90] sm:$0xff]
    %v1097 = vld [vmem:[#allocation10 + $0x98] sm:$0xff]
    %v1098 = vld [vmem:[#allocation10 + $0xa0] sm:$0xff]
    %v1099 = vld [vmem:[#allocation10 + $0xa8] sm:$0xff]
    %v1100 = vld [vmem:[#allocation10 + $0xb0] sm:$0xff]
    %v1101 = vld [vmem:[#allocation10 + $0xb8] sm:$0xff]
    %v1102 = vld [vmem:[#allocation10 + $0xc0] sm:$0xff]
    %v1103 = vld [vmem:[#allocation10 + $0xc8] sm:$0xff]
    %v1104 = vld [vmem:[#allocation10 + $0xd0] sm:$0xff]
    %v1105 = vld [vmem:[#allocation10 + $0xd8] sm:$0xff]
    %v1106 = vld [vmem:[#allocation10 + $0xe0] sm:$0xff]
    %v1107 = vld [vmem:[#allocation10 + $0xe8] sm:$0xff]
    %v1108 = vld [vmem:[#allocation10 + $0xf0] sm:$0xff]
    %v1109 = vld [vmem:[#allocation10 + $0xf8] sm:$0xff]
    %v1110 = vld [vmem:[#allocation10 + $0x100] sm:$0xff]
    %v1111 = vld [vmem:[#allocation10 + $0x108] sm:$0xff]
    %v1112 = vld [vmem:[#allocation10 + $0x110] sm:$0xff]
    %v1113 = vld [vmem:[#allocation10 + $0x118] sm:$0xff]
    %v1114 = vld [vmem:[#allocation10 + $0x120] sm:$0xff]
    %v1115 = vld [vmem:[#allocation10 + $0x128] sm:$0xff]
    %v1116 = vld [vmem:[#allocation10 + $0x130] sm:$0xff]
    %v1117 = vld [vmem:[#allocation10 + $0x138] sm:$0xff]
    %v1118 = vld [vmem:[#allocation10 + $0x140] sm:$0xff]
    %v1119 = vld [vmem:[#allocation10 + $0x148] sm:$0xff]
    %v1120 = vld [vmem:[#allocation10 + $0x150] sm:$0xff]
    %v1121 = vld [vmem:[#allocation10 + $0x158] sm:$0xff]
    %v1122 = vld [vmem:[#allocation10 + $0x160] sm:$0xff]
    %v1123 = vld [vmem:[#allocation10 + $0x168] sm:$0xff]
    %v1124 = vld [vmem:[#allocation10 + $0x170] sm:$0xff]
    %v1125 = vld [vmem:[#allocation10 + $0x178] sm:$0xff]
    %v1126 = vld [vmem:[#allocation10 + $0x180] sm:$0xff]
    %v1127 = vld [vmem:[#allocation10 + $0x188] sm:$0xff]
    %v1128 = vld [vmem:[#allocation10 + $0x190] sm:$0xff]
    %v1129 = vld [vmem:[#allocation10 + $0x198] sm:$0xff]
    %v1130 = vld [vmem:[#allocation10 + $0x1a0] sm:$0xff]
    %v1131 = vld [vmem:[#allocation10 + $0x1a8] sm:$0xff]
    %v1132 = vld [vmem:[#allocation10 + $0x1b0] sm:$0xff]
    %v1133 = vld [vmem:[#allocation10 + $0x1b8] sm:$0xff]
    %v1134 = vld [vmem:[#allocation10 + $0x1c0] sm:$0xff]
    %v1135 = vld [vmem:[#allocation10 + $0x1c8] sm:$0xff]
    %v1136 = vld [vmem:[#allocation10 + $0x1d0] sm:$0xff]
    %v1137 = vld [vmem:[#allocation10 + $0x1d8] sm:$0xff]
    %v1138 = vld [vmem:[#allocation10 + $0x1e0] sm:$0xff]
    %v1139 = vld [vmem:[#allocation10 + $0x1e8] sm:$0xff]
    %v1140 = vld [vmem:[#allocation10 + $0x1f0] sm:$0xff]
    %v1141 = vld [vmem:[#allocation10 + $0x1f8] sm:$0xff]
    %1142 = vmatpush.msra.mxu0 %v1108
    %1143 = vmatpush.msra.mxu0 %v1106
    %1144 = vmatpush.msra.mxu0 %v1104
    %1145 = vmatpush.msra.mxu0 %v1102
    %1146 = vmatpush.msra.mxu0 %v1100
    %1147 = vmatpush.msra.mxu0 %v1098
    %1148 = vmatpush.msra.mxu0 %v1096
    %1149 = vmatpush.msra.mxu0 %v1094
    %1150 = vmatpush.msra.mxu0 %v1092
    %1151 = vmatpush.msra.mxu0 %v1090
    %1152 = vmatpush.msra.mxu0 %v1088
    %1153 = vmatpush.msra.mxu0 %v1086
    %1154 = vmatpush.msra.mxu0 %v1084
    %1155 = vmatpush.msra.mxu0 %v1082
    %1156 = vmatpush.msra.mxu0 %v1080
    %1157 = vmatpush.msra.mxu0 %v1078
    %1158 = vmatmul.f32.gmra.mxu0 %v413
    %v1159 = vpop.f32.mrf.mxu0
    %v1160 = vadd.f32 %v997, %v1159
    %1161 = vdwg.mxu0
    %1162 = vmatpush.msra.mxu0 %v1140
    %1163 = vmatpush.msra.mxu0 %v1138
    %1164 = vmatpush.msra.mxu0 %v1136
    %1165 = vmatpush.msra.mxu0 %v1134
    %1166 = vmatpush.msra.mxu0 %v1132
    %1167 = vmatpush.msra.mxu0 %v1130
    %1168 = vmatpush.msra.mxu0 %v1128
    %1169 = vmatpush.msra.mxu0 %v1126
    %1170 = vmatpush.msra.mxu0 %v1124
    %1171 = vmatpush.msra.mxu0 %v1122
    %1172 = vmatpush.msra.mxu0 %v1120
    %1173 = vmatpush.msra.mxu0 %v1118
    %1174 = vmatpush.msra.mxu0 %v1116
    %1175 = vmatpush.msra.mxu0 %v1114
    %1176 = vmatpush.msra.mxu0 %v1112
    %1177 = vmatpush.msra.mxu0 %v1110
    %1178 = vmatmul.f32.gmra.mxu0 %v414
    %v1179 = vpop.f32.mrf.mxu0
    %v1180 = vadd.f32 %v1160, %v1179
    %1181 = vdwg.mxu0
    %1182 = vmatpush.msra.mxu0 %v1109
    %1183 = vmatpush.msra.mxu0 %v1107
    %1184 = vmatpush.msra.mxu0 %v1105
    %1185 = vmatpush.msra.mxu0 %v1103
    %1186 = vmatpush.msra.mxu0 %v1101
    %1187 = vmatpush.msra.mxu0 %v1099
    %1188 = vmatpush.msra.mxu0 %v1097
    %1189 = vmatpush.msra.mxu0 %v1095
    %1190 = vmatpush.msra.mxu0 %v1093
    %1191 = vmatpush.msra.mxu0 %v1091
    %1192 = vmatpush.msra.mxu0 %v1089
    %1193 = vmatpush.msra.mxu0 %v1087
    %1194 = vmatpush.msra.mxu0 %v1085
    %1195 = vmatpush.msra.mxu0 %v1083
    %1196 = vmatpush.msra.mxu0 %v1081
    %1197 = vmatpush.msra.mxu0 %v1079
    %1198 = vmatmul.f32.gmra.mxu0 %v413
    %v1199 = vpop.f32.mrf.mxu0
    %v1200 = vadd.f32 %v997, %v1199
    %1201 = vdwg.mxu0
    %1202 = vmatpush.msra.mxu0 %v1141
    %1203 = vmatpush.msra.mxu0 %v1139
    %1204 = vmatpush.msra.mxu0 %v1137
    %1205 = vmatpush.msra.mxu0 %v1135
    %1206 = vmatpush.msra.mxu0 %v1133
    %1207 = vmatpush.msra.mxu0 %v1131
    %1208 = vmatpush.msra.mxu0 %v1129
    %1209 = vmatpush.msra.mxu0 %v1127
    %1210 = vmatpush.msra.mxu0 %v1125
    %1211 = vmatpush.msra.mxu0 %v1123
    %1212 = vmatpush.msra.mxu0 %v1121
    %1213 = vmatpush.msra.mxu0 %v1119
    %1214 = vmatpush.msra.mxu0 %v1117
    %1215 = vmatpush.msra.mxu0 %v1115
    %1216 = vmatpush.msra.mxu0 %v1113
    %1217 = vmatpush.msra.mxu0 %v1111
    %1218 = vmatmul.f32.gmra.mxu0 %v414
    %v1219 = vpop.f32.mrf.mxu0
    %v1220 = vadd.f32 %v1200, %v1219
    %1221 = vdwg.mxu0
    %v1222 = vld [vmem:[#allocation11] sm:$0xff]
    %v1223 = vld [vmem:[#allocation11 + $0x8] sm:$0xff]
    %v1224 = vld [vmem:[#allocation11 + $0x10] sm:$0xff]
    %v1225 = vld [vmem:[#allocation11 + $0x18] sm:$0xff]
    %v1226 = vld [vmem:[#allocation11 + $0x20] sm:$0xff]
    %v1227 = vld [vmem:[#allocation11 + $0x28] sm:$0xff]
    %v1228 = vld [vmem:[#allocation11 + $0x30] sm:$0xff]
    %v1229 = vld [vmem:[#allocation11 + $0x38] sm:$0xff]
    %v1230 = vld [vmem:[#allocation11 + $0x40] sm:$0xff]
    %v1231 = vld [vmem:[#allocation11 + $0x48] sm:$0xff]
    %v1232 = vld [vmem:[#allocation11 + $0x50] sm:$0xff]
    %v1233 = vld [vmem:[#allocation11 + $0x58] sm:$0xff]
    %v1234 = vld [vmem:[#allocation11 + $0x60] sm:$0xff]
    %v1235 = vld [vmem:[#allocation11 + $0x68] sm:$0xff]
    %v1236 = vld [vmem:[#allocation11 + $0x70] sm:$0xff]
    %v1237 = vld [vmem:[#allocation11 + $0x78] sm:$0xff]
    %v1238 = vld [vmem:[#allocation11 + $0x80] sm:$0xff]
    %v1239 = vld [vmem:[#allocation11 + $0x88] sm:$0xff]
    %v1240 = vld [vmem:[#allocation11 + $0x90] sm:$0xff]
    %v1241 = vld [vmem:[#allocation11 + $0x98] sm:$0xff]
    %v1242 = vld [vmem:[#allocation11 + $0xa0] sm:$0xff]
    %v1243 = vld [vmem:[#allocation11 + $0xa8] sm:$0xff]
    %v1244 = vld [vmem:[#allocation11 + $0xb0] sm:$0xff]
    %v1245 = vld [vmem:[#allocation11 + $0xb8] sm:$0xff]
    %v1246 = vld [vmem:[#allocation11 + $0xc0] sm:$0xff]
    %v1247 = vld [vmem:[#allocation11 + $0xc8] sm:$0xff]
    %v1248 = vld [vmem:[#allocation11 + $0xd0] sm:$0xff]
    %v1249 = vld [vmem:[#allocation11 + $0xd8] sm:$0xff]
    %v1250 = vld [vmem:[#allocation11 + $0xe0] sm:$0xff]
    %v1251 = vld [vmem:[#allocation11 + $0xe8] sm:$0xff]
    %v1252 = vld [vmem:[#allocation11 + $0xf0] sm:$0xff]
    %v1253 = vld [vmem:[#allocation11 + $0xf8] sm:$0xff]
    %v1254 = vld [vmem:[#allocation11 + $0x100] sm:$0xff]
    %v1255 = vld [vmem:[#allocation11 + $0x108] sm:$0xff]
    %v1256 = vld [vmem:[#allocation11 + $0x110] sm:$0xff]
    %v1257 = vld [vmem:[#allocation11 + $0x118] sm:$0xff]
    %v1258 = vld [vmem:[#allocation11 + $0x120] sm:$0xff]
    %v1259 = vld [vmem:[#allocation11 + $0x128] sm:$0xff]
    %v1260 = vld [vmem:[#allocation11 + $0x130] sm:$0xff]
    %v1261 = vld [vmem:[#allocation11 + $0x138] sm:$0xff]
    %v1262 = vld [vmem:[#allocation11 + $0x140] sm:$0xff]
    %v1263 = vld [vmem:[#allocation11 + $0x148] sm:$0xff]
    %v1264 = vld [vmem:[#allocation11 + $0x150] sm:$0xff]
    %v1265 = vld [vmem:[#allocation11 + $0x158] sm:$0xff]
    %v1266 = vld [vmem:[#allocation11 + $0x160] sm:$0xff]
    %v1267 = vld [vmem:[#allocation11 + $0x168] sm:$0xff]
    %v1268 = vld [vmem:[#allocation11 + $0x170] sm:$0xff]
    %v1269 = vld [vmem:[#allocation11 + $0x178] sm:$0xff]
    %v1270 = vld [vmem:[#allocation11 + $0x180] sm:$0xff]
    %v1271 = vld [vmem:[#allocation11 + $0x188] sm:$0xff]
    %v1272 = vld [vmem:[#allocation11 + $0x190] sm:$0xff]
    %v1273 = vld [vmem:[#allocation11 + $0x198] sm:$0xff]
    %v1274 = vld [vmem:[#allocation11 + $0x1a0] sm:$0xff]
    %v1275 = vld [vmem:[#allocation11 + $0x1a8] sm:$0xff]
    %v1276 = vld [vmem:[#allocation11 + $0x1b0] sm:$0xff]
    %v1277 = vld [vmem:[#allocation11 + $0x1b8] sm:$0xff]
    %v1278 = vld [vmem:[#allocation11 + $0x1c0] sm:$0xff]
    %v1279 = vld [vmem:[#allocation11 + $0x1c8] sm:$0xff]
    %v1280 = vld [vmem:[#allocation11 + $0x1d0] sm:$0xff]
    %v1281 = vld [vmem:[#allocation11 + $0x1d8] sm:$0xff]
    %v1282 = vld [vmem:[#allocation11 + $0x1e0] sm:$0xff]
    %v1283 = vld [vmem:[#allocation11 + $0x1e8] sm:$0xff]
    %v1284 = vld [vmem:[#allocation11 + $0x1f0] sm:$0xff]
    %v1285 = vld [vmem:[#allocation11 + $0x1f8] sm:$0xff]
    %1286 = vmatpush.msra.mxu0 %v1252
    %1287 = vmatpush.msra.mxu0 %v1250
    %1288 = vmatpush.msra.mxu0 %v1248
    %1289 = vmatpush.msra.mxu0 %v1246
    %1290 = vmatpush.msra.mxu0 %v1244
    %1291 = vmatpush.msra.mxu0 %v1242
    %1292 = vmatpush.msra.mxu0 %v1240
    %1293 = vmatpush.msra.mxu0 %v1238
    %1294 = vmatpush.msra.mxu0 %v1236
    %1295 = vmatpush.msra.mxu0 %v1234
    %1296 = vmatpush.msra.mxu0 %v1232
    %1297 = vmatpush.msra.mxu0 %v1230
    %1298 = vmatpush.msra.mxu0 %v1228
    %1299 = vmatpush.msra.mxu0 %v1226
    %1300 = vmatpush.msra.mxu0 %v1224
    %1301 = vmatpush.msra.mxu0 %v1222
    %1302 = vmatmul.f32.gmra.mxu0 %v673
    %v1303 = vpop.f32.mrf.mxu0
    %v1304 = vadd.f32 %v997, %v1303
    %1305 = vdwg.mxu0
    %1306 = vmatpush.msra.mxu0 %v1284
    %1307 = vmatpush.msra.mxu0 %v1282
    %1308 = vmatpush.msra.mxu0 %v1280
    %1309 = vmatpush.msra.mxu0 %v1278
    %1310 = vmatpush.msra.mxu0 %v1276
    %1311 = vmatpush.msra.mxu0 %v1274
    %1312 = vmatpush.msra.mxu0 %v1272
    %1313 = vmatpush.msra.mxu0 %v1270
    %1314 = vmatpush.msra.mxu0 %v1268
    %1315 = vmatpush.msra.mxu0 %v1266
    %1316 = vmatpush.msra.mxu0 %v1264
    %1317 = vmatpush.msra.mxu0 %v1262
    %1318 = vmatpush.msra.mxu0 %v1260
    %1319 = vmatpush.msra.mxu0 %v1258
    %1320 = vmatpush.msra.mxu0 %v1256
    %1321 = vmatpush.msra.mxu0 %v1254
    %1322 = vmatmul.f32.gmra.mxu0 %v674
    %v1323 = vpop.f32.mrf.mxu0
    %v1324 = vadd.f32 %v1304, %v1323
    %1325 = vdwg.mxu0
    %1326 = vmatpush.msra.mxu0 %v1253
    %1327 = vmatpush.msra.mxu0 %v1251
    %1328 = vmatpush.msra.mxu0 %v1249
    %1329 = vmatpush.msra.mxu0 %v1247
    %1330 = vmatpush.msra.mxu0 %v1245
    %1331 = vmatpush.msra.mxu0 %v1243
    %1332 = vmatpush.msra.mxu0 %v1241
    %1333 = vmatpush.msra.mxu0 %v1239
    %1334 = vmatpush.msra.mxu0 %v1237
    %1335 = vmatpush.msra.mxu0 %v1235
    %1336 = vmatpush.msra.mxu0 %v1233
    %1337 = vmatpush.msra.mxu0 %v1231
    %1338 = vmatpush.msra.mxu0 %v1229
    %1339 = vmatpush.msra.mxu0 %v1227
    %1340 = vmatpush.msra.mxu0 %v1225
    %1341 = vmatpush.msra.mxu0 %v1223
    %1342 = vmatmul.f32.gmra.mxu0 %v673
    %v1343 = vpop.f32.mrf.mxu0
    %v1344 = vadd.f32 %v997, %v1343
    %1345 = vdwg.mxu0
    %1346 = vmatpush.msra.mxu0 %v1285
    %1347 = vmatpush.msra.mxu0 %v1283
    %1348 = vmatpush.msra.mxu0 %v1281
    %1349 = vmatpush.msra.mxu0 %v1279
    %1350 = vmatpush.msra.mxu0 %v1277
    %1351 = vmatpush.msra.mxu0 %v1275
    %1352 = vmatpush.msra.mxu0 %v1273
    %1353 = vmatpush.msra.mxu0 %v1271
    %1354 = vmatpush.msra.mxu0 %v1269
    %1355 = vmatpush.msra.mxu0 %v1267
    %1356 = vmatpush.msra.mxu0 %v1265
    %1357 = vmatpush.msra.mxu0 %v1263
    %1358 = vmatpush.msra.mxu0 %v1261
    %1359 = vmatpush.msra.mxu0 %v1259
    %1360 = vmatpush.msra.mxu0 %v1257
    %1361 = vmatpush.msra.mxu0 %v1255
    %1362 = vmatmul.f32.gmra.mxu0 %v674
    %v1363 = vpop.f32.mrf.mxu0
    %v1364 = vadd.f32 %v1344, %v1363
    %1365 = vdwg.mxu0
    %v1366 = vld [vmem:[#allocation13] sm:$0xff]
    %v1367 = vld [vmem:[#allocation13 + $0x8] sm:$0xff]
    %v1368 = vld [vmem:[#allocation13 + $0x10] sm:$0xff]
    %v1369 = vld [vmem:[#allocation13 + $0x18] sm:$0xff]
    %v1370 = vld [vmem:[#allocation13 + $0x20] sm:$0xff]
    %v1371 = vld [vmem:[#allocation13 + $0x28] sm:$0xff]
    %v1372 = vld [vmem:[#allocation13 + $0x30] sm:$0xff]
    %v1373 = vld [vmem:[#allocation13 + $0x38] sm:$0xff]
    %v1374 = vld [vmem:[#allocation13 + $0x40] sm:$0xff]
    %v1375 = vld [vmem:[#allocation13 + $0x48] sm:$0xff]
    %v1376 = vld [vmem:[#allocation13 + $0x50] sm:$0xff]
    %v1377 = vld [vmem:[#allocation13 + $0x58] sm:$0xff]
    %v1378 = vld [vmem:[#allocation13 + $0x60] sm:$0xff]
    %v1379 = vld [vmem:[#allocation13 + $0x68] sm:$0xff]
    %v1380 = vld [vmem:[#allocation13 + $0x70] sm:$0xff]
    %v1381 = vld [vmem:[#allocation13 + $0x78] sm:$0xff]
    %v1382 = vld [vmem:[#allocation13 + $0x80] sm:$0xff]
    %v1383 = vld [vmem:[#allocation13 + $0x88] sm:$0xff]
    %v1384 = vld [vmem:[#allocation13 + $0x90] sm:$0xff]
    %v1385 = vld [vmem:[#allocation13 + $0x98] sm:$0xff]
    %v1386 = vld [vmem:[#allocation13 + $0xa0] sm:$0xff]
    %v1387 = vld [vmem:[#allocation13 + $0xa8] sm:$0xff]
    %v1388 = vld [vmem:[#allocation13 + $0xb0] sm:$0xff]
    %v1389 = vld [vmem:[#allocation13 + $0xb8] sm:$0xff]
    %v1390 = vld [vmem:[#allocation13 + $0xc0] sm:$0xff]
    %v1391 = vld [vmem:[#allocation13 + $0xc8] sm:$0xff]
    %v1392 = vld [vmem:[#allocation13 + $0xd0] sm:$0xff]
    %v1393 = vld [vmem:[#allocation13 + $0xd8] sm:$0xff]
    %v1394 = vld [vmem:[#allocation13 + $0xe0] sm:$0xff]
    %v1395 = vld [vmem:[#allocation13 + $0xe8] sm:$0xff]
    %v1396 = vld [vmem:[#allocation13 + $0xf0] sm:$0xff]
    %v1397 = vld [vmem:[#allocation13 + $0xf8] sm:$0xff]
    %v1398 = vld [vmem:[#allocation13 + $0x100] sm:$0xff]
    %v1399 = vld [vmem:[#allocation13 + $0x108] sm:$0xff]
    %v1400 = vld [vmem:[#allocation13 + $0x110] sm:$0xff]
    %v1401 = vld [vmem:[#allocation13 + $0x118] sm:$0xff]
    %v1402 = vld [vmem:[#allocation13 + $0x120] sm:$0xff]
    %v1403 = vld [vmem:[#allocation13 + $0x128] sm:$0xff]
    %v1404 = vld [vmem:[#allocation13 + $0x130] sm:$0xff]
    %v1405 = vld [vmem:[#allocation13 + $0x138] sm:$0xff]
    %v1406 = vld [vmem:[#allocation13 + $0x140] sm:$0xff]
    %v1407 = vld [vmem:[#allocation13 + $0x148] sm:$0xff]
    %v1408 = vld [vmem:[#allocation13 + $0x150] sm:$0xff]
    %v1409 = vld [vmem:[#allocation13 + $0x158] sm:$0xff]
    %v1410 = vld [vmem:[#allocation13 + $0x160] sm:$0xff]
    %v1411 = vld [vmem:[#allocation13 + $0x168] sm:$0xff]
    %v1412 = vld [vmem:[#allocation13 + $0x170] sm:$0xff]
    %v1413 = vld [vmem:[#allocation13 + $0x178] sm:$0xff]
    %v1414 = vld [vmem:[#allocation13 + $0x180] sm:$0xff]
    %v1415 = vld [vmem:[#allocation13 + $0x188] sm:$0xff]
    %v1416 = vld [vmem:[#allocation13 + $0x190] sm:$0xff]
    %v1417 = vld [vmem:[#allocation13 + $0x198] sm:$0xff]
    %v1418 = vld [vmem:[#allocation13 + $0x1a0] sm:$0xff]
    %v1419 = vld [vmem:[#allocation13 + $0x1a8] sm:$0xff]
    %v1420 = vld [vmem:[#allocation13 + $0x1b0] sm:$0xff]
    %v1421 = vld [vmem:[#allocation13 + $0x1b8] sm:$0xff]
    %v1422 = vld [vmem:[#allocation13 + $0x1c0] sm:$0xff]
    %v1423 = vld [vmem:[#allocation13 + $0x1c8] sm:$0xff]
    %v1424 = vld [vmem:[#allocation13 + $0x1d0] sm:$0xff]
    %v1425 = vld [vmem:[#allocation13 + $0x1d8] sm:$0xff]
    %v1426 = vld [vmem:[#allocation13 + $0x1e0] sm:$0xff]
    %v1427 = vld [vmem:[#allocation13 + $0x1e8] sm:$0xff]
    %v1428 = vld [vmem:[#allocation13 + $0x1f0] sm:$0xff]
    %v1429 = vld [vmem:[#allocation13 + $0x1f8] sm:$0xff]
    %1430 = vmatpush.msra.mxu0 %v1396
    %1431 = vmatpush.msra.mxu0 %v1394
    %1432 = vmatpush.msra.mxu0 %v1392
    %1433 = vmatpush.msra.mxu0 %v1390
    %1434 = vmatpush.msra.mxu0 %v1388
    %1435 = vmatpush.msra.mxu0 %v1386
    %1436 = vmatpush.msra.mxu0 %v1384
    %1437 = vmatpush.msra.mxu0 %v1382
    %1438 = vmatpush.msra.mxu0 %v1380
    %1439 = vmatpush.msra.mxu0 %v1378
    %1440 = vmatpush.msra.mxu0 %v1376
    %1441 = vmatpush.msra.mxu0 %v1374
    %1442 = vmatpush.msra.mxu0 %v1372
    %1443 = vmatpush.msra.mxu0 %v1370
    %1444 = vmatpush.msra.mxu0 %v1368
    %1445 = vmatpush.msra.mxu0 %v1366
    %1446 = vmatmul.f32.gmra.mxu0 %v931
    %v1447 = vpop.f32.mrf.mxu0
    %v1448 = vadd.f32 %v997, %v1447
    %1449 = vdwg.mxu0
    %1450 = vmatpush.msra.mxu0 %v1428
    %1451 = vmatpush.msra.mxu0 %v1426
    %1452 = vmatpush.msra.mxu0 %v1424
    %1453 = vmatpush.msra.mxu0 %v1422
    %1454 = vmatpush.msra.mxu0 %v1420
    %1455 = vmatpush.msra.mxu0 %v1418
    %1456 = vmatpush.msra.mxu0 %v1416
    %1457 = vmatpush.msra.mxu0 %v1414
    %1458 = vmatpush.msra.mxu0 %v1412
    %1459 = vmatpush.msra.mxu0 %v1410
    %1460 = vmatpush.msra.mxu0 %v1408
    %1461 = vmatpush.msra.mxu0 %v1406
    %1462 = vmatpush.msra.mxu0 %v1404
    %1463 = vmatpush.msra.mxu0 %v1402
    %1464 = vmatpush.msra.mxu0 %v1400
    %1465 = vmatpush.msra.mxu0 %v1398
    %1466 = vmatmul.f32.gmra.mxu0 %v932
    %v1467 = vpop.f32.mrf.mxu0
    %v1468 = vadd.f32 %v1448, %v1467
    %1469 = vdwg.mxu0
    %1470 = vmatpush.msra.mxu0 %v1397
    %1471 = vmatpush.msra.mxu0 %v1395
    %1472 = vmatpush.msra.mxu0 %v1393
    %1473 = vmatpush.msra.mxu0 %v1391
    %1474 = vmatpush.msra.mxu0 %v1389
    %1475 = vmatpush.msra.mxu0 %v1387
    %1476 = vmatpush.msra.mxu0 %v1385
    %1477 = vmatpush.msra.mxu0 %v1383
    %1478 = vmatpush.msra.mxu0 %v1381
    %1479 = vmatpush.msra.mxu0 %v1379
    %1480 = vmatpush.msra.mxu0 %v1377
    %1481 = vmatpush.msra.mxu0 %v1375
    %1482 = vmatpush.msra.mxu0 %v1373
    %1483 = vmatpush.msra.mxu0 %v1371
    %1484 = vmatpush.msra.mxu0 %v1369
    %1485 = vmatpush.msra.mxu0 %v1367
    %1486 = vmatmul.f32.gmra.mxu0 %v931
    %v1487 = vpop.f32.mrf.mxu0
    %v1488 = vadd.f32 %v997, %v1487
    %1489 = vdwg.mxu0
    %1490 = vmatpush.msra.mxu0 %v1429
    %1491 = vmatpush.msra.mxu0 %v1427
    %1492 = vmatpush.msra.mxu0 %v1425
    %1493 = vmatpush.msra.mxu0 %v1423
    %1494 = vmatpush.msra.mxu0 %v1421
    %1495 = vmatpush.msra.mxu0 %v1419
    %1496 = vmatpush.msra.mxu0 %v1417
    %1497 = vmatpush.msra.mxu0 %v1415
    %1498 = vmatpush.msra.mxu0 %v1413
    %1499 = vmatpush.msra.mxu0 %v1411
    %1500 = vmatpush.msra.mxu0 %v1409
    %1501 = vmatpush.msra.mxu0 %v1407
    %1502 = vmatpush.msra.mxu0 %v1405
    %1503 = vmatpush.msra.mxu0 %v1403
    %1504 = vmatpush.msra.mxu0 %v1401
    %1505 = vmatpush.msra.mxu0 %v1399
    %1506 = vmatmul.f32.gmra.mxu0 %v932
    %v1507 = vpop.f32.mrf.mxu0
    %v1508 = vadd.f32 %v1488, %v1507
    %1509 = vdwg.mxu0
    %v1512 = vrot.slane %v1180, 7
    %v1513 = vrot.slane %v1220, 7
    %v1518 = vrot.slane %v1324, 6
    %v1519 = vrot.slane %v1364, 6
    %v1524 = vrot.slane %v1468, 5
    %v1525 = vrot.slane %v1508, 5
    %s1528 = scalar_lea.vmem [#allocation1], 1
    %1529 = vst [vmem:[%s1528] ss:$2 sm:$0xff] %v124
    %v1530 = vld.sshfl [vmem:[#allocation1] sm:$0xff pattern:$0x75316420]
    %v1531 = vld.sshfl [vmem:[#allocation1 + $0x8] sm:$0xff pattern:$0x75316420]
    %v1534 = vsel %vm256, %v1036, %v1512
    %v1535 = vsel %vm256, %v1076, %v1513
    %vm1536 = vcmask 1041408
    %v1537 = vsel %vm1536, %v1534, %v1518
    %v1538 = vsel %vm1536, %v1535, %v1519
    %vm1539 = vcmask 1042432
    %v1540 = vsel %vm1539, %v1537, %v1524
    %v1541 = vsel %vm1539, %v1538, %v1525
    %v1542 = vsel %vm145, %v1540, %v1530
    %v1543 = vsel %vm145, %v1541, %v1531
    %1544 = vst [vmem:[#allocation14] sm:$0xff] %v1542
    %1545 = vst [vmem:[#allocation14 + $0x8] sm:$0xff] %v1543
    %v1548 = vrot.slane %v1036, 1
    %v1549 = vrot.slane %v1076, 1
    %v1552 = vrot.slane %v1324, 7
    %v1553 = vrot.slane %v1364, 7
    %v1556 = vrot.slane %v1468, 6
    %v1557 = vrot.slane %v1508, 6
    %s1560 = scalar_lea.vmem [#allocation1], 1
    %1561 = vst [vmem:[%s1560] ss:$2 sm:$0xff] %v126
    %v1562 = vld.sshfl [vmem:[#allocation1] sm:$0xff pattern:$0x75316420]
    %v1563 = vld.sshfl [vmem:[#allocation1 + $0x8] sm:$0xff pattern:$0x75316420]
    %v1566 = vsel %vm256, %v1548, %v1180
    %v1567 = vsel %vm256, %v1549, %v1220
    %v1568 = vsel %vm1536, %v1566, %v1552
    %v1569 = vsel %vm1536, %v1567, %v1553
    %v1570 = vsel %vm1539, %v1568, %v1556
    %v1571 = vsel %vm1539, %v1569, %v1557
    %v1572 = vsel %vm145, %v1570, %v1562
    %v1573 = vsel %vm145, %v1571, %v1563
    %s1574 = scalar_lea.vmem [#allocation14], 16
    %1575 = vst [vmem:[%s1574] sm:$0xff] %v1572
    %1576 = vst [vmem:[%s1574 + $0x8] sm:$0xff] %v1573
    // Predicated region
    $region54: #{tpu_custom_call.1} parent=1 // pred_check
      _
    $region55: #{tpu_custom_call.1} parent=1 // pred_check_branch
      %1578 = sbr.rel (0) target = $region57
    $region56: #{tpu_custom_call.1} parent=1 // pred_region
      %1580 = vsyncadd [#allocation5], 0
      %s1581 = sshll.u32 [#allocation14], 4
      %s1582 = int_to_ptr.vmem [resolvable:$true] %s1581
      %s1583 = sshll.u32 %s7, 4
      %s1584 = int_to_ptr.hbm [resolvable:$true] %s1583
      %1589 = dma.vmem_to_hbm [thread:$0]  %s1582, 512, %s1584, [#allocation5], 256, 256, 16
    $region57: #{tpu_custom_call.1} parent=1 // pred_fallthru
      _
    // Predicated region
    $region58: #{tpu_custom_call.1} parent=1 // pred_check
      _
    $region59: #{tpu_custom_call.1} parent=1 // pred_check_branch
      %1591 = sbr.rel (0) target = $region61
    $region60: #{tpu_custom_call.1} parent=1 // pred_region
      %1593 = dma.done [#allocation5], 512
    $region61: #{tpu_custom_call.1} parent=1 // pred_fallthru
      _
    %1594 = vsyncpa [#allocation4], 1
    %1595 = vsyncpa [#allocation9], 1
    %1596 = vsyncpa [#allocation12], 1
    %1597 = vsyncpa [#allocation5], 1
    %1598 = vsyncpa [#allocation6], 1

// kernel: tpu_custom_call.1
$region0: #{tpu_custom_call.1}
  #allocation0 [shape = 'u32[]', space=smem, size = 0x4, offset = 0x4, fixed_abs, tag = 'smem constant byte address 0x4 - core index']
  #allocation1 [shape = 'u32[72,128]{1,0:T(1,128)}', space=vmem, size = 0x9000, scoped, tag = 'internal scratch']
  #allocation2 [shape = 'f32[1]{0:T(128)S(6)}', space=smem, size = 0x200, scoped, tag = 'scoped memory for tpu_custom_call.1']
  %s0 = inlined_call_operand.hbm [shape: f32[2,4,256], index: 0, kind: input, shape index: {}]
  %s1 = inlined_call_operand.vmem [shape: f32[4], index: 1, kind: input, shape index: {}]
  %s2 = inlined_call_operand.<no memory space> [shape: f32[1], index: 2, kind: input, shape index: {}]
  %s3 = inlined_call_operand.hbm [shape: f32[256,256], index: 3, kind: input, shape index: {}]
  %s4 = inlined_call_operand.hbm [shape: f32[256,256], index: 4, kind: input, shape index: {}]
  %s5 = inlined_call_operand.hbm [shape: f32[256,256], index: 5, kind: input, shape index: {}]
  %s6 = inlined_call_operand.hbm [shape: f32[256,256], index: 6, kind: input, shape index: {}]
  %s7 = inlined_call_operand.hbm [shape: f32[2,8,256], index: 7, kind: output, shape index: {}]
  %s8 = sld [smem:[#allocation0]]
  $region62: #{tpu_custom_call.1} parent=0
    _
  %s10 = ssub.s32 1, %s8
  %s11 = scalar_select 0, %s10, %s8
  %12 = sst [smem:[#allocation2]] %s2
  $region1: #{tpu_custom_call.1} parent=0
    #allocation3 [shape = 'u8[8192]{0}', space=vmem, size = 0x2000, scoped, tag = 'input window, operand 0, single buffered']
    #allocation4 [shape = 's32[1]{0}', space=sflag, size = 0x4, scoped, tag = 'scoped memory for tpu_custom_call.1']
    #allocation5 [shape = 's32[1]{0}', space=sflag, size = 0x4, scoped, tag = 'scoped memory for tpu_custom_call.1']
    #allocation6 [shape = 's32[1]{0}', space=sflag, size = 0x4, scoped, tag = 'scoped memory for tpu_custom_call.1']
    #allocation7 [shape = 'u8[512]{0}', space=smem, size = 0x200, scoped, tag = 'input window, operand 1, single buffered']
    #allocation8 [shape = 'u8[262144]{0}', space=vmem, size = 0x40000, scoped, tag = 'input window, operand 3, single buffered']
    #allocation9 [shape = 's32[1]{0}', space=sflag, size = 0x4, scoped, tag = 'scoped memory for tpu_custom_call.1']
    #allocation10 [shape = 'u8[262144]{0}', space=vmem, size = 0x40000, scoped, tag = 'input window, operand 4, single buffered']
    #allocation11 [shape = 'u8[262144]{0}', space=vmem, size = 0x40000, scoped, tag = 'input window, operand 5, single buffered']
    #allocation12 [shape = 's32[1]{0}', space=sflag, size = 0x4, scoped, tag = 'scoped memory for tpu_custom_call.1']
    #allocation13 [shape = 'u8[262144]{0}', space=vmem, size = 0x40000, scoped, tag = 'input window, operand 6, single buffered']
    #allocation14 [shape = 'u8[16384]{0}', space=vmem, size = 0x4000, scoped, tag = 'output window, operand 0, single buffered']
    %13 = vsyncpa [#allocation4], 0
    %14 = vsyncpa [#allocation6], 0
    %15 = vsyncpa [#allocation9], 0
    %16 = vsyncpa [#allocation12], 0
    %17 = vsyncpa [#allocation5], 0
    // Predicated region
    $region2: #{tpu_custom_call.1} parent=1 // pred_check
      _
    $region3: #{tpu_custom_call.1} parent=1 // pred_check_branch
      %19 = sbr.rel (0) target = $region5
    $region4: #{tpu_custom_call.1} parent=1 // pred_region
      %21 = vsyncadd [#allocation4], 0
      %s22 = sshll.u32 %s0, 4
      %s23 = int_to_ptr.hbm [resolvable:$true] %s22
      %s24 = sshll.u32 [#allocation3], 4
      %s25 = int_to_ptr.vmem [resolvable:$true] %s24
      %30 = dma.hbm_to_vmem [thread:$0]  %s23, 256, %s25, [#allocation4], 128, 128, 8
    $region5: #{tpu_custom_call.1} parent=1 // pred_fallthru
      _
    // Predicated region
    $region6: #{tpu_custom_call.1} parent=1 // pred_check
      _
    $region7: #{tpu_custom_call.1} parent=1 // pred_check_branch
      %32 = sbr.rel (0) target = $region9
    $region8: #{tpu_custom_call.1} parent=1 // pred_region
      %34 = vsyncadd [#allocation6], 0
      %s36 = sshll.u32 %s1, 4
      %s37 = int_to_ptr.vmem [resolvable:$true] %s36
      %39 = dma.vmem_to_smem %s37, 16, [#allocation7], [#allocation6]
    $region9: #{tpu_custom_call.1} parent=1 // pred_fallthru
      _
    // Predicated region
    $region10: #{tpu_custom_call.1} parent=1 // pred_check
      _
    $region11: #{tpu_custom_call.1} parent=1 // pred_check_branch
      %41 = sbr.rel (0) target = $region13
    $region12: #{tpu_custom_call.1} parent=1 // pred_region
      _
    $region13: #{tpu_custom_call.1} parent=1 // pred_fallthru
      _
    // Predicated region
    $region14: #{tpu_custom_call.1} parent=1 // pred_check
      _
    $region15: #{tpu_custom_call.1} parent=1 // pred_check_branch
      %43 = sbr.rel (0) target = $region17
    $region16: #{tpu_custom_call.1} parent=1 // pred_region
      %45 = vsyncadd [#allocation9], 0
      %s46 = sshll.u32 %s3, 4
      %s47 = int_to_ptr.hbm [resolvable:$true] %s46
      %s48 = sshll.u32 [#allocation8], 4
      %s49 = int_to_ptr.vmem [resolvable:$true] %s48
      %54 = dma.hbm_to_vmem [thread:$0]  %s47, 8192, %s49, [#allocation9], 256, 256, 16
    $region17: #{tpu_custom_call.1} parent=1 // pred_fallthru
      _
    // Predicated region
    $region18: #{tpu_custom_call.1} parent=1 // pred_check
      _
    $region19: #{tpu_custom_call.1} parent=1 // pred_check_branch
      %56 = sbr.rel (0) target = $region21
    $region20: #{tpu_custom_call.1} parent=1 // pred_region
      %58 = vsyncadd [#allocation9], 0
      %s59 = sshll.u32 %s4, 4
      %s60 = int_to_ptr.hbm [resolvable:$true] %s59
      %s61 = sshll.u32 [#allocation10], 4
      %s62 = int_to_ptr.vmem [resolvable:$true] %s61
      %67 = dma.hbm_to_vmem [thread:$0]  %s60, 8192, %s62, [#allocation9], 256, 256, 16
    $region21: #{tpu_custom_call.1} parent=1 // pred_fallthru
      _
    // Predicated region
    $region22: #{tpu_custom_call.1} parent=1 // pred_check
      _
    $region23: #{tpu_custom_call.1} parent=1 // pred_check_branch
      %69 = sbr.rel (0) target = $region25
    $region24: #{tpu_custom_call.1} parent=1 // pred_region
      %71 = vsyncadd [#allocation12], 0
      %s72 = sshll.u32 %s5, 4
      %s73 = int_to_ptr.hbm [resolvable:$true] %s72
      %s74 = sshll.u32 [#allocation11], 4
      %s75 = int_to_ptr.vmem [resolvable:$true] %s74
      %80 = dma.hbm_to_vmem [thread:$0]  %s73, 8192, %s75, [#allocation12], 256, 256, 16
    $region25: #{tpu_custom_call.1} parent=1 // pred_fallthru
      _
    // Predicated region
    $region26: #{tpu_custom_call.1} parent=1 // pred_check
      _
    $region27: #{tpu_custom_call.1} parent=1 // pred_check_branch
      %82 = sbr.rel (0) target = $region29
    $region28: #{tpu_custom_call.1} parent=1 // pred_region
      %84 = vsyncadd [#allocation12], 0
      %s85 = sshll.u32 %s6, 4
      %s86 = int_to_ptr.hbm [resolvable:$true] %s85
      %s87 = sshll.u32 [#allocation13], 4
      %s88 = int_to_ptr.vmem [resolvable:$true] %s87
      %93 = dma.hbm_to_vmem [thread:$0]  %s86, 8192, %s88, [#allocation12], 256, 256, 16
    $region29: #{tpu_custom_call.1} parent=1 // pred_fallthru
      _
    // Predicated region
    $region30: #{tpu_custom_call.1} parent=1 // pred_check
      _
    $region31: #{tpu_custom_call.1} parent=1 // pred_check_branch
      %95 = sbr.rel (0) target = $region33
    $region32: #{tpu_custom_call.1} parent=1 // pred_region
      %97 = dma.done [#allocation4], 256
    $region33: #{tpu_custom_call.1} parent=1 // pred_fallthru
      _
    // Predicated region
    $region34: #{tpu_custom_call.1} parent=1 // pred_check
      _
    $region35: #{tpu_custom_call.1} parent=1 // pred_check_branch
      %99 = sbr.rel (0) target = $region37
    $region36: #{tpu_custom_call.1} parent=1 // pred_region
      %101 = dma.done [#allocation6], 16
    $region37: #{tpu_custom_call.1} parent=1 // pred_fallthru
      _
    // Predicated region
    $region38: #{tpu_custom_call.1} parent=1 // pred_check
      _
    $region39: #{tpu_custom_call.1} parent=1 // pred_check_branch
      %103 = sbr.rel (0) target = $region41
    $region40: #{tpu_custom_call.1} parent=1 // pred_region
      %105 = dma.done [#allocation9], 8192
    $region41: #{tpu_custom_call.1} parent=1 // pred_fallthru
      _
    // Predicated region
    $region42: #{tpu_custom_call.1} parent=1 // pred_check
      _
    $region43: #{tpu_custom_call.1} parent=1 // pred_check_branch
      %107 = sbr.rel (0) target = $region45
    $region44: #{tpu_custom_call.1} parent=1 // pred_region
      %109 = dma.done [#allocation9], 8192
    $region45: #{tpu_custom_call.1} parent=1 // pred_fallthru
      _
    // Predicated region
    $region46: #{tpu_custom_call.1} parent=1 // pred_check
      _
    $region47: #{tpu_custom_call.1} parent=1 // pred_check_branch
      %111 = sbr.rel (0) target = $region49
    $region48: #{tpu_custom_call.1} parent=1 // pred_region
      %113 = dma.done [#allocation12], 8192
    $region49: #{tpu_custom_call.1} parent=1 // pred_fallthru
      _
    // Predicated region
    $region50: #{tpu_custom_call.1} parent=1 // pred_check
      _
    $region51: #{tpu_custom_call.1} parent=1 // pred_check_branch
      %115 = sbr.rel (0) target = $region53
    $region52: #{tpu_custom_call.1} parent=1 // pred_region
      %117 = dma.done [#allocation12], 8192
    $region53: #{tpu_custom_call.1} parent=1 // pred_fallthru
      _
    %118 = sfence
    %s119 = sld [smem:[#allocation7]]
    %s120 = sld [smem:[#allocation7 + $0x1]]
    %s121 = sld [smem:[#allocation7 + $0x2]]
    %s122 = sld [smem:[#allocation7 + $0x3]]
    %s123 = sld [smem:[#allocation2]]
    %v124 = vld [vmem:[#allocation3] sm:$0xff]
    %s125 = scalar_lea.vmem [#allocation3], 8
    %v126 = vld [vmem:[%s125] sm:$0xff]
    %128 = vst [vmem:[#allocation1] ss:$2 sm:$0xff] %v124
    %v129 = vld.sshfl [vmem:[#allocation1] sm:$0xff pattern:$0x75316420]
    %v130 = vld.sshfl [vmem:[#allocation1 + $0x8] sm:$0xff pattern:$0x75316420]
    %133 = vrot.lane.b32.xlu0 %v129, 112
    %v134 = vpop.permute.xlu0 %133
    %135 = vrot.lane.b32.xlu0 %v130, 112
    %v136 = vpop.permute.xlu0 %135
    %v137 = vlaneseq
    %v138 = vand.u32 %v137, 127
    %vm139 = vcmp.lt.s32.totalorder %v138, 112
    %v140 = vsel %vm139, %v134, %v136
    %v141 = vsel %vm139, %v136, %v134
    %v144 = vrot.slane %v141, 4
    %vm145 = vcmask 1043456
    %v146 = vsel %vm145, %v140, %v144
    %v148 = vmax.f32 %v124, %v146
    %150 = vst [vmem:[#allocation1] ss:$2 sm:$0xff] %v148
    %v151 = vld.sshfl [vmem:[#allocation1] sm:$0xff pattern:$0x75316420]
    %v152 = vld.sshfl [vmem:[#allocation1 + $0x8] sm:$0xff pattern:$0x75316420]
    %155 = vrot.lane.b32.xlu0 %v151, 127
    %v156 = vpop.permute.xlu0 %155
    %157 = vrot.lane.b32.xlu0 %v152, 127
    %v158 = vpop.permute.xlu0 %157
    %vm159 = vcmp.lt.s32.totalorder %v138, 127
    %v160 = vsel %vm159, %v156, %v158
    %v161 = vsel %vm159, %v158, %v156
    %v164 = vrot.slane %v161, 4
    %v165 = vsel %vm145, %v160, %v164
    %v167 = vmax.f32 %v148, %v165
    %v168 = vstv %s119
    %v169 = vmul.f32 %v167, %v168
    %v170 = vstv %s120
    %v171 = vmul.f32 %v167, %v170
    %v173 = vrot.slane %v171, 5
    %v174 = vrot.slane %v173, 4
    %v176 = vadd.f32 %v169, %v174
    %v177 = vstv %s121
    %v178 = vmul.f32 %v167, %v177
    %v180 = vrot.slane %v178, 6
    %v181 = vrot.slane %v180, 4
    %v183 = vadd.f32 %v176, %v181
    %v184 = vstv %s122
    %v185 = vmul.f32 %v167, %v184
    %v187 = vrot.slane %v185, 7
    %v188 = vrot.slane %v187, 4
    %v190 = vadd.f32 %v183, %v188
    %192 = vst [vmem:[#allocation1] ss:$2 sm:$0xff] %v126
    %v193 = vld.sshfl [vmem:[#allocation1] sm:$0xff pattern:$0x75316420]
    %v194 = vld.sshfl [vmem:[#allocation1 + $0x8] sm:$0xff pattern:$0x75316420]
    %197 = vrot.lane.b32.xlu0 %v193, 112
    %v198 = vpop.permute.xlu0 %197
    %199 = vrot.lane.b32.xlu0 %v194, 112
    %v200 = vpop.permute.xlu0 %199
    %v201 = vsel %vm139, %v198, %v200
    %v202 = vsel %vm139, %v200, %v198
    %v205 = vrot.slane %v202, 4
    %v206 = vsel %vm145, %v201, %v205
    %v208 = vmax.f32 %v126, %v206
    %210 = vst [vmem:[#allocation1] ss:$2 sm:$0xff] %v208
    %v211 = vld.sshfl [vmem:[#allocation1] sm:$0xff pattern:$0x75316420]
    %v212 = vld.sshfl [vmem:[#allocation1 + $0x8] sm:$0xff pattern:$0x75316420]
    %215 = vrot.lane.b32.xlu0 %v211, 127
    %v216 = vpop.permute.xlu0 %215
    %217 = vrot.lane.b32.xlu0 %v212, 127
    %v218 = vpop.permute.xlu0 %217
    %v219 = vsel %vm159, %v216, %v218
    %v220 = vsel %vm159, %v218, %v216
    %v223 = vrot.slane %v220, 4
    %v224 = vsel %vm145, %v219, %v223
    %v226 = vmax.f32 %v208, %v224
    %v227 = vmul.f32 %v226, %v168
    %v228 = vmul.f32 %v226, %v170
    %v230 = vrot.slane %v228, 5
    %v231 = vrot.slane %v230, 4
    %v233 = vadd.f32 %v227, %v231
    %v234 = vmul.f32 %v226, %v177
    %v236 = vrot.slane %v234, 6
    %v237 = vrot.slane %v236, 4
    %v239 = vadd.f32 %v233, %v237
    %v240 = vmul.f32 %v226, %v184
    %v242 = vrot.slane %v240, 7
    %v243 = vrot.slane %v242, 4
    %v245 = vadd.f32 %v239, %v243
    %v247 = vperm.slane %v190, 0
    %v248 = vperm.slane %v190, 4
    %v252 = vperm.slane %v245, 0
    %v253 = vperm.slane %v245, 4
    %vm256 = vcmask 1040384
    %v257 = vsel %vm256, %v247, %v252
    %v258 = vsel %vm256, %v248, %v253
    %259 = vst [vmem:[#allocation1] ss:$2 sm:$0xff] %v124
    %v260 = vld.sshfl [vmem:[#allocation1] sm:$0xff pattern:$0x75316420]
    %v261 = vld.sshfl [vmem:[#allocation1 + $0x8] sm:$0xff pattern:$0x75316420]
    %264 = vrot.lane.b32.xlu0 %v260, 96
    %v265 = vpop.permute.xlu0 %264
    %266 = vrot.lane.b32.xlu0 %v261, 96
    %v267 = vpop.permute.xlu0 %266
    %vm268 = vcmp.lt.s32.totalorder %v138, 96
    %v269 = vsel %vm268, %v265, %v267
    %v270 = vsel %vm268, %v267, %v265
    %v273 = vrot.slane %v270, 4
    %v274 = vsel %vm145, %v269, %v273
    %v276 = vmax.f32 %v148, %v274
    %278 = vst [vmem:[#allocation1] ss:$2 sm:$0xff] %v276
    %v279 = vld.sshfl [vmem:[#allocation1] sm:$0xff pattern:$0x75316420]
    %v280 = vld.sshfl [vmem:[#allocation1 + $0x8] sm:$0xff pattern:$0x75316420]
    %283 = vrot.lane.b32.xlu0 %v279, 127
    %v284 = vpop.permute.xlu0 %283
    %285 = vrot.lane.b32.xlu0 %v280, 127
    %v286 = vpop.permute.xlu0 %285
    %v287 = vsel %vm159, %v284, %v286
    %v288 = vsel %vm159, %v286, %v284
    %v291 = vrot.slane %v288, 4
    %v292 = vsel %vm145, %v287, %v291
    %v294 = vmax.f32 %v276, %v292
    %295 = vst [vmem:[#allocation1] ss:$2 sm:$0xff] %v276
    %v296 = vld.sshfl [vmem:[#allocation1] sm:$0xff pattern:$0x75316420]
    %v297 = vld.sshfl [vmem:[#allocation1 + $0x8] sm:$0xff pattern:$0x75316420]
    %300 = vrot.lane.b32.xlu0 %v296, 126
    %v301 = vpop.permute.xlu0 %300
    %302 = vrot.lane.b32.xlu0 %v297, 126
    %v303 = vpop.permute.xlu0 %302
    %vm304 = vcmp.lt.s32.totalorder %v138, 126
    %v305 = vsel %vm304, %v301, %v303
    %v306 = vsel %vm304, %v303, %v301
    %v309 = vrot.slane %v306, 4
    %v310 = vsel %vm145, %v305, %v309
    %v312 = vmax.f32 %v294, %v310
    %v313 = vmul.f32 %v312, %v168
    %v314 = vmul.f32 %v312, %v170
    %v316 = vrot.slane %v314, 5
    %v317 = vrot.slane %v316, 4
    %v319 = vadd.f32 %v313, %v317
    %v320 = vmul.f32 %v312, %v177
    %v322 = vrot.slane %v320, 6
    %v323 = vrot.slane %v322, 4
    %v325 = vadd.f32 %v319, %v323
    %v326 = vmul.f32 %v312, %v184
    %v328 = vrot.slane %v326, 7
    %v329 = vrot.slane %v328, 4
    %v331 = vadd.f32 %v325, %v329
    %332 = vst [vmem:[#allocation1] ss:$2 sm:$0xff] %v126
    %v333 = vld.sshfl [vmem:[#allocation1] sm:$0xff pattern:$0x75316420]
    %v334 = vld.sshfl [vmem:[#allocation1 + $0x8] sm:$0xff pattern:$0x75316420]
    %337 = vrot.lane.b32.xlu0 %v333, 96
    %v338 = vpop.permute.xlu0 %337
    %339 = vrot.lane.b32.xlu0 %v334, 96
    %v340 = vpop.permute.xlu0 %339
    %v341 = vsel %vm268, %v338, %v340
    %v342 = vsel %vm268, %v340, %v338
    %v345 = vrot.slane %v342, 4
    %v346 = vsel %vm145, %v341, %v345
    %v348 = vmax.f32 %v208, %v346
    %350 = vst [vmem:[#allocation1] ss:$2 sm:$0xff] %v348
    %v351 = vld.sshfl [vmem:[#allocation1] sm:$0xff pattern:$0x75316420]
    %v352 = vld.sshfl [vmem:[#allocation1 + $0x8] sm:$0xff pattern:$0x75316420]
    %355 = vrot.lane.b32.xlu0 %v351, 127
    %v356 = vpop.permute.xlu0 %355
    %357 = vrot.lane.b32.xlu0 %v352, 127
    %v358 = vpop.permute.xlu0 %357
    %v359 = vsel %vm159, %v356, %v358
    %v360 = vsel %vm159, %v358, %v356
    %v363 = vrot.slane %v360, 4
    %v364 = vsel %vm145, %v359, %v363
    %v366 = vmax.f32 %v348, %v364
    %367 = vst [vmem:[#allocation1] ss:$2 sm:$0xff] %v348
    %v368 = vld.sshfl [vmem:[#allocation1] sm:$0xff pattern:$0x75316420]
    %v369 = vld.sshfl [vmem:[#allocation1 + $0x8] sm:$0xff pattern:$0x75316420]
    %372 = vrot.lane.b32.xlu0 %v368, 126
    %v373 = vpop.permute.xlu0 %372
    %374 = vrot.lane.b32.xlu0 %v369, 126
    %v375 = vpop.permute.xlu0 %374
    %v376 = vsel %vm304, %v373, %v375
    %v377 = vsel %vm304, %v375, %v373
    %v380 = vrot.slane %v377, 4
    %v381 = vsel %vm145, %v376, %v380
    %v383 = vmax.f32 %v366, %v381
    %v384 = vmul.f32 %v383, %v168
    %v385 = vmul.f32 %v383, %v170
    %v387 = vrot.slane %v385, 5
    %v388 = vrot.slane %v387, 4
    %v390 = vadd.f32 %v384, %v388
    %v391 = vmul.f32 %v383, %v177
    %v393 = vrot.slane %v391, 6
    %v394 = vrot.slane %v393, 4
    %v396 = vadd.f32 %v390, %v394
    %v397 = vmul.f32 %v383, %v184
    %v399 = vrot.slane %v397, 7
    %v400 = vrot.slane %v399, 4
    %v402 = vadd.f32 %v396, %v400
    %v404 = vperm.slane %v331, 0
    %v405 = vperm.slane %v331, 4
    %v409 = vperm.slane %v402, 0
    %v410 = vperm.slane %v402, 4
    %v413 = vsel %vm256, %v404, %v409
    %v414 = vsel %vm256, %v405, %v410
    %415 = vst [vmem:[#allocation1] ss:$2 sm:$0xff] %v124
    %v416 = vld.sshfl [vmem:[#allocation1] sm:$0xff pattern:$0x75316420]
    %v417 = vld.sshfl [vmem:[#allocation1 + $0x8] sm:$0xff pattern:$0x75316420]
    %420 = vrot.lane.b32.xlu0 %v416, 80
    %v421 = vpop.permute.xlu0 %420
    %422 = vrot.lane.b32.xlu0 %v417, 80
    %v423 = vpop.permute.xlu0 %422
    %vm424 = vcmp.lt.s32.totalorder %v138, 80
    %v425 = vsel %vm424, %v421, %v423
    %v426 = vsel %vm424, %v423, %v421
    %v429 = vrot.slane %v426, 4
    %v430 = vsel %vm145, %v425, %v429
    %v432 = vmax.f32 %v276, %v430
    %433 = vst [vmem:[#allocation1] ss:$2 sm:$0xff] %v124
    %v434 = vld.sshfl [vmem:[#allocation1] sm:$0xff pattern:$0x75316420]
    %v435 = vld.sshfl [vmem:[#allocation1 + $0x8] sm:$0xff pattern:$0x75316420]
    %438 = vrot.lane.b32.xlu0 %v434, 64
    %v439 = vpop.permute.xlu0 %438
    %440 = vrot.lane.b32.xlu0 %v435, 64
    %v441 = vpop.permute.xlu0 %440
    %vm442 = vcmp.lt.s32.totalorder %v138, 64
    %v443 = vsel %vm442, %v439, %v441
    %v444 = vsel %vm442, %v441, %v439
    %v447 = vrot.slane %v444, 4
    %v448 = vsel %vm145, %v443, %v447
    %v450 = vmax.f32 %v432, %v448
    %452 = vst [vmem:[#allocation1] ss:$2 sm:$0xff] %v450
    %v453 = vld.sshfl [vmem:[#allocation1] sm:$0xff pattern:$0x75316420]
    %v454 = vld.sshfl [vmem:[#allocation1 + $0x8] sm:$0xff pattern:$0x75316420]
    %457 = vrot.lane.b32.xlu0 %v453, 127
    %v458 = vpop.permute.xlu0 %457
    %459 = vrot.lane.b32.xlu0 %v454, 127
    %v460 = vpop.permute.xlu0 %459
    %v461 = vsel %vm159, %v458, %v460
    %v462 = vsel %vm159, %v460, %v458
    %v465 = vrot.slane %v462, 4
    %v466 = vsel %vm145, %v461, %v465
    %v468 = vmax.f32 %v450, %v466
    %469 = vst [vmem:[#allocation1] ss:$2 sm:$0xff] %v450
    %v470 = vld.sshfl [vmem:[#allocation1] sm:$0xff pattern:$0x75316420]
    %v471 = vld.sshfl [vmem:[#allocation1 + $0x8] sm:$0xff pattern:$0x75316420]
    %474 = vrot.lane.b32.xlu0 %v470, 126
    %v475 = vpop.permute.xlu0 %474
    %476 = vrot.lane.b32.xlu0 %v471, 126
    %v477 = vpop.permute.xlu0 %476
    %v478 = vsel %vm304, %v475, %v477
    %v479 = vsel %vm304, %v477, %v475
    %v482 = vrot.slane %v479, 4
    %v483 = vsel %vm145, %v478, %v482
    %v485 = vmax.f32 %v468, %v483
    %486 = vst [vmem:[#allocation1] ss:$2 sm:$0xff] %v450
    %v487 = vld.sshfl [vmem:[#allocation1] sm:$0xff pattern:$0x75316420]
    %v488 = vld.sshfl [vmem:[#allocation1 + $0x8] sm:$0xff pattern:$0x75316420]
    %491 = vrot.lane.b32.xlu0 %v487, 125
    %v492 = vpop.permute.xlu0 %491
    %493 = vrot.lane.b32.xlu0 %v488, 125
    %v494 = vpop.permute.xlu0 %493
    %vm495 = vcmp.lt.s32.totalorder %v138, 125
    %v496 = vsel %vm495, %v492, %v494
    %v497 = vsel %vm495, %v494, %v492
    %v500 = vrot.slane %v497, 4
    %v501 = vsel %vm145, %v496, %v500
    %v503 = vmax.f32 %v485, %v501
    %504 = vst [vmem:[#allocation1] ss:$2 sm:$0xff] %v450
    %v505 = vld.sshfl [vmem:[#allocation1] sm:$0xff pattern:$0x75316420]
    %v506 = vld.sshfl [vmem:[#allocation1 + $0x8] sm:$0xff pattern:$0x75316420]
    %509 = vrot.lane.b32.xlu0 %v505, 124
    %v510 = vpop.permute.xlu0 %509
    %511 = vrot.lane.b32.xlu0 %v506, 124
    %v512 = vpop.permute.xlu0 %511
    %vm513 = vcmp.lt.s32.totalorder %v138, 124
    %v514 = vsel %vm513, %v510, %v512
    %v515 = vsel %vm513, %v512, %v510
    %v518 = vrot.slane %v515, 4
    %v519 = vsel %vm145, %v514, %v518
    %v521 = vmax.f32 %v503, %v519
    %v522 = vmul.f32 %v521, %v168
    %v523 = vmul.f32 %v521, %v170
    %v525 = vrot.slane %v523, 5
    %v526 = vrot.slane %v525, 4
    %v528 = vadd.f32 %v522, %v526
    %v529 = vmul.f32 %v521, %v177
    %v531 = vrot.slane %v529, 6
    %v532 = vrot.slane %v531, 4
    %v534 = vadd.f32 %v528, %v532
    %v535 = vmul.f32 %v521, %v184
    %v537 = vrot.slane %v535, 7
    %v538 = vrot.slane %v537, 4
    %v540 = vadd.f32 %v534, %v538
    %541 = vst [vmem:[#allocation1] ss:$2 sm:$0xff] %v126
    %v542 = vld.sshfl [vmem:[#allocation1] sm:$0xff pattern:$0x75316420]
    %v543 = vld.sshfl [vmem:[#allocation1 + $0x8] sm:$0xff pattern:$0x75316420]
    %546 = vrot.lane.b32.xlu0 %v542, 80
    %v547 = vpop.permute.xlu0 %546
    %548 = vrot.lane.b32.xlu0 %v543, 80
    %v549 = vpop.permute.xlu0 %548
    %v550 = vsel %vm424, %v547, %v549
    %v551 = vsel %vm424, %v549, %v547
    %v554 = vrot.slane %v551, 4
    %v555 = vsel %vm145, %v550, %v554
    %v557 = vmax.f32 %v348, %v555
    %558 = vst [vmem:[#allocation1] ss:$2 sm:$0xff] %v126
    %v559 = vld.sshfl [vmem:[#allocation1] sm:$0xff pattern:$0x75316420]
    %v560 = vld.sshfl [vmem:[#allocation1 + $0x8] sm:$0xff pattern:$0x75316420]
    %563 = vrot.lane.b32.xlu0 %v559, 64
    %v564 = vpop.permute.xlu0 %563
    %565 = vrot.lane.b32.xlu0 %v560, 64
    %v566 = vpop.permute.xlu0 %565
    %v567 = vsel %vm442, %v564, %v566
    %v568 = vsel %vm442, %v566, %v564
    %v571 = vrot.slane %v568, 4
    %v572 = vsel %vm145, %v567, %v571
    %v574 = vmax.f32 %v557, %v572
    %576 = vst [vmem:[#allocation1] ss:$2 sm:$0xff] %v574
    %v577 = vld.sshfl [vmem:[#allocation1] sm:$0xff pattern:$0x75316420]
    %v578 = vld.sshfl [vmem:[#allocation1 + $0x8] sm:$0xff pattern:$0x75316420]
    %581 = vrot.lane.b32.xlu0 %v577, 127
    %v582 = vpop.permute.xlu0 %581
    %583 = vrot.lane.b32.xlu0 %v578, 127
    %v584 = vpop.permute.xlu0 %583
    %v585 = vsel %vm159, %v582, %v584
    %v586 = vsel %vm159, %v584, %v582
    %v589 = vrot.slane %v586, 4
    %v590 = vsel %vm145, %v585, %v589
    %v592 = vmax.f32 %v574, %v590
    %593 = vst [vmem:[#allocation1] ss:$2 sm:$0xff] %v574
    %v594 = vld.sshfl [vmem:[#allocation1] sm:$0xff pattern:$0x75316420]
    %v595 = vld.sshfl [vmem:[#allocation1 + $0x8] sm:$0xff pattern:$0x75316420]
    %598 = vrot.lane.b32.xlu0 %v594, 126
    %v599 = vpop.permute.xlu0 %598
    %600 = vrot.lane.b32.xlu0 %v595, 126
    %v601 = vpop.permute.xlu0 %600
    %v602 = vsel %vm304, %v599, %v601
    %v603 = vsel %vm304, %v601, %v599
    %v606 = vrot.slane %v603, 4
    %v607 = vsel %vm145, %v602, %v606
    %v609 = vmax.f32 %v592, %v607
    %610 = vst [vmem:[#allocation1] ss:$2 sm:$0xff] %v574
    %v611 = vld.sshfl [vmem:[#allocation1] sm:$0xff pattern:$0x75316420]
    %v612 = vld.sshfl [vmem:[#allocation1 + $0x8] sm:$0xff pattern:$0x75316420]
    %615 = vrot.lane.b32.xlu0 %v611, 125
    %v616 = vpop.permute.xlu0 %615
    %617 = vrot.lane.b32.xlu0 %v612, 125
    %v618 = vpop.permute.xlu0 %617
    %v619 = vsel %vm495, %v616, %v618
    %v620 = vsel %vm495, %v618, %v616
    %v623 = vrot.slane %v620, 4
    %v624 = vsel %vm145, %v619, %v623
    %v626 = vmax.f32 %v609, %v624
    %627 = vst [vmem:[#allocation1] ss:$2 sm:$0xff] %v574
    %v628 = vld.sshfl [vmem:[#allocation1] sm:$0xff pattern:$0x75316420]
    %v629 = vld.sshfl [vmem:[#allocation1 + $0x8] sm:$0xff pattern:$0x75316420]
    %632 = vrot.lane.b32.xlu0 %v628, 124
    %v633 = vpop.permute.xlu0 %632
    %634 = vrot.lane.b32.xlu0 %v629, 124
    %v635 = vpop.permute.xlu0 %634
    %v636 = vsel %vm513, %v633, %v635
    %v637 = vsel %vm513, %v635, %v633
    %v640 = vrot.slane %v637, 4
    %v641 = vsel %vm145, %v636, %v640
    %v643 = vmax.f32 %v626, %v641
    %v644 = vmul.f32 %v643, %v168
    %v645 = vmul.f32 %v643, %v170
    %v647 = vrot.slane %v645, 5
    %v648 = vrot.slane %v647, 4
    %v650 = vadd.f32 %v644, %v648
    %v651 = vmul.f32 %v643, %v177
    %v653 = vrot.slane %v651, 6
    %v654 = vrot.slane %v653, 4
    %v656 = vadd.f32 %v650, %v654
    %v657 = vmul.f32 %v643, %v184
    %v659 = vrot.slane %v657, 7
    %v660 = vrot.slane %v659, 4
    %v662 = vadd.f32 %v656, %v660
    %v664 = vperm.slane %v540, 0
    %v665 = vperm.slane %v540, 4
    %v669 = vperm.slane %v662, 0
    %v670 = vperm.slane %v662, 4
    %v673 = vsel %vm256, %v664, %v669
    %v674 = vsel %vm256, %v665, %v670
    %675 = vst [vmem:[#allocation1] ss:$2 sm:$0xff] %v124
    %v676 = vld.sshfl [vmem:[#allocation1] sm:$0xff pattern:$0x75316420]
    %v677 = vld.sshfl [vmem:[#allocation1 + $0x8] sm:$0xff pattern:$0x75316420]
    %680 = vrot.lane.b32.xlu0 %v676, 48
    %v681 = vpop.permute.xlu0 %680
    %682 = vrot.lane.b32.xlu0 %v677, 48
    %v683 = vpop.permute.xlu0 %682
    %vm684 = vcmp.lt.s32.totalorder %v138, 48
    %v685 = vsel %vm684, %v681, %v683
    %v686 = vsel %vm684, %v683, %v681
    %v689 = vrot.slane %v686, 4
    %v690 = vsel %vm145, %v685, %v689
    %v692 = vmax.f32 %v450, %v690
    %694 = vst [vmem:[#allocation1] ss:$2 sm:$0xff] %v692
    %v695 = vld.sshfl [vmem:[#allocation1] sm:$0xff pattern:$0x75316420]
    %v696 = vld.sshfl [vmem:[#allocation1 + $0x8] sm:$0xff pattern:$0x75316420]
    %699 = vrot.lane.b32.xlu0 %v695, 127
    %v700 = vpop.permute.xlu0 %699
    %701 = vrot.lane.b32.xlu0 %v696, 127
    %v702 = vpop.permute.xlu0 %701
    %v703 = vsel %vm159, %v700, %v702
    %v704 = vsel %vm159, %v702, %v700
    %v707 = vrot.slane %v704, 4
    %v708 = vsel %vm145, %v703, %v707
    %v710 = vmax.f32 %v692, %v708
    %711 = vst [vmem:[#allocation1] ss:$2 sm:$0xff] %v692
    %v712 = vld.sshfl [vmem:[#allocation1] sm:$0xff pattern:$0x75316420]
    %v713 = vld.sshfl [vmem:[#allocation1 + $0x8] sm:$0xff pattern:$0x75316420]
    %716 = vrot.lane.b32.xlu0 %v712, 126
    %v717 = vpop.permute.xlu0 %716
    %718 = vrot.lane.b32.xlu0 %v713, 126
    %v719 = vpop.permute.xlu0 %718
    %v720 = vsel %vm304, %v717, %v719
    %v721 = vsel %vm304, %v719, %v717
    %v724 = vrot.slane %v721, 4
    %v725 = vsel %vm145, %v720, %v724
    %v727 = vmax.f32 %v710, %v725
    %728 = vst [vmem:[#allocation1] ss:$2 sm:$0xff] %v692
    %v729 = vld.sshfl [vmem:[#allocation1] sm:$0xff pattern:$0x75316420]
    %v730 = vld.sshfl [vmem:[#allocation1 + $0x8] sm:$0xff pattern:$0x75316420]
    %733 = vrot.lane.b32.xlu0 %v729, 125
    %v734 = vpop.permute.xlu0 %733
    %735 = vrot.lane.b32.xlu0 %v730, 125
    %v736 = vpop.permute.xlu0 %735
    %v737 = vsel %vm495, %v734, %v736
    %v738 = vsel %vm495, %v736, %v734
    %v741 = vrot.slane %v738, 4
    %v742 = vsel %vm145, %v737, %v741
    %v744 = vmax.f32 %v727, %v742
    %745 = vst [vmem:[#allocation1] ss:$2 sm:$0xff] %v692
    %v746 = vld.sshfl [vmem:[#allocation1] sm:$0xff pattern:$0x75316420]
    %v747 = vld.sshfl [vmem:[#allocation1 + $0x8] sm:$0xff pattern:$0x75316420]
    %750 = vrot.lane.b32.xlu0 %v746, 124
    %v751 = vpop.permute.xlu0 %750
    %752 = vrot.lane.b32.xlu0 %v747, 124
    %v753 = vpop.permute.xlu0 %752
    %v754 = vsel %vm513, %v751, %v753
    %v755 = vsel %vm513, %v753, %v751
    %v758 = vrot.slane %v755, 4
    %v759 = vsel %vm145, %v754, %v758
    %v761 = vmax.f32 %v744, %v759
    %762 = vst [vmem:[#allocation1] ss:$2 sm:$0xff] %v692
    %v763 = vld.sshfl [vmem:[#allocation1] sm:$0xff pattern:$0x75316420]
    %v764 = vld.sshfl [vmem:[#allocation1 + $0x8] sm:$0xff pattern:$0x75316420]
    %767 = vrot.lane.b32.xlu0 %v763, 123
    %v768 = vpop.permute.xlu0 %767
    %769 = vrot.lane.b32.xlu0 %v764, 123
    %v770 = vpop.permute.xlu0 %769
    %vm771 = vcmp.lt.s32.totalorder %v138, 123
    %v772 = vsel %vm771, %v768, %v770
    %v773 = vsel %vm771, %v770, %v768
    %v776 = vrot.slane %v773, 4
    %v777 = vsel %vm145, %v772, %v776
    %v779 = vmax.f32 %v761, %v777
    %v780 = vmul.f32 %v779, %v168
    %v781 = vmul.f32 %v779, %v170
    %v783 = vrot.slane %v781, 5
    %v784 = vrot.slane %v783, 4
    %v786 = vadd.f32 %v780, %v784
    %v787 = vmul.f32 %v779, %v177
    %v789 = vrot.slane %v787, 6
    %v790 = vrot.slane %v789, 4
    %v792 = vadd.f32 %v786, %v790
    %v793 = vmul.f32 %v779, %v184
    %v795 = vrot.slane %v793, 7
    %v796 = vrot.slane %v795, 4
    %v798 = vadd.f32 %v792, %v796
    %799 = vst [vmem:[#allocation1] ss:$2 sm:$0xff] %v126
    %v800 = vld.sshfl [vmem:[#allocation1] sm:$0xff pattern:$0x75316420]
    %v801 = vld.sshfl [vmem:[#allocation1 + $0x8] sm:$0xff pattern:$0x75316420]
    %804 = vrot.lane.b32.xlu0 %v800, 48
    %v805 = vpop.permute.xlu0 %804
    %806 = vrot.lane.b32.xlu0 %v801, 48
    %v807 = vpop.permute.xlu0 %806
    %v808 = vsel %vm684, %v805, %v807
    %v809 = vsel %vm684, %v807, %v805
    %v812 = vrot.slane %v809, 4
    %v813 = vsel %vm145, %v808, %v812
    %v815 = vmax.f32 %v574, %v813
    %817 = vst [vmem:[#allocation1] ss:$2 sm:$0xff] %v815
    %v818 = vld.sshfl [vmem:[#allocation1] sm:$0xff pattern:$0x75316420]
    %v819 = vld.sshfl [vmem:[#allocation1 + $0x8] sm:$0xff pattern:$0x75316420]
    %822 = vrot.lane.b32.xlu0 %v818, 127
    %v823 = vpop.permute.xlu0 %822
    %824 = vrot.lane.b32.xlu0 %v819, 127
    %v825 = vpop.permute.xlu0 %824
    %v826 = vsel %vm159, %v823, %v825
    %v827 = vsel %vm159, %v825, %v823
    %v830 = vrot.slane %v827, 4
    %v831 = vsel %vm145, %v826, %v830
    %v833 = vmax.f32 %v815, %v831
    %834 = vst [vmem:[#allocation1] ss:$2 sm:$0xff] %v815
    %v835 = vld.sshfl [vmem:[#allocation1] sm:$0xff pattern:$0x75316420]
    %v836 = vld.sshfl [vmem:[#allocation1 + $0x8] sm:$0xff pattern:$0x75316420]
    %839 = vrot.lane.b32.xlu0 %v835, 126
    %v840 = vpop.permute.xlu0 %839
    %841 = vrot.lane.b32.xlu0 %v836, 126
    %v842 = vpop.permute.xlu0 %841
    %v843 = vsel %vm304, %v840, %v842
    %v844 = vsel %vm304, %v842, %v840
    %v847 = vrot.slane %v844, 4
    %v848 = vsel %vm145, %v843, %v847
    %v850 = vmax.f32 %v833, %v848
    %851 = vst [vmem:[#allocation1] ss:$2 sm:$0xff] %v815
    %v852 = vld.sshfl [vmem:[#allocation1] sm:$0xff pattern:$0x75316420]
    %v853 = vld.sshfl [vmem:[#allocation1 + $0x8] sm:$0xff pattern:$0x75316420]
    %856 = vrot.lane.b32.xlu0 %v852, 125
    %v857 = vpop.permute.xlu0 %856
    %858 = vrot.lane.b32.xlu0 %v853, 125
    %v859 = vpop.permute.xlu0 %858
    %v860 = vsel %vm495, %v857, %v859
    %v861 = vsel %vm495, %v859, %v857
    %v864 = vrot.slane %v861, 4
    %v865 = vsel %vm145, %v860, %v864
    %v867 = vmax.f32 %v850, %v865
    %868 = vst [vmem:[#allocation1] ss:$2 sm:$0xff] %v815
    %v869 = vld.sshfl [vmem:[#allocation1] sm:$0xff pattern:$0x75316420]
    %v870 = vld.sshfl [vmem:[#allocation1 + $0x8] sm:$0xff pattern:$0x75316420]
    %873 = vrot.lane.b32.xlu0 %v869, 124
    %v874 = vpop.permute.xlu0 %873
    %875 = vrot.lane.b32.xlu0 %v870, 124
    %v876 = vpop.permute.xlu0 %875
    %v877 = vsel %vm513, %v874, %v876
    %v878 = vsel %vm513, %v876, %v874
    %v881 = vrot.slane %v878, 4
    %v882 = vsel %vm145, %v877, %v881
    %v884 = vmax.f32 %v867, %v882
    %885 = vst [vmem:[#allocation1] ss:$2 sm:$0xff] %v815
    %v886 = vld.sshfl [vmem:[#allocation1] sm:$0xff pattern:$0x75316420]
    %v887 = vld.sshfl [vmem:[#allocation1 + $0x8] sm:$0xff pattern:$0x75316420]
    %890 = vrot.lane.b32.xlu0 %v886, 123
    %v891 = vpop.permute.xlu0 %890
    %892 = vrot.lane.b32.xlu0 %v887, 123
    %v893 = vpop.permute.xlu0 %892
    %v894 = vsel %vm771, %v891, %v893
    %v895 = vsel %vm771, %v893, %v891
    %v898 = vrot.slane %v895, 4
    %v899 = vsel %vm145, %v894, %v898
    %v901 = vmax.f32 %v884, %v899
    %v902 = vmul.f32 %v901, %v168
    %v903 = vmul.f32 %v901, %v170
    %v905 = vrot.slane %v903, 5
    %v906 = vrot.slane %v905, 4
    %v908 = vadd.f32 %v902, %v906
    %v909 = vmul.f32 %v901, %v177
    %v911 = vrot.slane %v909, 6
    %v912 = vrot.slane %v911, 4
    %v914 = vadd.f32 %v908, %v912
    %v915 = vmul.f32 %v901, %v184
    %v917 = vrot.slane %v915, 7
    %v918 = vrot.slane %v917, 4
    %v920 = vadd.f32 %v914, %v918
    %v922 = vperm.slane %v798, 0
    %v923 = vperm.slane %v798, 4
    %v927 = vperm.slane %v920, 0
    %v928 = vperm.slane %v920, 4
    %v931 = vsel %vm256, %v922, %v927
    %v932 = vsel %vm256, %v923, %v928
    %v933 = vld [vmem:[#allocation8] sm:$0xff]
    %v934 = vld [vmem:[#allocation8 + $0x8] sm:$0xff]
    %v935 = vld [vmem:[#allocation8 + $0x10] sm:$0xff]
    %v936 = vld [vmem:[#allocation8 + $0x18] sm:$0xff]
    %v937 = vld [vmem:[#allocation8 + $0x20] sm:$0xff]
    %v938 = vld [vmem:[#allocation8 + $0x28] sm:$0xff]
    %v939 = vld [vmem:[#allocation8 + $0x30] sm:$0xff]
    %v940 = vld [vmem:[#allocation8 + $0x38] sm:$0xff]
    %v941 = vld [vmem:[#allocation8 + $0x40] sm:$0xff]
    %v942 = vld [vmem:[#allocation8 + $0x48] sm:$0xff]
    %v943 = vld [vmem:[#allocation8 + $0x50] sm:$0xff]
    %v944 = vld [vmem:[#allocation8 + $0x58] sm:$0xff]
    %v945 = vld [vmem:[#allocation8 + $0x60] sm:$0xff]
    %v946 = vld [vmem:[#allocation8 + $0x68] sm:$0xff]
    %v947 = vld [vmem:[#allocation8 + $0x70] sm:$0xff]
    %v948 = vld [vmem:[#allocation8 + $0x78] sm:$0xff]
    %v949 = vld [vmem:[#allocation8 + $0x80] sm:$0xff]
    %v950 = vld [vmem:[#allocation8 + $0x88] sm:$0xff]
    %v951 = vld [vmem:[#allocation8 + $0x90] sm:$0xff]
    %v952 = vld [vmem:[#allocation8 + $0x98] sm:$0xff]
    %v953 = vld [vmem:[#allocation8 + $0xa0] sm:$0xff]
    %v954 = vld [vmem:[#allocation8 + $0xa8] sm:$0xff]
    %v955 = vld [vmem:[#allocation8 + $0xb0] sm:$0xff]
    %v956 = vld [vmem:[#allocation8 + $0xb8] sm:$0xff]
    %v957 = vld [vmem:[#allocation8 + $0xc0] sm:$0xff]
    %v958 = vld [vmem:[#allocation8 + $0xc8] sm:$0xff]
    %v959 = vld [vmem:[#allocation8 + $0xd0] sm:$0xff]
    %v960 = vld [vmem:[#allocation8 + $0xd8] sm:$0xff]
    %v961 = vld [vmem:[#allocation8 + $0xe0] sm:$0xff]
    %v962 = vld [vmem:[#allocation8 + $0xe8] sm:$0xff]
    %v963 = vld [vmem:[#allocation8 + $0xf0] sm:$0xff]
    %v964 = vld [vmem:[#allocation8 + $0xf8] sm:$0xff]
    %v965 = vld [vmem:[#allocation8 + $0x100] sm:$0xff]
    %v966 = vld [vmem:[#allocation8 + $0x108] sm:$0xff]
    %v967 = vld [vmem:[#allocation8 + $0x110] sm:$0xff]
    %v968 = vld [vmem:[#allocation8 + $0x118] sm:$0xff]
    %v969 = vld [vmem:[#allocation8 + $0x120] sm:$0xff]
    %v970 = vld [vmem:[#allocation8 + $0x128] sm:$0xff]
    %v971 = vld [vmem:[#allocation8 + $0x130] sm:$0xff]
    %v972 = vld [vmem:[#allocation8 + $0x138] sm:$0xff]
    %v973 = vld [vmem:[#allocation8 + $0x140] sm:$0xff]
    %v974 = vld [vmem:[#allocation8 + $0x148] sm:$0xff]
    %v975 = vld [vmem:[#allocation8 + $0x150] sm:$0xff]
    %v976 = vld [vmem:[#allocation8 + $0x158] sm:$0xff]
    %v977 = vld [vmem:[#allocation8 + $0x160] sm:$0xff]
    %v978 = vld [vmem:[#allocation8 + $0x168] sm:$0xff]
    %v979 = vld [vmem:[#allocation8 + $0x170] sm:$0xff]
    %v980 = vld [vmem:[#allocation8 + $0x178] sm:$0xff]
    %v981 = vld [vmem:[#allocation8 + $0x180] sm:$0xff]
    %v982 = vld [vmem:[#allocation8 + $0x188] sm:$0xff]
    %v983 = vld [vmem:[#allocation8 + $0x190] sm:$0xff]
    %v984 = vld [vmem:[#allocation8 + $0x198] sm:$0xff]
    %v985 = vld [vmem:[#allocation8 + $0x1a0] sm:$0xff]
    %v986 = vld [vmem:[#allocation8 + $0x1a8] sm:$0xff]
    %v987 = vld [vmem:[#allocation8 + $0x1b0] sm:$0xff]
    %v988 = vld [vmem:[#allocation8 + $0x1b8] sm:$0xff]
    %v989 = vld [vmem:[#allocation8 + $0x1c0] sm:$0xff]
    %v990 = vld [vmem:[#allocation8 + $0x1c8] sm:$0xff]
    %v991 = vld [vmem:[#allocation8 + $0x1d0] sm:$0xff]
    %v992 = vld [vmem:[#allocation8 + $0x1d8] sm:$0xff]
    %v993 = vld [vmem:[#allocation8 + $0x1e0] sm:$0xff]
    %v994 = vld [vmem:[#allocation8 + $0x1e8] sm:$0xff]
    %v995 = vld [vmem:[#allocation8 + $0x1f0] sm:$0xff]
    %v996 = vld [vmem:[#allocation8 + $0x1f8] sm:$0xff]
    %v997 = vstv %s123
    %998 = vmatpush.msra.mxu0 %v963
    %999 = vmatpush.msra.mxu0 %v961
    %1000 = vmatpush.msra.mxu0 %v959
    %1001 = vmatpush.msra.mxu0 %v957
    %1002 = vmatpush.msra.mxu0 %v955
    %1003 = vmatpush.msra.mxu0 %v953
    %1004 = vmatpush.msra.mxu0 %v951
    %1005 = vmatpush.msra.mxu0 %v949
    %1006 = vmatpush.msra.mxu0 %v947
    %1007 = vmatpush.msra.mxu0 %v945
    %1008 = vmatpush.msra.mxu0 %v943
    %1009 = vmatpush.msra.mxu0 %v941
    %1010 = vmatpush.msra.mxu0 %v939
    %1011 = vmatpush.msra.mxu0 %v937
    %1012 = vmatpush.msra.mxu0 %v935
    %1013 = vmatpush.msra.mxu0 %v933
    %1014 = vmatmul.f32.gmra.mxu0 %v257
    %v1015 = vpop.f32.mrf.mxu0
    %v1016 = vadd.f32 %v997, %v1015
    %1017 = vdwg.mxu0
    %1018 = vmatpush.msra.mxu0 %v995
    %1019 = vmatpush.msra.mxu0 %v993
    %1020 = vmatpush.msra.mxu0 %v991
    %1021 = vmatpush.msra.mxu0 %v989
    %1022 = vmatpush.msra.mxu0 %v987
    %1023 = vmatpush.msra.mxu0 %v985
    %1024 = vmatpush.msra.mxu0 %v983
    %1025 = vmatpush.msra.mxu0 %v981
    %1026 = vmatpush.msra.mxu0 %v979
    %1027 = vmatpush.msra.mxu0 %v977
    %1028 = vmatpush.msra.mxu0 %v975
    %1029 = vmatpush.msra.mxu0 %v973
    %1030 = vmatpush.msra.mxu0 %v971
    %1031 = vmatpush.msra.mxu0 %v969
    %1032 = vmatpush.msra.mxu0 %v967
    %1033 = vmatpush.msra.mxu0 %v965
    %1034 = vmatmul.f32.gmra.mxu0 %v258
    %v1035 = vpop.f32.mrf.mxu0
    %v1036 = vadd.f32 %v1016, %v1035
    %1037 = vdwg.mxu0
    %1038 = vmatpush.msra.mxu0 %v964
    %1039 = vmatpush.msra.mxu0 %v962
    %1040 = vmatpush.msra.mxu0 %v960
    %1041 = vmatpush.msra.mxu0 %v958
    %1042 = vmatpush.msra.mxu0 %v956
    %1043 = vmatpush.msra.mxu0 %v954
    %1044 = vmatpush.msra.mxu0 %v952
    %1045 = vmatpush.msra.mxu0 %v950
    %1046 = vmatpush.msra.mxu0 %v948
    %1047 = vmatpush.msra.mxu0 %v946
    %1048 = vmatpush.msra.mxu0 %v944
    %1049 = vmatpush.msra.mxu0 %v942
    %1050 = vmatpush.msra.mxu0 %v940
    %1051 = vmatpush.msra.mxu0 %v938
    %1052 = vmatpush.msra.mxu0 %v936
    %1053 = vmatpush.msra.mxu0 %v934
    %1054 = vmatmul.f32.gmra.mxu0 %v257
    %v1055 = vpop.f32.mrf.mxu0
    %v1056 = vadd.f32 %v997, %v1055
    %1057 = vdwg.mxu0
    %1058 = vmatpush.msra.mxu0 %v996
    %1059 = vmatpush.msra.mxu0 %v994
    %1060 = vmatpush.msra.mxu0 %v992
    %1061 = vmatpush.msra.mxu0 %v990
    %1062 = vmatpush.msra.mxu0 %v988
    %1063 = vmatpush.msra.mxu0 %v986
    %1064 = vmatpush.msra.mxu0 %v984
    %1065 = vmatpush.msra.mxu0 %v982
    %1066 = vmatpush.msra.mxu0 %v980
    %1067 = vmatpush.msra.mxu0 %v978
    %1068 = vmatpush.msra.mxu0 %v976
    %1069 = vmatpush.msra.mxu0 %v974
    %1070 = vmatpush.msra.mxu0 %v972
    %1071 = vmatpush.msra.mxu0 %v970
    %1072 = vmatpush.msra.mxu0 %v968
    %1073 = vmatpush.msra.mxu0 %v966
    %1074 = vmatmul.f32.gmra.mxu0 %v258
    %v1075 = vpop.f32.mrf.mxu0
    %v1076 = vadd.f32 %v1056, %v1075
    %1077 = vdwg.mxu0
    %v1078 = vld [vmem:[#allocation10] sm:$0xff]
    %v1079 = vld [vmem:[#allocation10 + $0x8] sm:$0xff]
    %v1080 = vld [vmem:[#allocation10 + $0x10] sm:$0xff]
    %v1081 = vld [vmem:[#allocation10 + $0x18] sm:$0xff]
    %v1082 = vld [vmem:[#allocation10 + $0x20] sm:$0xff]
    %v1083 = vld [vmem:[#allocation10 + $0x28] sm:$0xff]
    %v1084 = vld [vmem:[#allocation10 + $0x30] sm:$0xff]
    %v1085 = vld [vmem:[#allocation10 + $0x38] sm:$0xff]
    %v1086 = vld [vmem:[#allocation10 + $0x40] sm:$0xff]
    %v1087 = vld [vmem:[#allocation10 + $0x48] sm:$0xff]
    %v1088 = vld [vmem:[#allocation10 + $0x50] sm:$0xff]
    %v1089 = vld [vmem:[#allocation10 + $0x58] sm:$0xff]
    %v1090 = vld [vmem:[#allocation10 + $0x60] sm:$0xff]
    %v1091 = vld [vmem:[#allocation10 + $0x68] sm:$0xff]
    %v1092 = vld [vmem:[#allocation10 + $0x70] sm:$0xff]
    %v1093 = vld [vmem:[#allocation10 + $0x78] sm:$0xff]
    %v1094 = vld [vmem:[#allocation10 + $0x80] sm:$0xff]
    %v1095 = vld [vmem:[#allocation10 + $0x88] sm:$0xff]
    %v1096 = vld [vmem:[#allocation10 + $0x90] sm:$0xff]
    %v1097 = vld [vmem:[#allocation10 + $0x98] sm:$0xff]
    %v1098 = vld [vmem:[#allocation10 + $0xa0] sm:$0xff]
    %v1099 = vld [vmem:[#allocation10 + $0xa8] sm:$0xff]
    %v1100 = vld [vmem:[#allocation10 + $0xb0] sm:$0xff]
    %v1101 = vld [vmem:[#allocation10 + $0xb8] sm:$0xff]
    %v1102 = vld [vmem:[#allocation10 + $0xc0] sm:$0xff]
    %v1103 = vld [vmem:[#allocation10 + $0xc8] sm:$0xff]
    %v1104 = vld [vmem:[#allocation10 + $0xd0] sm:$0xff]
    %v1105 = vld [vmem:[#allocation10 + $0xd8] sm:$0xff]
    %v1106 = vld [vmem:[#allocation10 + $0xe0] sm:$0xff]
    %v1107 = vld [vmem:[#allocation10 + $0xe8] sm:$0xff]
    %v1108 = vld [vmem:[#allocation10 + $0xf0] sm:$0xff]
    %v1109 = vld [vmem:[#allocation10 + $0xf8] sm:$0xff]
    %v1110 = vld [vmem:[#allocation10 + $0x100] sm:$0xff]
    %v1111 = vld [vmem:[#allocation10 + $0x108] sm:$0xff]
    %v1112 = vld [vmem:[#allocation10 + $0x110] sm:$0xff]
    %v1113 = vld [vmem:[#allocation10 + $0x118] sm:$0xff]
    %v1114 = vld [vmem:[#allocation10 + $0x120] sm:$0xff]
    %v1115 = vld [vmem:[#allocation10 + $0x128] sm:$0xff]
    %v1116 = vld [vmem:[#allocation10 + $0x130] sm:$0xff]
    %v1117 = vld [vmem:[#allocation10 + $0x138] sm:$0xff]
    %v1118 = vld [vmem:[#allocation10 + $0x140] sm:$0xff]
    %v1119 = vld [vmem:[#allocation10 + $0x148] sm:$0xff]
    %v1120 = vld [vmem:[#allocation10 + $0x150] sm:$0xff]
    %v1121 = vld [vmem:[#allocation10 + $0x158] sm:$0xff]
    %v1122 = vld [vmem:[#allocation10 + $0x160] sm:$0xff]
    %v1123 = vld [vmem:[#allocation10 + $0x168] sm:$0xff]
    %v1124 = vld [vmem:[#allocation10 + $0x170] sm:$0xff]
    %v1125 = vld [vmem:[#allocation10 + $0x178] sm:$0xff]
    %v1126 = vld [vmem:[#allocation10 + $0x180] sm:$0xff]
    %v1127 = vld [vmem:[#allocation10 + $0x188] sm:$0xff]
    %v1128 = vld [vmem:[#allocation10 + $0x190] sm:$0xff]
    %v1129 = vld [vmem:[#allocation10 + $0x198] sm:$0xff]
    %v1130 = vld [vmem:[#allocation10 + $0x1a0] sm:$0xff]
    %v1131 = vld [vmem:[#allocation10 + $0x1a8] sm:$0xff]
    %v1132 = vld [vmem:[#allocation10 + $0x1b0] sm:$0xff]
    %v1133 = vld [vmem:[#allocation10 + $0x1b8] sm:$0xff]
    %v1134 = vld [vmem:[#allocation10 + $0x1c0] sm:$0xff]
    %v1135 = vld [vmem:[#allocation10 + $0x1c8] sm:$0xff]
    %v1136 = vld [vmem:[#allocation10 + $0x1d0] sm:$0xff]
    %v1137 = vld [vmem:[#allocation10 + $0x1d8] sm:$0xff]
    %v1138 = vld [vmem:[#allocation10 + $0x1e0] sm:$0xff]
    %v1139 = vld [vmem:[#allocation10 + $0x1e8] sm:$0xff]
    %v1140 = vld [vmem:[#allocation10 + $0x1f0] sm:$0xff]
    %v1141 = vld [vmem:[#allocation10 + $0x1f8] sm:$0xff]
    %1142 = vmatpush.msra.mxu0 %v1108
    %1143 = vmatpush.msra.mxu0 %v1106
    %1144 = vmatpush.msra.mxu0 %v1104
    %1145 = vmatpush.msra.mxu0 %v1102
    %1146 = vmatpush.msra.mxu0 %v1100
    %1147 = vmatpush.msra.mxu0 %v1098
    %1148 = vmatpush.msra.mxu0 %v1096
    %1149 = vmatpush.msra.mxu0 %v1094
    %1150 = vmatpush.msra.mxu0 %v1092
    %1151 = vmatpush.msra.mxu0 %v1090
    %1152 = vmatpush.msra.mxu0 %v1088
    %1153 = vmatpush.msra.mxu0 %v1086
    %1154 = vmatpush.msra.mxu0 %v1084
    %1155 = vmatpush.msra.mxu0 %v1082
    %1156 = vmatpush.msra.mxu0 %v1080
    %1157 = vmatpush.msra.mxu0 %v1078
    %1158 = vmatmul.f32.gmra.mxu0 %v413
    %v1159 = vpop.f32.mrf.mxu0
    %v1160 = vadd.f32 %v997, %v1159
    %1161 = vdwg.mxu0
    %1162 = vmatpush.msra.mxu0 %v1140
    %1163 = vmatpush.msra.mxu0 %v1138
    %1164 = vmatpush.msra.mxu0 %v1136
    %1165 = vmatpush.msra.mxu0 %v1134
    %1166 = vmatpush.msra.mxu0 %v1132
    %1167 = vmatpush.msra.mxu0 %v1130
    %1168 = vmatpush.msra.mxu0 %v1128
    %1169 = vmatpush.msra.mxu0 %v1126
    %1170 = vmatpush.msra.mxu0 %v1124
    %1171 = vmatpush.msra.mxu0 %v1122
    %1172 = vmatpush.msra.mxu0 %v1120
    %1173 = vmatpush.msra.mxu0 %v1118
    %1174 = vmatpush.msra.mxu0 %v1116
    %1175 = vmatpush.msra.mxu0 %v1114
    %1176 = vmatpush.msra.mxu0 %v1112
    %1177 = vmatpush.msra.mxu0 %v1110
    %1178 = vmatmul.f32.gmra.mxu0 %v414
    %v1179 = vpop.f32.mrf.mxu0
    %v1180 = vadd.f32 %v1160, %v1179
    %1181 = vdwg.mxu0
    %1182 = vmatpush.msra.mxu0 %v1109
    %1183 = vmatpush.msra.mxu0 %v1107
    %1184 = vmatpush.msra.mxu0 %v1105
    %1185 = vmatpush.msra.mxu0 %v1103
    %1186 = vmatpush.msra.mxu0 %v1101
    %1187 = vmatpush.msra.mxu0 %v1099
    %1188 = vmatpush.msra.mxu0 %v1097
    %1189 = vmatpush.msra.mxu0 %v1095
    %1190 = vmatpush.msra.mxu0 %v1093
    %1191 = vmatpush.msra.mxu0 %v1091
    %1192 = vmatpush.msra.mxu0 %v1089
    %1193 = vmatpush.msra.mxu0 %v1087
    %1194 = vmatpush.msra.mxu0 %v1085
    %1195 = vmatpush.msra.mxu0 %v1083
    %1196 = vmatpush.msra.mxu0 %v1081
    %1197 = vmatpush.msra.mxu0 %v1079
    %1198 = vmatmul.f32.gmra.mxu0 %v413
    %v1199 = vpop.f32.mrf.mxu0
    %v1200 = vadd.f32 %v997, %v1199
    %1201 = vdwg.mxu0
    %1202 = vmatpush.msra.mxu0 %v1141
    %1203 = vmatpush.msra.mxu0 %v1139
    %1204 = vmatpush.msra.mxu0 %v1137
    %1205 = vmatpush.msra.mxu0 %v1135
    %1206 = vmatpush.msra.mxu0 %v1133
    %1207 = vmatpush.msra.mxu0 %v1131
    %1208 = vmatpush.msra.mxu0 %v1129
    %1209 = vmatpush.msra.mxu0 %v1127
    %1210 = vmatpush.msra.mxu0 %v1125
    %1211 = vmatpush.msra.mxu0 %v1123
    %1212 = vmatpush.msra.mxu0 %v1121
    %1213 = vmatpush.msra.mxu0 %v1119
    %1214 = vmatpush.msra.mxu0 %v1117
    %1215 = vmatpush.msra.mxu0 %v1115
    %1216 = vmatpush.msra.mxu0 %v1113
    %1217 = vmatpush.msra.mxu0 %v1111
    %1218 = vmatmul.f32.gmra.mxu0 %v414
    %v1219 = vpop.f32.mrf.mxu0
    %v1220 = vadd.f32 %v1200, %v1219
    %1221 = vdwg.mxu0
    %v1222 = vld [vmem:[#allocation11] sm:$0xff]
    %v1223 = vld [vmem:[#allocation11 + $0x8] sm:$0xff]
    %v1224 = vld [vmem:[#allocation11 + $0x10] sm:$0xff]
    %v1225 = vld [vmem:[#allocation11 + $0x18] sm:$0xff]
    %v1226 = vld [vmem:[#allocation11 + $0x20] sm:$0xff]
    %v1227 = vld [vmem:[#allocation11 + $0x28] sm:$0xff]
    %v1228 = vld [vmem:[#allocation11 + $0x30] sm:$0xff]
    %v1229 = vld [vmem:[#allocation11 + $0x38] sm:$0xff]
    %v1230 = vld [vmem:[#allocation11 + $0x40] sm:$0xff]
    %v1231 = vld [vmem:[#allocation11 + $0x48] sm:$0xff]
    %v1232 = vld [vmem:[#allocation11 + $0x50] sm:$0xff]
    %v1233 = vld [vmem:[#allocation11 + $0x58] sm:$0xff]
    %v1234 = vld [vmem:[#allocation11 + $0x60] sm:$0xff]
    %v1235 = vld [vmem:[#allocation11 + $0x68] sm:$0xff]
    %v1236 = vld [vmem:[#allocation11 + $0x70] sm:$0xff]
    %v1237 = vld [vmem:[#allocation11 + $0x78] sm:$0xff]
    %v1238 = vld [vmem:[#allocation11 + $0x80] sm:$0xff]
    %v1239 = vld [vmem:[#allocation11 + $0x88] sm:$0xff]
    %v1240 = vld [vmem:[#allocation11 + $0x90] sm:$0xff]
    %v1241 = vld [vmem:[#allocation11 + $0x98] sm:$0xff]
    %v1242 = vld [vmem:[#allocation11 + $0xa0] sm:$0xff]
    %v1243 = vld [vmem:[#allocation11 + $0xa8] sm:$0xff]
    %v1244 = vld [vmem:[#allocation11 + $0xb0] sm:$0xff]
    %v1245 = vld [vmem:[#allocation11 + $0xb8] sm:$0xff]
    %v1246 = vld [vmem:[#allocation11 + $0xc0] sm:$0xff]
    %v1247 = vld [vmem:[#allocation11 + $0xc8] sm:$0xff]
    %v1248 = vld [vmem:[#allocation11 + $0xd0] sm:$0xff]
    %v1249 = vld [vmem:[#allocation11 + $0xd8] sm:$0xff]
    %v1250 = vld [vmem:[#allocation11 + $0xe0] sm:$0xff]
    %v1251 = vld [vmem:[#allocation11 + $0xe8] sm:$0xff]
    %v1252 = vld [vmem:[#allocation11 + $0xf0] sm:$0xff]
    %v1253 = vld [vmem:[#allocation11 + $0xf8] sm:$0xff]
    %v1254 = vld [vmem:[#allocation11 + $0x100] sm:$0xff]
    %v1255 = vld [vmem:[#allocation11 + $0x108] sm:$0xff]
    %v1256 = vld [vmem:[#allocation11 + $0x110] sm:$0xff]
    %v1257 = vld [vmem:[#allocation11 + $0x118] sm:$0xff]
    %v1258 = vld [vmem:[#allocation11 + $0x120] sm:$0xff]
    %v1259 = vld [vmem:[#allocation11 + $0x128] sm:$0xff]
    %v1260 = vld [vmem:[#allocation11 + $0x130] sm:$0xff]
    %v1261 = vld [vmem:[#allocation11 + $0x138] sm:$0xff]
    %v1262 = vld [vmem:[#allocation11 + $0x140] sm:$0xff]
    %v1263 = vld [vmem:[#allocation11 + $0x148] sm:$0xff]
    %v1264 = vld [vmem:[#allocation11 + $0x150] sm:$0xff]
    %v1265 = vld [vmem:[#allocation11 + $0x158] sm:$0xff]
    %v1266 = vld [vmem:[#allocation11 + $0x160] sm:$0xff]
    %v1267 = vld [vmem:[#allocation11 + $0x168] sm:$0xff]
    %v1268 = vld [vmem:[#allocation11 + $0x170] sm:$0xff]
    %v1269 = vld [vmem:[#allocation11 + $0x178] sm:$0xff]
    %v1270 = vld [vmem:[#allocation11 + $0x180] sm:$0xff]
    %v1271 = vld [vmem:[#allocation11 + $0x188] sm:$0xff]
    %v1272 = vld [vmem:[#allocation11 + $0x190] sm:$0xff]
    %v1273 = vld [vmem:[#allocation11 + $0x198] sm:$0xff]
    %v1274 = vld [vmem:[#allocation11 + $0x1a0] sm:$0xff]
    %v1275 = vld [vmem:[#allocation11 + $0x1a8] sm:$0xff]
    %v1276 = vld [vmem:[#allocation11 + $0x1b0] sm:$0xff]
    %v1277 = vld [vmem:[#allocation11 + $0x1b8] sm:$0xff]
    %v1278 = vld [vmem:[#allocation11 + $0x1c0] sm:$0xff]
    %v1279 = vld [vmem:[#allocation11 + $0x1c8] sm:$0xff]
    %v1280 = vld [vmem:[#allocation11 + $0x1d0] sm:$0xff]
    %v1281 = vld [vmem:[#allocation11 + $0x1d8] sm:$0xff]
    %v1282 = vld [vmem:[#allocation11 + $0x1e0] sm:$0xff]
    %v1283 = vld [vmem:[#allocation11 + $0x1e8] sm:$0xff]
    %v1284 = vld [vmem:[#allocation11 + $0x1f0] sm:$0xff]
    %v1285 = vld [vmem:[#allocation11 + $0x1f8] sm:$0xff]
    %1286 = vmatpush.msra.mxu0 %v1252
    %1287 = vmatpush.msra.mxu0 %v1250
    %1288 = vmatpush.msra.mxu0 %v1248
    %1289 = vmatpush.msra.mxu0 %v1246
    %1290 = vmatpush.msra.mxu0 %v1244
    %1291 = vmatpush.msra.mxu0 %v1242
    %1292 = vmatpush.msra.mxu0 %v1240
    %1293 = vmatpush.msra.mxu0 %v1238
    %1294 = vmatpush.msra.mxu0 %v1236
    %1295 = vmatpush.msra.mxu0 %v1234
    %1296 = vmatpush.msra.mxu0 %v1232
    %1297 = vmatpush.msra.mxu0 %v1230
    %1298 = vmatpush.msra.mxu0 %v1228
    %1299 = vmatpush.msra.mxu0 %v1226
    %1300 = vmatpush.msra.mxu0 %v1224
    %1301 = vmatpush.msra.mxu0 %v1222
    %1302 = vmatmul.f32.gmra.mxu0 %v673
    %v1303 = vpop.f32.mrf.mxu0
    %v1304 = vadd.f32 %v997, %v1303
    %1305 = vdwg.mxu0
    %1306 = vmatpush.msra.mxu0 %v1284
    %1307 = vmatpush.msra.mxu0 %v1282
    %1308 = vmatpush.msra.mxu0 %v1280
    %1309 = vmatpush.msra.mxu0 %v1278
    %1310 = vmatpush.msra.mxu0 %v1276
    %1311 = vmatpush.msra.mxu0 %v1274
    %1312 = vmatpush.msra.mxu0 %v1272
    %1313 = vmatpush.msra.mxu0 %v1270
    %1314 = vmatpush.msra.mxu0 %v1268
    %1315 = vmatpush.msra.mxu0 %v1266
    %1316 = vmatpush.msra.mxu0 %v1264
    %1317 = vmatpush.msra.mxu0 %v1262
    %1318 = vmatpush.msra.mxu0 %v1260
    %1319 = vmatpush.msra.mxu0 %v1258
    %1320 = vmatpush.msra.mxu0 %v1256
    %1321 = vmatpush.msra.mxu0 %v1254
    %1322 = vmatmul.f32.gmra.mxu0 %v674
    %v1323 = vpop.f32.mrf.mxu0
    %v1324 = vadd.f32 %v1304, %v1323
    %1325 = vdwg.mxu0
    %1326 = vmatpush.msra.mxu0 %v1253
    %1327 = vmatpush.msra.mxu0 %v1251
    %1328 = vmatpush.msra.mxu0 %v1249
    %1329 = vmatpush.msra.mxu0 %v1247
    %1330 = vmatpush.msra.mxu0 %v1245
    %1331 = vmatpush.msra.mxu0 %v1243
    %1332 = vmatpush.msra.mxu0 %v1241
    %1333 = vmatpush.msra.mxu0 %v1239
    %1334 = vmatpush.msra.mxu0 %v1237
    %1335 = vmatpush.msra.mxu0 %v1235
    %1336 = vmatpush.msra.mxu0 %v1233
    %1337 = vmatpush.msra.mxu0 %v1231
    %1338 = vmatpush.msra.mxu0 %v1229
    %1339 = vmatpush.msra.mxu0 %v1227
    %1340 = vmatpush.msra.mxu0 %v1225
    %1341 = vmatpush.msra.mxu0 %v1223
    %1342 = vmatmul.f32.gmra.mxu0 %v673
    %v1343 = vpop.f32.mrf.mxu0
    %v1344 = vadd.f32 %v997, %v1343
    %1345 = vdwg.mxu0
    %1346 = vmatpush.msra.mxu0 %v1285
    %1347 = vmatpush.msra.mxu0 %v1283
    %1348 = vmatpush.msra.mxu0 %v1281
    %1349 = vmatpush.msra.mxu0 %v1279
    %1350 = vmatpush.msra.mxu0 %v1277
    %1351 = vmatpush.msra.mxu0 %v1275
    %1352 = vmatpush.msra.mxu0 %v1273
    %1353 = vmatpush.msra.mxu0 %v1271
    %1354 = vmatpush.msra.mxu0 %v1269
    %1355 = vmatpush.msra.mxu0 %v1267
    %1356 = vmatpush.msra.mxu0 %v1265
    %1357 = vmatpush.msra.mxu0 %v1263
    %1358 = vmatpush.msra.mxu0 %v1261
    %1359 = vmatpush.msra.mxu0 %v1259
    %1360 = vmatpush.msra.mxu0 %v1257
    %1361 = vmatpush.msra.mxu0 %v1255
    %1362 = vmatmul.f32.gmra.mxu0 %v674
    %v1363 = vpop.f32.mrf.mxu0
    %v1364 = vadd.f32 %v1344, %v1363
    %1365 = vdwg.mxu0
    %v1366 = vld [vmem:[#allocation13] sm:$0xff]
    %v1367 = vld [vmem:[#allocation13 + $0x8] sm:$0xff]
    %v1368 = vld [vmem:[#allocation13 + $0x10] sm:$0xff]
    %v1369 = vld [vmem:[#allocation13 + $0x18] sm:$0xff]
    %v1370 = vld [vmem:[#allocation13 + $0x20] sm:$0xff]
    %v1371 = vld [vmem:[#allocation13 + $0x28] sm:$0xff]
    %v1372 = vld [vmem:[#allocation13 + $0x30] sm:$0xff]
    %v1373 = vld [vmem:[#allocation13 + $0x38] sm:$0xff]
    %v1374 = vld [vmem:[#allocation13 + $0x40] sm:$0xff]
    %v1375 = vld [vmem:[#allocation13 + $0x48] sm:$0xff]
    %v1376 = vld [vmem:[#allocation13 + $0x50] sm:$0xff]
    %v1377 = vld [vmem:[#allocation13 + $0x58] sm:$0xff]
    %v1378 = vld [vmem:[#allocation13 + $0x60] sm:$0xff]
    %v1379 = vld [vmem:[#allocation13 + $0x68] sm:$0xff]
    %v1380 = vld [vmem:[#allocation13 + $0x70] sm:$0xff]
    %v1381 = vld [vmem:[#allocation13 + $0x78] sm:$0xff]
    %v1382 = vld [vmem:[#allocation13 + $0x80] sm:$0xff]
    %v1383 = vld [vmem:[#allocation13 + $0x88] sm:$0xff]
    %v1384 = vld [vmem:[#allocation13 + $0x90] sm:$0xff]
    %v1385 = vld [vmem:[#allocation13 + $0x98] sm:$0xff]
    %v1386 = vld [vmem:[#allocation13 + $0xa0] sm:$0xff]
    %v1387 = vld [vmem:[#allocation13 + $0xa8] sm:$0xff]
    %v1388 = vld [vmem:[#allocation13 + $0xb0] sm:$0xff]
    %v1389 = vld [vmem:[#allocation13 + $0xb8] sm:$0xff]
    %v1390 = vld [vmem:[#allocation13 + $0xc0] sm:$0xff]
    %v1391 = vld [vmem:[#allocation13 + $0xc8] sm:$0xff]
    %v1392 = vld [vmem:[#allocation13 + $0xd0] sm:$0xff]
    %v1393 = vld [vmem:[#allocation13 + $0xd8] sm:$0xff]
    %v1394 = vld [vmem:[#allocation13 + $0xe0] sm:$0xff]
    %v1395 = vld [vmem:[#allocation13 + $0xe8] sm:$0xff]
    %v1396 = vld [vmem:[#allocation13 + $0xf0] sm:$0xff]
    %v1397 = vld [vmem:[#allocation13 + $0xf8] sm:$0xff]
    %v1398 = vld [vmem:[#allocation13 + $0x100] sm:$0xff]
    %v1399 = vld [vmem:[#allocation13 + $0x108] sm:$0xff]
    %v1400 = vld [vmem:[#allocation13 + $0x110] sm:$0xff]
    %v1401 = vld [vmem:[#allocation13 + $0x118] sm:$0xff]
    %v1402 = vld [vmem:[#allocation13 + $0x120] sm:$0xff]
    %v1403 = vld [vmem:[#allocation13 + $0x128] sm:$0xff]
    %v1404 = vld [vmem:[#allocation13 + $0x130] sm:$0xff]
    %v1405 = vld [vmem:[#allocation13 + $0x138] sm:$0xff]
    %v1406 = vld [vmem:[#allocation13 + $0x140] sm:$0xff]
    %v1407 = vld [vmem:[#allocation13 + $0x148] sm:$0xff]
    %v1408 = vld [vmem:[#allocation13 + $0x150] sm:$0xff]
    %v1409 = vld [vmem:[#allocation13 + $0x158] sm:$0xff]
    %v1410 = vld [vmem:[#allocation13 + $0x160] sm:$0xff]
    %v1411 = vld [vmem:[#allocation13 + $0x168] sm:$0xff]
    %v1412 = vld [vmem:[#allocation13 + $0x170] sm:$0xff]
    %v1413 = vld [vmem:[#allocation13 + $0x178] sm:$0xff]
    %v1414 = vld [vmem:[#allocation13 + $0x180] sm:$0xff]
    %v1415 = vld [vmem:[#allocation13 + $0x188] sm:$0xff]
    %v1416 = vld [vmem:[#allocation13 + $0x190] sm:$0xff]
    %v1417 = vld [vmem:[#allocation13 + $0x198] sm:$0xff]
    %v1418 = vld [vmem:[#allocation13 + $0x1a0] sm:$0xff]
    %v1419 = vld [vmem:[#allocation13 + $0x1a8] sm:$0xff]
    %v1420 = vld [vmem:[#allocation13 + $0x1b0] sm:$0xff]
    %v1421 = vld [vmem:[#allocation13 + $0x1b8] sm:$0xff]
    %v1422 = vld [vmem:[#allocation13 + $0x1c0] sm:$0xff]
    %v1423 = vld [vmem:[#allocation13 + $0x1c8] sm:$0xff]
    %v1424 = vld [vmem:[#allocation13 + $0x1d0] sm:$0xff]
    %v1425 = vld [vmem:[#allocation13 + $0x1d8] sm:$0xff]
    %v1426 = vld [vmem:[#allocation13 + $0x1e0] sm:$0xff]
    %v1427 = vld [vmem:[#allocation13 + $0x1e8] sm:$0xff]
    %v1428 = vld [vmem:[#allocation13 + $0x1f0] sm:$0xff]
    %v1429 = vld [vmem:[#allocation13 + $0x1f8] sm:$0xff]
    %1430 = vmatpush.msra.mxu0 %v1396
    %1431 = vmatpush.msra.mxu0 %v1394
    %1432 = vmatpush.msra.mxu0 %v1392
    %1433 = vmatpush.msra.mxu0 %v1390
    %1434 = vmatpush.msra.mxu0 %v1388
    %1435 = vmatpush.msra.mxu0 %v1386
    %1436 = vmatpush.msra.mxu0 %v1384
    %1437 = vmatpush.msra.mxu0 %v1382
    %1438 = vmatpush.msra.mxu0 %v1380
    %1439 = vmatpush.msra.mxu0 %v1378
    %1440 = vmatpush.msra.mxu0 %v1376
    %1441 = vmatpush.msra.mxu0 %v1374
    %1442 = vmatpush.msra.mxu0 %v1372
    %1443 = vmatpush.msra.mxu0 %v1370
    %1444 = vmatpush.msra.mxu0 %v1368
    %1445 = vmatpush.msra.mxu0 %v1366
    %1446 = vmatmul.f32.gmra.mxu0 %v931
    %v1447 = vpop.f32.mrf.mxu0
    %v1448 = vadd.f32 %v997, %v1447
    %1449 = vdwg.mxu0
    %1450 = vmatpush.msra.mxu0 %v1428
    %1451 = vmatpush.msra.mxu0 %v1426
    %1452 = vmatpush.msra.mxu0 %v1424
    %1453 = vmatpush.msra.mxu0 %v1422
    %1454 = vmatpush.msra.mxu0 %v1420
    %1455 = vmatpush.msra.mxu0 %v1418
    %1456 = vmatpush.msra.mxu0 %v1416
    %1457 = vmatpush.msra.mxu0 %v1414
    %1458 = vmatpush.msra.mxu0 %v1412
    %1459 = vmatpush.msra.mxu0 %v1410
    %1460 = vmatpush.msra.mxu0 %v1408
    %1461 = vmatpush.msra.mxu0 %v1406
    %1462 = vmatpush.msra.mxu0 %v1404
    %1463 = vmatpush.msra.mxu0 %v1402
    %1464 = vmatpush.msra.mxu0 %v1400
    %1465 = vmatpush.msra.mxu0 %v1398
    %1466 = vmatmul.f32.gmra.mxu0 %v932
    %v1467 = vpop.f32.mrf.mxu0
    %v1468 = vadd.f32 %v1448, %v1467
    %1469 = vdwg.mxu0
    %1470 = vmatpush.msra.mxu0 %v1397
    %1471 = vmatpush.msra.mxu0 %v1395
    %1472 = vmatpush.msra.mxu0 %v1393
    %1473 = vmatpush.msra.mxu0 %v1391
    %1474 = vmatpush.msra.mxu0 %v1389
    %1475 = vmatpush.msra.mxu0 %v1387
    %1476 = vmatpush.msra.mxu0 %v1385
    %1477 = vmatpush.msra.mxu0 %v1383
    %1478 = vmatpush.msra.mxu0 %v1381
    %1479 = vmatpush.msra.mxu0 %v1379
    %1480 = vmatpush.msra.mxu0 %v1377
    %1481 = vmatpush.msra.mxu0 %v1375
    %1482 = vmatpush.msra.mxu0 %v1373
    %1483 = vmatpush.msra.mxu0 %v1371
    %1484 = vmatpush.msra.mxu0 %v1369
    %1485 = vmatpush.msra.mxu0 %v1367
    %1486 = vmatmul.f32.gmra.mxu0 %v931
    %v1487 = vpop.f32.mrf.mxu0
    %v1488 = vadd.f32 %v997, %v1487
    %1489 = vdwg.mxu0
    %1490 = vmatpush.msra.mxu0 %v1429
    %1491 = vmatpush.msra.mxu0 %v1427
    %1492 = vmatpush.msra.mxu0 %v1425
    %1493 = vmatpush.msra.mxu0 %v1423
    %1494 = vmatpush.msra.mxu0 %v1421
    %1495 = vmatpush.msra.mxu0 %v1419
    %1496 = vmatpush.msra.mxu0 %v1417
    %1497 = vmatpush.msra.mxu0 %v1415
    %1498 = vmatpush.msra.mxu0 %v1413
    %1499 = vmatpush.msra.mxu0 %v1411
    %1500 = vmatpush.msra.mxu0 %v1409
    %1501 = vmatpush.msra.mxu0 %v1407
    %1502 = vmatpush.msra.mxu0 %v1405
    %1503 = vmatpush.msra.mxu0 %v1403
    %1504 = vmatpush.msra.mxu0 %v1401
    %1505 = vmatpush.msra.mxu0 %v1399
    %1506 = vmatmul.f32.gmra.mxu0 %v932
    %v1507 = vpop.f32.mrf.mxu0
    %v1508 = vadd.f32 %v1488, %v1507
    %1509 = vdwg.mxu0
    %v1512 = vrot.slane %v1180, 7
    %v1513 = vrot.slane %v1220, 7
    %v1518 = vrot.slane %v1324, 6
    %v1519 = vrot.slane %v1364, 6
    %v1524 = vrot.slane %v1468, 5
    %v1525 = vrot.slane %v1508, 5
    %s1528 = scalar_lea.vmem [#allocation1], 1
    %1529 = vst [vmem:[%s1528] ss:$2 sm:$0xff] %v124
    %v1530 = vld.sshfl [vmem:[#allocation1] sm:$0xff pattern:$0x75316420]
    %v1531 = vld.sshfl [vmem:[#allocation1 + $0x8] sm:$0xff pattern:$0x75316420]
    %v1534 = vsel %vm256, %v1036, %v1512
    %v1535 = vsel %vm256, %v1076, %v1513
    %vm1536 = vcmask 1041408
    %v1537 = vsel %vm1536, %v1534, %v1518
    %v1538 = vsel %vm1536, %v1535, %v1519
    %vm1539 = vcmask 1042432
    %v1540 = vsel %vm1539, %v1537, %v1524
    %v1541 = vsel %vm1539, %v1538, %v1525
    %v1542 = vsel %vm145, %v1540, %v1530
    %v1543 = vsel %vm145, %v1541, %v1531
    %1544 = vst [vmem:[#allocation14] sm:$0xff] %v1542
    %1545 = vst [vmem:[#allocation14 + $0x8] sm:$0xff] %v1543
    %v1548 = vrot.slane %v1036, 1
    %v1549 = vrot.slane %v1076, 1
    %v1552 = vrot.slane %v1324, 7
    %v1553 = vrot.slane %v1364, 7
    %v1556 = vrot.slane %v1468, 6
    %v1557 = vrot.slane %v1508, 6
    %s1560 = scalar_lea.vmem [#allocation1], 1
    %1561 = vst [vmem:[%s1560] ss:$2 sm:$0xff] %v126
    %v1562 = vld.sshfl [vmem:[#allocation1] sm:$0xff pattern:$0x75316420]
    %v1563 = vld.sshfl [vmem:[#allocation1 + $0x8] sm:$0xff pattern:$0x75316420]
    %v1566 = vsel %vm256, %v1548, %v1180
    %v1567 = vsel %vm256, %v1549, %v1220
    %v1568 = vsel %vm1536, %v1566, %v1552
    %v1569 = vsel %vm1536, %v1567, %v1553
    %v1570 = vsel %vm1539, %v1568, %v1556
    %v1571 = vsel %vm1539, %v1569, %v1557
    %v1572 = vsel %vm145, %v1570, %v1562
    %v1573 = vsel %vm145, %v1571, %v1563
    %s1574 = scalar_lea.vmem [#allocation14], 16
    %1575 = vst [vmem:[%s1574] sm:$0xff] %v1572
    %1576 = vst [vmem:[%s1574 + $0x8] sm:$0xff] %v1573
    // Predicated region
    $region54: #{tpu_custom_call.1} parent=1 // pred_check
      _
    $region55: #{tpu_custom_call.1} parent=1 // pred_check_branch
      %1578 = sbr.rel (0) target = $region57
    $region56: #{tpu_custom_call.1} parent=1 // pred_region
      %1580 = vsyncadd [#allocation5], 0
      %s1581 = sshll.u32 [#allocation14], 4
      %s1582 = int_to_ptr.vmem [resolvable:$true] %s1581
      %s1583 = sshll.u32 %s7, 4
      %s1584 = int_to_ptr.hbm [resolvable:$true] %s1583
      %1589 = dma.vmem_to_hbm [thread:$0]  %s1582, 512, %s1584, [#allocation5], 256, 256, 16
    $region57: #{tpu_custom_call.1} parent=1 // pred_fallthru
      _
    // Predicated region
    $region58: #{tpu_custom_call.1} parent=1 // pred_check
      _
    $region59: #{tpu_custom_call.1} parent=1 // pred_check_branch
      %1591 = sbr.rel (0) target = $region61
    $region60: #{tpu_custom_call.1} parent=1 // pred_region
      %1593 = dma.done [#allocation5], 512
    $region61: #{tpu_custom_call.1} parent=1 // pred_fallthru
      _
    %1594 = vsyncpa [#allocation4], 1
    %1595 = vsyncpa [#allocation9], 1
    %1596 = vsyncpa [#allocation12], 1
    %1597 = vsyncpa [#allocation5], 1
    %1598 = vsyncpa [#allocation6], 1

</llo_original>
